<compile_context>
chip_gen: v7x
topology: tpu7x:2x2x1
jax: 0.10.0
libtpu: 0.0.40
codegen_flags: <defaults>
</compile_context>

<pallas_src>
import math

import jax
import jax.numpy as jnp
from jax import lax
from jax.experimental import pallas as pl
from jax.experimental.pallas import tpu as pltpu


def _tri_attn_kernel(x1_ref, x2_ref, x3_ref, wq_ref, bq_ref, wf_ref, bf_ref,
                     wob_ref, o1_ref, o2_ref, o3_ref):
    """One batch-tile per grid step.

    x{1,2,3}_ref : (Bt, S, D)   per-modality inputs (f32, streamed from HBM)
    wq_ref       : (3, D, D)    W_q split per modality, (in, out); bf16 or f32
    bq_ref       : (1, D)       f32
    wf_ref       : (3, D, 3D)   per-modality fused [W_k | W_v | W_o_x] (in, out)
    bf_ref       : (3, 1, 3D)   per-modality fused [b_k | b_v | b_o] (f32)
    wob_ref      : (3, D, D)    per-modality W_o context part (in, out)
    o{1,2,3}_ref : (Bt, S, D)   per-modality outputs
    """
    Bt, S, D = x1_ref.shape
    scale = 1.0 / math.sqrt(D)
    mxu = wq_ref.dtype          # MXU operand dtype (bf16 in production, f32 exact)

    # Load the three modality inputs once; cast only the matmul operands.
    xs2d = [r[...].reshape(Bt * S, D) for r in (x1_ref, x2_ref, x3_ref)]
    xs_m = [x.astype(mxu) for x in xs2d]

    # queries = W_q(cat(x1,x2,x3)) as a sum of three D-wide-K dots
    # (avoids materializing concat(x1,x2,x3) anywhere, including HBM).
    q2d = jnp.dot(xs_m[0], wq_ref[0], preferred_element_type=jnp.float32)
    q2d = q2d + jnp.dot(xs_m[1], wq_ref[1], preferred_element_type=jnp.float32)
    q2d = q2d + jnp.dot(xs_m[2], wq_ref[2], preferred_element_type=jnp.float32)
    q2d = q2d + bq_ref[...]
    q_m = q2d.reshape(Bt, S, D).astype(mxu)

    out_refs = (o1_ref, o2_ref, o3_ref)
    for i in range(3):
        # Fused projection: [K | V | W_o_x(x)+b_o] in one wide-N matmul.
        fused = jnp.dot(xs_m[i], wf_ref[i],
                        preferred_element_type=jnp.float32) + bf_ref[i]
        k = fused[:, :D].reshape(Bt, S, D)
        v = fused[:, D:2 * D].reshape(Bt, S, D)
        xo = fused[:, 2 * D:]                              # (Bt*S, D), has b_o

        # scores = q @ k^T / sqrt(D)  (contract last dims, batch over Bt).
        s = lax.dot_general(
            q_m, k.astype(mxu), (((2,), (2,)), ((0,), (0,))),
            preferred_element_type=jnp.float32) * scale    # (Bt, S, S) f32
        s = s - jnp.max(s, axis=-1, keepdims=True)
        p = jnp.exp(s)
        denom = jnp.sum(p, axis=-1, keepdims=True)
        r = pl.reciprocal(denom, approx=True)              # EUP vrcp
        r = r * (2.0 - denom * r)                          # 1 Newton step
        p = p * r

        # context = softmax(s) @ v   (dropout = identity in eval).
        ctx = lax.dot_general(
            p.astype(mxu), v.astype(mxu), (((2,), (1,)), ((0,), (0,))),
            preferred_element_type=jnp.float32)            # (Bt, S, D) f32

        # output_i = W_o_i(cat(x_i, ctx_i)) = x_i@W_o_x + ctx@W_o_c + b_o
        out_i = xo + jnp.dot(ctx.reshape(Bt * S, D).astype(mxu), wob_ref[i],
                             preferred_element_type=jnp.float32)
        # Store as soon as produced (short live ranges, no end-of-kernel concat).
        out_refs[i][...] = out_i.reshape(Bt, S, D).astype(out_refs[i].dtype)


def _vmem_limit_bytes():
    # ~85% of physical per-core VMEM: ~54 MiB on v7x (64 MiB physical),
    # ~108 MiB on v5e/v6e (128 MiB).  Leaves headroom for Mosaic scratch.
    try:
        cap = int(pltpu.get_tpu_info().vmem_capacity_bytes)
        return max(32 * 1024 * 1024, int(cap * 0.85))
    except Exception:
        return 48 * 1024 * 1024   # conservative: safe on every generation


def _pick_batch_tile(B, S, D, itemsize):
    """Largest divisor of B whose per-step VMEM footprint stays ~<= 4 MiB.

    Counts the double-buffered input/output blocks plus the f32 intermediates
    (q, fused, scores+probs, ctx) that the compiler keeps live per step.
    """
    io = 2 * (3 + 3) * S * D * itemsize                      # in+out, x2 buffers
    inter = 4 * (S * D + 3 * S * D + 2 * S * S + 2 * S * D)  # q, fused, s+p, ctx
    per_row = max(io + inter, 1)
    target = 4 * 1024 * 1024
    bt = max(1, min(B, target // per_row))
    while B % bt:
        bt -= 1
    return int(bt)


def tri_modal_cross_attention(x1, x2, x3, params, *, batch_tile=None):
    B, S, D = x1.shape
    if batch_tile is None:
        batch_tile = _pick_batch_tile(B, S, D, x1.dtype.itemsize)
    assert B % batch_tile == 0
    grid = (B // batch_tile,)

    out_shapes = tuple(jax.ShapeDtypeStruct((B, S, D), x1.dtype) for _ in range(3))

    # Advisory cost estimate (helps XLA schedule the surrounding glue ops).
    itemsize = x1.dtype.itemsize
    flops = 30 * B * S * D * D + 12 * B * S * S * D
    transcendentals = 3 * B * S * S
    w_bytes = sum(int(v.size) * v.dtype.itemsize for v in params.values())
    bytes_accessed = 3 * B * S * D * itemsize + 3 * B * S * D * itemsize + w_bytes
    cost = pl.CostEstimate(flops=flops, transcendentals=transcendentals,
                           bytes_accessed=bytes_accessed)

    compiler_params = pltpu.CompilerParams(
        dimension_semantics=("parallel",),
        vmem_limit_bytes=_vmem_limit_bytes())

    def _build_and_call(single_buffer_weights):
        # Constant-index weights: double buffering buys nothing; single-buffer
        # them to halve weight VMEM residency (matters at large D on v7x).
        wkw = (dict(pipeline_mode=pl.Buffered(1))
               if single_buffer_weights else {})
        x_specs = [pl.BlockSpec((batch_tile, S, D), lambda b: (b, 0, 0))
                   for _ in range(3)]
        wq_spec = pl.BlockSpec((3, D, D), lambda b: (0, 0, 0), **wkw)
        bq_spec = pl.BlockSpec((1, D), lambda b: (0, 0), **wkw)
        wf_spec = pl.BlockSpec((3, D, 3 * D), lambda b: (0, 0, 0), **wkw)
        bf_spec = pl.BlockSpec((3, 1, 3 * D), lambda b: (0, 0, 0), **wkw)
        wob_spec = pl.BlockSpec((3, D, D), lambda b: (0, 0, 0), **wkw)
        out_specs = [pl.BlockSpec((batch_tile, S, D), lambda b: (b, 0, 0))
                     for _ in range(3)]
        return pl.pallas_call(
            _tri_attn_kernel,
            out_shape=out_shapes,
            grid_spec=pltpu.PrefetchScalarGridSpec(
                num_scalar_prefetch=0,
                grid=grid,
                in_specs=x_specs + [wq_spec, bq_spec, wf_spec, bf_spec, wob_spec],
                out_specs=out_specs),
            compiler_params=compiler_params,
            cost_estimate=cost,
        )(x1, x2, x3, params["wq"], params["bq"],
          params["wf"], params["bf"], params["wob"])

    try:
        o1, o2, o3 = _build_and_call(True)
    except Exception:
        # pl.Buffered(1) support varies across jax versions; fall back to the
        # default double-buffered weight pipeline.
        o1, o2, o3 = _build_and_call(False)

    # Glue (wrapper side): token-wise interleave of o1/o2 + concat with o3.
    # TODO(synk): shuffle_interleave definition unverified vs original repo;
    # could also be fused into the kernel's store pattern (strided rows of a
    # (B, 3S, D) output) to save one HBM pass.
    vision_feature = jnp.stack([o1, o2], axis=2).reshape(B, 2 * S, D)
    global_feature = jnp.concatenate([vision_feature, o3], axis=1)
    return o1, o2, o3, global_feature


def make_params(key, input_dim, weight_dtype=jnp.bfloat16):
    """Deterministic parameter init mirroring nn.Linear shapes.

    PyTorch weights are (out, in); transposed to (in, out) and packed:
      wq  : (3, D, D)    W_q split per modality
      wf  : (3, D, 3D)   per-modality [W_k | W_v | W_o_x]
      bf  : (3, 1, 3D)   per-modality [b_k | b_v | b_o]   (f32)
      wob : (3, D, D)    per-modality W_o context part
    Matmul weights are stored in `weight_dtype` (bf16 for production);
    biases stay f32 (added after f32 accumulation).
    """
    D = input_dim
    keys = iter(jax.random.split(key, 20))
    u = lambda k, shape, fan_in: jax.random.uniform(
        k, shape, jnp.float32, -1.0 / math.sqrt(fan_in), 1.0 / math.sqrt(fan_in))

    wq = u(next(keys), (D, 3 * D), 3 * D).T.reshape(3, D, D)   # (3, D, D)
    bq = u(next(keys), (1, D), 3 * D)

    wf_list, bf_list, wob_list = [], [], []
    for _ in range(3):
        wk = u(next(keys), (D, D), D).T
        bk = u(next(keys), (1, D), D)
        wv = u(next(keys), (D, D), D).T
        bv = u(next(keys), (1, D), D)
        wo = u(next(keys), (D, 2 * D), 2 * D)                  # (out, in)
        bo = u(next(keys), (1, D), 2 * D)
        woa = wo[:, :D].T                                      # acts on x_i
        wob = wo[:, D:].T                                      # acts on ctx_i
        wf_list.append(jnp.concatenate([wk, wv, woa], axis=1))  # (D, 3D)
        bf_list.append(jnp.concatenate([bk, bv, bo], axis=1))   # (1, 3D)
        wob_list.append(wob)

    return dict(
        wq=wq.astype(weight_dtype),
        bq=bq,
        wf=jnp.stack(wf_list, axis=0).astype(weight_dtype),
        bf=jnp.stack(bf_list, axis=0),
        wob=jnp.stack(wob_list, axis=0).astype(weight_dtype))


def _reference(x1, x2, x3, p):
    """Pure-JAX f32 reference of the forward pass (dropout = identity)."""
    B, S, D = x1.shape
    xs = [x1, x2, x3]
    f32 = jnp.float32
    wq = p["wq"].astype(f32)
    q = sum(xs[i] @ wq[i] for i in range(3)) + p["bq"]
    outs = []
    for i in range(3):
        wf, bf = p["wf"][i].astype(f32), p["bf"][i]
        wk, wv, woa = wf[:, :D], wf[:, D:2 * D], wf[:, 2 * D:]
        bk, bv, bo = bf[:, :D], bf[:, D:2 * D], bf[:, 2 * D:]
        k = xs[i] @ wk + bk
        v = xs[i] @ wv + bv
        s = jnp.einsum("bqd,bkd->bqk", q, k) / math.sqrt(D)
        w = jax.nn.softmax(s, axis=-1)
        ctx = jnp.einsum("bqk,bkd->bqd", w, v)
        outs.append(xs[i] @ woa + ctx @ p["wob"][i].astype(f32) + bo)
    o1, o2, o3 = outs
    vision = jnp.stack([o1, o2], axis=2).reshape(B, 2 * S, D)
    return o1, o2, o3, jnp.concatenate([vision, o3], axis=1)


if __name__ == "__main__":
    # Toy shapes for the self-check.  NOTE: for production use pick D as a
    # multiple of 128 so all stores / slices are lane-dense unmasked vregs.
    B, S, D = 2, 8, 32
    key = jax.random.PRNGKey(0)
    k1, k2, k3, kp = jax.random.split(key, 4)
    x1 = jax.random.normal(k1, (B, S, D), jnp.float32)
    x2 = jax.random.normal(k2, (B, S, D), jnp.float32)
    x3 = jax.random.normal(k3, (B, S, D), jnp.float32)

    # Exact path: f32 weights + f32 MXU operands, tight tolerance.
    params_f32 = make_params(kp, D, weight_dtype=jnp.float32)
    refs = _reference(x1, x2, x3, params_f32)
    outs = jax.block_until_ready(tri_modal_cross_attention(x1, x2, x3, params_f32))
    for o, r in zip(outs, refs):
        assert o.shape == r.shape
        err = float(jnp.max(jnp.abs(o - r)))
        assert jnp.allclose(o, r, atol=2e-3, rtol=2e-3), err

    # Production path: bf16 MXU operands (f32 accumulation), looser tolerance.
    params_bf16 = dict(params_f32)
    for name in ("wq", "wf", "wob"):
        params_bf16[name] = params_f32[name].astype(jnp.bfloat16)
    outs_bf = jax.block_until_ready(
        tri_modal_cross_attention(x1, x2, x3, params_bf16))
    for o, r in zip(outs_bf, refs):
        assert o.shape == r.shape
        err = float(jnp.max(jnp.abs(o - r)))
        assert jnp.allclose(o, r, atol=5e-2, rtol=5e-2), err

    print("KERNEL_OK")
</pallas_src>

<mosaic_0001>
module attributes {stable_mosaic.version = 11 : i64} {
  func.func @_tri_attn_kernel(%arg0: i32, %arg1: memref<2x8x32xf32, #tpu.memory_space<vmem>>, %arg2: memref<2x8x32xf32, #tpu.memory_space<vmem>>, %arg3: memref<2x8x32xf32, #tpu.memory_space<vmem>>, %arg4: memref<3x32x32xf32, #tpu.memory_space<vmem>>, %arg5: memref<1x32xf32, #tpu.memory_space<vmem>>, %arg6: memref<3x32x96xf32, #tpu.memory_space<vmem>>, %arg7: memref<3x1x96xf32, #tpu.memory_space<vmem>>, %arg8: memref<3x32x32xf32, #tpu.memory_space<vmem>>, %arg9: memref<2x8x32xf32, #tpu.memory_space<vmem>>, %arg10: memref<2x8x32xf32, #tpu.memory_space<vmem>>, %arg11: memref<2x8x32xf32, #tpu.memory_space<vmem>>) attributes {dimension_semantics = [#tpu.dimension_semantics<parallel>], iteration_bounds = array<i64: 1>, scalar_prefetch = 0 : i64, scratch_operands = 0 : i64, tpu.core_type = #tpu.core_type<tc>, window_params = [{transform_indices = @transform_0, window_bounds = array<i64: 2, 8, 32>}, {transform_indices = @transform_1, window_bounds = array<i64: 2, 8, 32>}, {transform_indices = @transform_2, window_bounds = array<i64: 2, 8, 32>}, {pipeline_mode = #tpu.pipeline_mode<synchronous>, transform_indices = @transform_3, window_bounds = array<i64: 3, 32, 32>}, {pipeline_mode = #tpu.pipeline_mode<synchronous>, transform_indices = @transform_4, window_bounds = array<i64: 1, 32>}, {pipeline_mode = #tpu.pipeline_mode<synchronous>, transform_indices = @transform_5, window_bounds = array<i64: 3, 32, 96>}, {pipeline_mode = #tpu.pipeline_mode<synchronous>, transform_indices = @transform_6, window_bounds = array<i64: 3, 1, 96>}, {pipeline_mode = #tpu.pipeline_mode<synchronous>, transform_indices = @transform_7, window_bounds = array<i64: 3, 32, 32>}, {transform_indices = @transform_8, window_bounds = array<i64: 2, 8, 32>}, {transform_indices = @transform_9, window_bounds = array<i64: 2, 8, 32>}, {transform_indices = @transform_10, window_bounds = array<i64: 2, 8, 32>}]} {
    %c0 = arith.constant 0 : index
    %c0_0 = arith.constant 0 : index
    %c0_1 = arith.constant 0 : index
    %0 = vector.load %arg1[%c0, %c0_0, %c0_1] : memref<2x8x32xf32, #tpu.memory_space<vmem>>, vector<2x8x32xf32>
    %1 = vector.shape_cast %0 : vector<2x8x32xf32> to vector<16x32xf32>
    %c0_2 = arith.constant 0 : index
    %c0_3 = arith.constant 0 : index
    %c0_4 = arith.constant 0 : index
    %2 = vector.load %arg2[%c0_2, %c0_3, %c0_4] : memref<2x8x32xf32, #tpu.memory_space<vmem>>, vector<2x8x32xf32>
    %3 = vector.shape_cast %2 : vector<2x8x32xf32> to vector<16x32xf32>
    %c0_5 = arith.constant 0 : index
    %c0_6 = arith.constant 0 : index
    %c0_7 = arith.constant 0 : index
    %4 = vector.load %arg3[%c0_5, %c0_6, %c0_7] : memref<2x8x32xf32, #tpu.memory_space<vmem>>, vector<2x8x32xf32>
    %5 = vector.shape_cast %4 : vector<2x8x32xf32> to vector<16x32xf32>
    %c0_8 = arith.constant 0 : index
    %c0_9 = arith.constant 0 : index
    %c0_10 = arith.constant 0 : index
    %6 = vector.load %arg4[%c0_8, %c0_9, %c0_10] : memref<3x32x32xf32, #tpu.memory_space<vmem>>, vector<1x32x32xf32>
    %7 = vector.shape_cast %6 : vector<1x32x32xf32> to vector<32x32xf32>
    %cst = arith.constant dense<0.000000e+00> : vector<16x32xf32>
    %8 = tpu.matmul %1, %7, %cst {dimension_numbers = #tpu.dot_dimension_numbers<[1], [0], [0], [1], [0, 0, 1, 1], [], []>} : vector<16x32xf32>, vector<32x32xf32>, vector<16x32xf32> -> vector<16x32xf32>
    %c1 = arith.constant 1 : index
    %c0_11 = arith.constant 0 : index
    %c0_12 = arith.constant 0 : index
    %9 = vector.load %arg4[%c1, %c0_11, %c0_12] : memref<3x32x32xf32, #tpu.memory_space<vmem>>, vector<1x32x32xf32>
    %10 = vector.shape_cast %9 : vector<1x32x32xf32> to vector<32x32xf32>
    %cst_13 = arith.constant dense<0.000000e+00> : vector<16x32xf32>
    %11 = tpu.matmul %3, %10, %cst_13 {dimension_numbers = #tpu.dot_dimension_numbers<[1], [0], [0], [1], [0, 0, 1, 1], [], []>} : vector<16x32xf32>, vector<32x32xf32>, vector<16x32xf32> -> vector<16x32xf32>
    %12 = arith.addf %8, %11 : vector<16x32xf32>
    %c2 = arith.constant 2 : index
    %c0_14 = arith.constant 0 : index
    %c0_15 = arith.constant 0 : index
    %13 = vector.load %arg4[%c2, %c0_14, %c0_15] : memref<3x32x32xf32, #tpu.memory_space<vmem>>, vector<1x32x32xf32>
    %14 = vector.shape_cast %13 : vector<1x32x32xf32> to vector<32x32xf32>
    %cst_16 = arith.constant dense<0.000000e+00> : vector<16x32xf32>
    %15 = tpu.matmul %5, %14, %cst_16 {dimension_numbers = #tpu.dot_dimension_numbers<[1], [0], [0], [1], [0, 0, 1, 1], [], []>} : vector<16x32xf32>, vector<32x32xf32>, vector<16x32xf32> -> vector<16x32xf32>
    %16 = arith.addf %12, %15 : vector<16x32xf32>
    %c0_17 = arith.constant 0 : index
    %c0_18 = arith.constant 0 : index
    %17 = vector.load %arg5[%c0_17, %c0_18] : memref<1x32xf32, #tpu.memory_space<vmem>>, vector<1x32xf32>
    %18 = vector.broadcast %17 : vector<1x32xf32> to vector<16x32xf32>
    %19 = arith.addf %16, %18 : vector<16x32xf32>
    %20 = vector.shape_cast %19 : vector<16x32xf32> to vector<2x8x32xf32>
    %c0_19 = arith.constant 0 : index
    %c0_20 = arith.constant 0 : index
    %c0_21 = arith.constant 0 : index
    %21 = vector.load %arg6[%c0_19, %c0_20, %c0_21] : memref<3x32x96xf32, #tpu.memory_space<vmem>>, vector<1x32x96xf32>
    %22 = vector.shape_cast %21 : vector<1x32x96xf32> to vector<32x96xf32>
    %cst_22 = arith.constant dense<0.000000e+00> : vector<16x96xf32>
    %23 = tpu.matmul %1, %22, %cst_22 {dimension_numbers = #tpu.dot_dimension_numbers<[1], [0], [0], [1], [0, 0, 1, 1], [], []>} : vector<16x32xf32>, vector<32x96xf32>, vector<16x96xf32> -> vector<16x96xf32>
    %c0_23 = arith.constant 0 : index
    %c0_24 = arith.constant 0 : index
    %c0_25 = arith.constant 0 : index
    %24 = vector.load %arg7[%c0_23, %c0_24, %c0_25] : memref<3x1x96xf32, #tpu.memory_space<vmem>>, vector<1x1x96xf32>
    %25 = vector.shape_cast %24 : vector<1x1x96xf32> to vector<1x96xf32>
    %26 = vector.broadcast %25 : vector<1x96xf32> to vector<16x96xf32>
    %27 = arith.addf %23, %26 : vector<16x96xf32>
    %28 = vector.extract_strided_slice %27 {offsets = [0, 0], sizes = [16, 32], strides = [1, 1]} : vector<16x96xf32> to vector<16x32xf32>
    %29 = vector.shape_cast %28 : vector<16x32xf32> to vector<2x8x32xf32>
    %30 = vector.extract_strided_slice %27 {offsets = [0, 32], sizes = [16, 32], strides = [1, 1]} : vector<16x96xf32> to vector<16x32xf32>
    %31 = vector.shape_cast %30 : vector<16x32xf32> to vector<2x8x32xf32>
    %32 = vector.extract_strided_slice %27 {offsets = [0, 64], sizes = [16, 32], strides = [1, 1]} : vector<16x96xf32> to vector<16x32xf32>
    %cst_26 = arith.constant dense<0.000000e+00> : vector<2x8x8xf32>
    %33 = tpu.matmul %20, %29, %cst_26 {dimension_numbers = #tpu.dot_dimension_numbers<[2], [2], [1], [1], [0, 0, 0, 1, 1, 1], [0], [0]>} : vector<2x8x32xf32>, vector<2x8x32xf32>, vector<2x8x8xf32> -> vector<2x8x8xf32>
    %cst_27 = arith.constant 0.176776692 : f32
    %34 = vector.broadcast %cst_27 : f32 to vector<2x8x8xf32>
    %35 = arith.mulf %33, %34 : vector<2x8x8xf32>
    %cst_28 = arith.constant dense<0xFF800000> : vector<2x8xf32>
    %36 = vector.multi_reduction <maximumf>, %35, %cst_28 [2] : vector<2x8x8xf32> to vector<2x8xf32>
    %37 = vector.shape_cast %36 : vector<2x8xf32> to vector<2x8x1xf32>
    %38 = vector.broadcast %37 : vector<2x8x1xf32> to vector<2x8x8xf32>
    %39 = arith.subf %35, %38 : vector<2x8x8xf32>
    %40 = math.exp %39 : vector<2x8x8xf32>
    %cst_29 = arith.constant dense<0.000000e+00> : vector<2x8xf32>
    %41 = vector.multi_reduction <add>, %40, %cst_29 [2] : vector<2x8x8xf32> to vector<2x8xf32>
    %42 = vector.shape_cast %41 : vector<2x8xf32> to vector<2x8x1xf32>
    %43 = tpu.reciprocal %42 {approx = true} : vector<2x8x1xf32> -> vector<2x8x1xf32>
    %44 = arith.mulf %42, %43 : vector<2x8x1xf32>
    %cst_30 = arith.constant 2.000000e+00 : f32
    %45 = vector.broadcast %cst_30 : f32 to vector<2x8x1xf32>
    %46 = arith.subf %45, %44 : vector<2x8x1xf32>
    %47 = arith.mulf %43, %46 : vector<2x8x1xf32>
    %48 = vector.broadcast %47 : vector<2x8x1xf32> to vector<2x8x8xf32>
    %49 = arith.mulf %40, %48 : vector<2x8x8xf32>
    %cst_31 = arith.constant dense<0.000000e+00> : vector<2x8x32xf32>
    %50 = tpu.matmul %49, %31, %cst_31 {dimension_numbers = #tpu.dot_dimension_numbers<[2], [1], [1], [2], [0, 0, 0, 1, 1, 2], [0], [0]>} : vector<2x8x8xf32>, vector<2x8x32xf32>, vector<2x8x32xf32> -> vector<2x8x32xf32>
    %51 = vector.shape_cast %50 : vector<2x8x32xf32> to vector<16x32xf32>
    %c0_32 = arith.constant 0 : index
    %c0_33 = arith.constant 0 : index
    %c0_34 = arith.constant 0 : index
    %52 = vector.load %arg8[%c0_32, %c0_33, %c0_34] : memref<3x32x32xf32, #tpu.memory_space<vmem>>, vector<1x32x32xf32>
    %53 = vector.shape_cast %52 : vector<1x32x32xf32> to vector<32x32xf32>
    %cst_35 = arith.constant dense<0.000000e+00> : vector<16x32xf32>
    %54 = tpu.matmul %51, %53, %cst_35 {dimension_numbers = #tpu.dot_dimension_numbers<[1], [0], [0], [1], [0, 0, 1, 1], [], []>} : vector<16x32xf32>, vector<32x32xf32>, vector<16x32xf32> -> vector<16x32xf32>
    %55 = arith.addf %32, %54 : vector<16x32xf32>
    %56 = vector.shape_cast %55 : vector<16x32xf32> to vector<2x8x32xf32>
    %c0_36 = arith.constant 0 : index
    %c0_37 = arith.constant 0 : index
    %c0_38 = arith.constant 0 : index
    %57 = vector.load %arg9[%c0_36, %c0_37, %c0_38] : memref<2x8x32xf32, #tpu.memory_space<vmem>>, vector<2x8x32xf32>
    tpu.vector_store %arg9[%c0_36, %c0_37, %c0_38], %56 {strides = array<i32>} : memref<2x8x32xf32, #tpu.memory_space<vmem>>, vector<2x8x32xf32>,
    %c1_39 = arith.constant 1 : index
    %c0_40 = arith.constant 0 : index
    %c0_41 = arith.constant 0 : index
    %58 = vector.load %arg6[%c1_39, %c0_40, %c0_41] : memref<3x32x96xf32, #tpu.memory_space<vmem>>, vector<1x32x96xf32>
    %59 = vector.shape_cast %58 : vector<1x32x96xf32> to vector<32x96xf32>
    %cst_42 = arith.constant dense<0.000000e+00> : vector<16x96xf32>
    %60 = tpu.matmul %3, %59, %cst_42 {dimension_numbers = #tpu.dot_dimension_numbers<[1], [0], [0], [1], [0, 0, 1, 1], [], []>} : vector<16x32xf32>, vector<32x96xf32>, vector<16x96xf32> -> vector<16x96xf32>
    %c1_43 = arith.constant 1 : index
    %c0_44 = arith.constant 0 : index
    %c0_45 = arith.constant 0 : index
    %61 = vector.load %arg7[%c1_43, %c0_44, %c0_45] : memref<3x1x96xf32, #tpu.memory_space<vmem>>, vector<1x1x96xf32>
    %62 = vector.shape_cast %61 : vector<1x1x96xf32> to vector<1x96xf32>
    %63 = vector.broadcast %62 : vector<1x96xf32> to vector<16x96xf32>
    %64 = arith.addf %60, %63 : vector<16x96xf32>
    %65 = vector.extract_strided_slice %64 {offsets = [0, 0], sizes = [16, 32], strides = [1, 1]} : vector<16x96xf32> to vector<16x32xf32>
    %66 = vector.shape_cast %65 : vector<16x32xf32> to vector<2x8x32xf32>
    %67 = vector.extract_strided_slice %64 {offsets = [0, 32], sizes = [16, 32], strides = [1, 1]} : vector<16x96xf32> to vector<16x32xf32>
    %68 = vector.shape_cast %67 : vector<16x32xf32> to vector<2x8x32xf32>
    %69 = vector.extract_strided_slice %64 {offsets = [0, 64], sizes = [16, 32], strides = [1, 1]} : vector<16x96xf32> to vector<16x32xf32>
    %cst_46 = arith.constant dense<0.000000e+00> : vector<2x8x8xf32>
    %70 = tpu.matmul %20, %66, %cst_46 {dimension_numbers = #tpu.dot_dimension_numbers<[2], [2], [1], [1], [0, 0, 0, 1, 1, 1], [0], [0]>} : vector<2x8x32xf32>, vector<2x8x32xf32>, vector<2x8x8xf32> -> vector<2x8x8xf32>
    %cst_47 = arith.constant 0.176776692 : f32
    %71 = vector.broadcast %cst_47 : f32 to vector<2x8x8xf32>
    %72 = arith.mulf %70, %71 : vector<2x8x8xf32>
    %cst_48 = arith.constant dense<0xFF800000> : vector<2x8xf32>
    %73 = vector.multi_reduction <maximumf>, %72, %cst_48 [2] : vector<2x8x8xf32> to vector<2x8xf32>
    %74 = vector.shape_cast %73 : vector<2x8xf32> to vector<2x8x1xf32>
    %75 = vector.broadcast %74 : vector<2x8x1xf32> to vector<2x8x8xf32>
    %76 = arith.subf %72, %75 : vector<2x8x8xf32>
    %77 = math.exp %76 : vector<2x8x8xf32>
    %cst_49 = arith.constant dense<0.000000e+00> : vector<2x8xf32>
    %78 = vector.multi_reduction <add>, %77, %cst_49 [2] : vector<2x8x8xf32> to vector<2x8xf32>
    %79 = vector.shape_cast %78 : vector<2x8xf32> to vector<2x8x1xf32>
    %80 = tpu.reciprocal %79 {approx = true} : vector<2x8x1xf32> -> vector<2x8x1xf32>
    %81 = arith.mulf %79, %80 : vector<2x8x1xf32>
    %cst_50 = arith.constant 2.000000e+00 : f32
    %82 = vector.broadcast %cst_50 : f32 to vector<2x8x1xf32>
    %83 = arith.subf %82, %81 : vector<2x8x1xf32>
    %84 = arith.mulf %80, %83 : vector<2x8x1xf32>
    %85 = vector.broadcast %84 : vector<2x8x1xf32> to vector<2x8x8xf32>
    %86 = arith.mulf %77, %85 : vector<2x8x8xf32>
    %cst_51 = arith.constant dense<0.000000e+00> : vector<2x8x32xf32>
    %87 = tpu.matmul %86, %68, %cst_51 {dimension_numbers = #tpu.dot_dimension_numbers<[2], [1], [1], [2], [0, 0, 0, 1, 1, 2], [0], [0]>} : vector<2x8x8xf32>, vector<2x8x32xf32>, vector<2x8x32xf32> -> vector<2x8x32xf32>
    %88 = vector.shape_cast %87 : vector<2x8x32xf32> to vector<16x32xf32>
    %c1_52 = arith.constant 1 : index
    %c0_53 = arith.constant 0 : index
    %c0_54 = arith.constant 0 : index
    %89 = vector.load %arg8[%c1_52, %c0_53, %c0_54] : memref<3x32x32xf32, #tpu.memory_space<vmem>>, vector<1x32x32xf32>
    %90 = vector.shape_cast %89 : vector<1x32x32xf32> to vector<32x32xf32>
    %cst_55 = arith.constant dense<0.000000e+00> : vector<16x32xf32>
    %91 = tpu.matmul %88, %90, %cst_55 {dimension_numbers = #tpu.dot_dimension_numbers<[1], [0], [0], [1], [0, 0, 1, 1], [], []>} : vector<16x32xf32>, vector<32x32xf32>, vector<16x32xf32> -> vector<16x32xf32>
    %92 = arith.addf %69, %91 : vector<16x32xf32>
    %93 = vector.shape_cast %92 : vector<16x32xf32> to vector<2x8x32xf32>
    %c0_56 = arith.constant 0 : index
    %c0_57 = arith.constant 0 : index
    %c0_58 = arith.constant 0 : index
    %94 = vector.load %arg10[%c0_56, %c0_57, %c0_58] : memref<2x8x32xf32, #tpu.memory_space<vmem>>, vector<2x8x32xf32>
    tpu.vector_store %arg10[%c0_56, %c0_57, %c0_58], %93 {strides = array<i32>} : memref<2x8x32xf32, #tpu.memory_space<vmem>>, vector<2x8x32xf32>,
    %c2_59 = arith.constant 2 : index
    %c0_60 = arith.constant 0 : index
    %c0_61 = arith.constant 0 : index
    %95 = vector.load %arg6[%c2_59, %c0_60, %c0_61] : memref<3x32x96xf32, #tpu.memory_space<vmem>>, vector<1x32x96xf32>
    %96 = vector.shape_cast %95 : vector<1x32x96xf32> to vector<32x96xf32>
    %cst_62 = arith.constant dense<0.000000e+00> : vector<16x96xf32>
    %97 = tpu.matmul %5, %96, %cst_62 {dimension_numbers = #tpu.dot_dimension_numbers<[1], [0], [0], [1], [0, 0, 1, 1], [], []>} : vector<16x32xf32>, vector<32x96xf32>, vector<16x96xf32> -> vector<16x96xf32>
    %c2_63 = arith.constant 2 : index
    %c0_64 = arith.constant 0 : index
    %c0_65 = arith.constant 0 : index
    %98 = vector.load %arg7[%c2_63, %c0_64, %c0_65] : memref<3x1x96xf32, #tpu.memory_space<vmem>>, vector<1x1x96xf32>
    %99 = vector.shape_cast %98 : vector<1x1x96xf32> to vector<1x96xf32>
    %100 = vector.broadcast %99 : vector<1x96xf32> to vector<16x96xf32>
    %101 = arith.addf %97, %100 : vector<16x96xf32>
    %102 = vector.extract_strided_slice %101 {offsets = [0, 0], sizes = [16, 32], strides = [1, 1]} : vector<16x96xf32> to vector<16x32xf32>
    %103 = vector.shape_cast %102 : vector<16x32xf32> to vector<2x8x32xf32>
    %104 = vector.extract_strided_slice %101 {offsets = [0, 32], sizes = [16, 32], strides = [1, 1]} : vector<16x96xf32> to vector<16x32xf32>
    %105 = vector.shape_cast %104 : vector<16x32xf32> to vector<2x8x32xf32>
    %106 = vector.extract_strided_slice %101 {offsets = [0, 64], sizes = [16, 32], strides = [1, 1]} : vector<16x96xf32> to vector<16x32xf32>
    %cst_66 = arith.constant dense<0.000000e+00> : vector<2x8x8xf32>
    %107 = tpu.matmul %20, %103, %cst_66 {dimension_numbers = #tpu.dot_dimension_numbers<[2], [2], [1], [1], [0, 0, 0, 1, 1, 1], [0], [0]>} : vector<2x8x32xf32>, vector<2x8x32xf32>, vector<2x8x8xf32> -> vector<2x8x8xf32>
    %cst_67 = arith.constant 0.176776692 : f32
    %108 = vector.broadcast %cst_67 : f32 to vector<2x8x8xf32>
    %109 = arith.mulf %107, %108 : vector<2x8x8xf32>
    %cst_68 = arith.constant dense<0xFF800000> : vector<2x8xf32>
    %110 = vector.multi_reduction <maximumf>, %109, %cst_68 [2] : vector<2x8x8xf32> to vector<2x8xf32>
    %111 = vector.shape_cast %110 : vector<2x8xf32> to vector<2x8x1xf32>
    %112 = vector.broadcast %111 : vector<2x8x1xf32> to vector<2x8x8xf32>
    %113 = arith.subf %109, %112 : vector<2x8x8xf32>
    %114 = math.exp %113 : vector<2x8x8xf32>
    %cst_69 = arith.constant dense<0.000000e+00> : vector<2x8xf32>
    %115 = vector.multi_reduction <add>, %114, %cst_69 [2] : vector<2x8x8xf32> to vector<2x8xf32>
    %116 = vector.shape_cast %115 : vector<2x8xf32> to vector<2x8x1xf32>
    %117 = tpu.reciprocal %116 {approx = true} : vector<2x8x1xf32> -> vector<2x8x1xf32>
    %118 = arith.mulf %116, %117 : vector<2x8x1xf32>
    %cst_70 = arith.constant 2.000000e+00 : f32
    %119 = vector.broadcast %cst_70 : f32 to vector<2x8x1xf32>
    %120 = arith.subf %119, %118 : vector<2x8x1xf32>
    %121 = arith.mulf %117, %120 : vector<2x8x1xf32>
    %122 = vector.broadcast %121 : vector<2x8x1xf32> to vector<2x8x8xf32>
    %123 = arith.mulf %114, %122 : vector<2x8x8xf32>
    %cst_71 = arith.constant dense<0.000000e+00> : vector<2x8x32xf32>
    %124 = tpu.matmul %123, %105, %cst_71 {dimension_numbers = #tpu.dot_dimension_numbers<[2], [1], [1], [2], [0, 0, 0, 1, 1, 2], [0], [0]>} : vector<2x8x8xf32>, vector<2x8x32xf32>, vector<2x8x32xf32> -> vector<2x8x32xf32>
    %125 = vector.shape_cast %124 : vector<2x8x32xf32> to vector<16x32xf32>
    %c2_72 = arith.constant 2 : index
    %c0_73 = arith.constant 0 : index
    %c0_74 = arith.constant 0 : index
    %126 = vector.load %arg8[%c2_72, %c0_73, %c0_74] : memref<3x32x32xf32, #tpu.memory_space<vmem>>, vector<1x32x32xf32>
    %127 = vector.shape_cast %126 : vector<1x32x32xf32> to vector<32x32xf32>
    %cst_75 = arith.constant dense<0.000000e+00> : vector<16x32xf32>
    %128 = tpu.matmul %125, %127, %cst_75 {dimension_numbers = #tpu.dot_dimension_numbers<[1], [0], [0], [1], [0, 0, 1, 1], [], []>} : vector<16x32xf32>, vector<32x32xf32>, vector<16x32xf32> -> vector<16x32xf32>
    %129 = arith.addf %106, %128 : vector<16x32xf32>
    %130 = vector.shape_cast %129 : vector<16x32xf32> to vector<2x8x32xf32>
    %c0_76 = arith.constant 0 : index
    %c0_77 = arith.constant 0 : index
    %c0_78 = arith.constant 0 : index
    %131 = vector.load %arg11[%c0_76, %c0_77, %c0_78] : memref<2x8x32xf32, #tpu.memory_space<vmem>>, vector<2x8x32xf32>
    tpu.vector_store %arg11[%c0_76, %c0_77, %c0_78], %130 {strides = array<i32>} : memref<2x8x32xf32, #tpu.memory_space<vmem>>, vector<2x8x32xf32>,
    return
  }
  func.func @transform_0(%arg0: i32) -> (i32, i32, i32) {
    %c0_i32 = arith.constant 0 : i32
    %c0_i32_0 = arith.constant 0 : i32
    %c0_i32_1 = arith.constant 0 : i32
    return %arg0, %c0_i32, %c0_i32_0 : i32, i32, i32
  }
  func.func @transform_1(%arg0: i32) -> (i32, i32, i32) {
    %c0_i32 = arith.constant 0 : i32
    %c0_i32_0 = arith.constant 0 : i32
    %c0_i32_1 = arith.constant 0 : i32
    return %arg0, %c0_i32, %c0_i32_0 : i32, i32, i32
  }
  func.func @transform_2(%arg0: i32) -> (i32, i32, i32) {
    %c0_i32 = arith.constant 0 : i32
    %c0_i32_0 = arith.constant 0 : i32
    %c0_i32_1 = arith.constant 0 : i32
    return %arg0, %c0_i32, %c0_i32_0 : i32, i32, i32
  }
  func.func @transform_3(%arg0: i32) -> (i32, i32, i32) {
    %c0_i32 = arith.constant 0 : i32
    %c0_i32_0 = arith.constant 0 : i32
    %c0_i32_1 = arith.constant 0 : i32
    %c0_i32_2 = arith.constant 0 : i32
    return %c0_i32, %c0_i32_0, %c0_i32_1 : i32, i32, i32
  }
  func.func @transform_4(%arg0: i32) -> (i32, i32) {
    %c0_i32 = arith.constant 0 : i32
    %c0_i32_0 = arith.constant 0 : i32
    %c0_i32_1 = arith.constant 0 : i32
    return %c0_i32, %c0_i32_0 : i32, i32
  }
  func.func @transform_5(%arg0: i32) -> (i32, i32, i32) {
    %c0_i32 = arith.constant 0 : i32
    %c0_i32_0 = arith.constant 0 : i32
    %c0_i32_1 = arith.constant 0 : i32
    %c0_i32_2 = arith.constant 0 : i32
    return %c0_i32, %c0_i32_0, %c0_i32_1 : i32, i32, i32
  }
  func.func @transform_6(%arg0: i32) -> (i32, i32, i32) {
    %c0_i32 = arith.constant 0 : i32
    %c0_i32_0 = arith.constant 0 : i32
    %c0_i32_1 = arith.constant 0 : i32
    %c0_i32_2 = arith.constant 0 : i32
    return %c0_i32, %c0_i32_0, %c0_i32_1 : i32, i32, i32
  }
  func.func @transform_7(%arg0: i32) -> (i32, i32, i32) {
    %c0_i32 = arith.constant 0 : i32
    %c0_i32_0 = arith.constant 0 : i32
    %c0_i32_1 = arith.constant 0 : i32
    %c0_i32_2 = arith.constant 0 : i32
    return %c0_i32, %c0_i32_0, %c0_i32_1 : i32, i32, i32
  }
  func.func @transform_8(%arg0: i32) -> (i32, i32, i32) {
    %c0_i32 = arith.constant 0 : i32
    %c0_i32_0 = arith.constant 0 : i32
    %c0_i32_1 = arith.constant 0 : i32
    return %arg0, %c0_i32, %c0_i32_0 : i32, i32, i32
  }
  func.func @transform_9(%arg0: i32) -> (i32, i32, i32) {
    %c0_i32 = arith.constant 0 : i32
    %c0_i32_0 = arith.constant 0 : i32
    %c0_i32_1 = arith.constant 0 : i32
    return %arg0, %c0_i32, %c0_i32_0 : i32, i32, i32
  }
  func.func @transform_10(%arg0: i32) -> (i32, i32, i32) {
    %c0_i32 = arith.constant 0 : i32
    %c0_i32_0 = arith.constant 0 : i32
    %c0_i32_1 = arith.constant 0 : i32
    return %arg0, %c0_i32, %c0_i32_0 : i32, i32, i32
  }
}

module attributes {stable_mosaic.version = 11 : i64} {
  func.func @_tri_attn_kernel(%arg0: i32, %arg1: memref<2x8x32xf32, #tpu.memory_space<vmem>>, %arg2: memref<2x8x32xf32, #tpu.memory_space<vmem>>, %arg3: memref<2x8x32xf32, #tpu.memory_space<vmem>>, %arg4: memref<3x32x32xf32, #tpu.memory_space<vmem>>, %arg5: memref<1x32xf32, #tpu.memory_space<vmem>>, %arg6: memref<3x32x96xf32, #tpu.memory_space<vmem>>, %arg7: memref<3x1x96xf32, #tpu.memory_space<vmem>>, %arg8: memref<3x32x32xf32, #tpu.memory_space<vmem>>, %arg9: memref<2x8x32xf32, #tpu.memory_space<vmem>>, %arg10: memref<2x8x32xf32, #tpu.memory_space<vmem>>, %arg11: memref<2x8x32xf32, #tpu.memory_space<vmem>>) attributes {dimension_semantics = [#tpu.dimension_semantics<parallel>], iteration_bounds = array<i64: 1>, scalar_prefetch = 0 : i64, scratch_operands = 0 : i64, tpu.core_type = #tpu.core_type<tc>, window_params = [{transform_indices = @transform_0, window_bounds = array<i64: 2, 8, 32>}, {transform_indices = @transform_1, window_bounds = array<i64: 2, 8, 32>}, {transform_indices = @transform_2, window_bounds = array<i64: 2, 8, 32>}, {pipeline_mode = #tpu.pipeline_mode<synchronous>, transform_indices = @transform_3, window_bounds = array<i64: 3, 32, 32>}, {pipeline_mode = #tpu.pipeline_mode<synchronous>, transform_indices = @transform_4, window_bounds = array<i64: 1, 32>}, {pipeline_mode = #tpu.pipeline_mode<synchronous>, transform_indices = @transform_5, window_bounds = array<i64: 3, 32, 96>}, {pipeline_mode = #tpu.pipeline_mode<synchronous>, transform_indices = @transform_6, window_bounds = array<i64: 3, 1, 96>}, {pipeline_mode = #tpu.pipeline_mode<synchronous>, transform_indices = @transform_7, window_bounds = array<i64: 3, 32, 32>}, {transform_indices = @transform_8, window_bounds = array<i64: 2, 8, 32>}, {transform_indices = @transform_9, window_bounds = array<i64: 2, 8, 32>}, {transform_indices = @transform_10, window_bounds = array<i64: 2, 8, 32>}]} {
    %c0 = arith.constant 0 : index
    %c0_0 = arith.constant 0 : index
    %c0_1 = arith.constant 0 : index
    %0 = vector.load %arg1[%c0, %c0_0, %c0_1] : memref<2x8x32xf32, #tpu.memory_space<vmem>>, vector<2x8x32xf32>
    %1 = vector.shape_cast %0 : vector<2x8x32xf32> to vector<16x32xf32>
    %c0_2 = arith.constant 0 : index
    %c0_3 = arith.constant 0 : index
    %c0_4 = arith.constant 0 : index
    %2 = vector.load %arg2[%c0_2, %c0_3, %c0_4] : memref<2x8x32xf32, #tpu.memory_space<vmem>>, vector<2x8x32xf32>
    %3 = vector.shape_cast %2 : vector<2x8x32xf32> to vector<16x32xf32>
    %c0_5 = arith.constant 0 : index
    %c0_6 = arith.constant 0 : index
    %c0_7 = arith.constant 0 : index
    %4 = vector.load %arg3[%c0_5, %c0_6, %c0_7] : memref<2x8x32xf32, #tpu.memory_space<vmem>>, vector<2x8x32xf32>
    %5 = vector.shape_cast %4 : vector<2x8x32xf32> to vector<16x32xf32>
    %c0_8 = arith.constant 0 : index
    %c0_9 = arith.constant 0 : index
    %c0_10 = arith.constant 0 : index
    %6 = vector.load %arg4[%c0_8, %c0_9, %c0_10] : memref<3x32x32xf32, #tpu.memory_space<vmem>>, vector<1x32x32xf32>
    %7 = vector.shape_cast %6 : vector<1x32x32xf32> to vector<32x32xf32>
    %cst = arith.constant dense<0.000000e+00> : vector<16x32xf32>
    %8 = tpu.matmul %1, %7, %cst {dimension_numbers = #tpu.dot_dimension_numbers<[1], [0], [0], [1], [0, 0, 1, 1], [], []>} : vector<16x32xf32>, vector<32x32xf32>, vector<16x32xf32> -> vector<16x32xf32>
    %c1 = arith.constant 1 : index
    %c0_11 = arith.constant 0 : index
    %c0_12 = arith.constant 0 : index
    %9 = vector.load %arg4[%c1, %c0_11, %c0_12] : memref<3x32x32xf32, #tpu.memory_space<vmem>>, vector<1x32x32xf32>
    %10 = vector.shape_cast %9 : vector<1x32x32xf32> to vector<32x32xf32>
    %cst_13 = arith.constant dense<0.000000e+00> : vector<16x32xf32>
    %11 = tpu.matmul %3, %10, %cst_13 {dimension_numbers = #tpu.dot_dimension_numbers<[1], [0], [0], [1], [0, 0, 1, 1], [], []>} : vector<16x32xf32>, vector<32x32xf32>, vector<16x32xf32> -> vector<16x32xf32>
    %12 = arith.addf %8, %11 : vector<16x32xf32>
    %c2 = arith.constant 2 : index
    %c0_14 = arith.constant 0 : index
    %c0_15 = arith.constant 0 : index
    %13 = vector.load %arg4[%c2, %c0_14, %c0_15] : memref<3x32x32xf32, #tpu.memory_space<vmem>>, vector<1x32x32xf32>
    %14 = vector.shape_cast %13 : vector<1x32x32xf32> to vector<32x32xf32>
    %cst_16 = arith.constant dense<0.000000e+00> : vector<16x32xf32>
    %15 = tpu.matmul %5, %14, %cst_16 {dimension_numbers = #tpu.dot_dimension_numbers<[1], [0], [0], [1], [0, 0, 1, 1], [], []>} : vector<16x32xf32>, vector<32x32xf32>, vector<16x32xf32> -> vector<16x32xf32>
    %16 = arith.addf %12, %15 : vector<16x32xf32>
    %c0_17 = arith.constant 0 : index
    %c0_18 = arith.constant 0 : index
    %17 = vector.load %arg5[%c0_17, %c0_18] : memref<1x32xf32, #tpu.memory_space<vmem>>, vector<1x32xf32>
    %18 = vector.broadcast %17 : vector<1x32xf32> to vector<16x32xf32>
    %19 = arith.addf %16, %18 : vector<16x32xf32>
    %20 = vector.shape_cast %19 : vector<16x32xf32> to vector<2x8x32xf32>
    %c0_19 = arith.constant 0 : index
    %c0_20 = arith.constant 0 : index
    %c0_21 = arith.constant 0 : index
    %21 = vector.load %arg6[%c0_19, %c0_20, %c0_21] : memref<3x32x96xf32, #tpu.memory_space<vmem>>, vector<1x32x96xf32>
    %22 = vector.shape_cast %21 : vector<1x32x96xf32> to vector<32x96xf32>
    %cst_22 = arith.constant dense<0.000000e+00> : vector<16x96xf32>
    %23 = tpu.matmul %1, %22, %cst_22 {dimension_numbers = #tpu.dot_dimension_numbers<[1], [0], [0], [1], [0, 0, 1, 1], [], []>} : vector<16x32xf32>, vector<32x96xf32>, vector<16x96xf32> -> vector<16x96xf32>
    %c0_23 = arith.constant 0 : index
    %c0_24 = arith.constant 0 : index
    %c0_25 = arith.constant 0 : index
    %24 = vector.load %arg7[%c0_23, %c0_24, %c0_25] : memref<3x1x96xf32, #tpu.memory_space<vmem>>, vector<1x1x96xf32>
    %25 = vector.shape_cast %24 : vector<1x1x96xf32> to vector<1x96xf32>
    %26 = vector.broadcast %25 : vector<1x96xf32> to vector<16x96xf32>
    %27 = arith.addf %23, %26 : vector<16x96xf32>
    %28 = vector.extract_strided_slice %27 {offsets = [0, 0], sizes = [16, 32], strides = [1, 1]} : vector<16x96xf32> to vector<16x32xf32>
    %29 = vector.shape_cast %28 : vector<16x32xf32> to vector<2x8x32xf32>
    %30 = vector.extract_strided_slice %27 {offsets = [0, 32], sizes = [16, 32], strides = [1, 1]} : vector<16x96xf32> to vector<16x32xf32>
    %31 = vector.shape_cast %30 : vector<16x32xf32> to vector<2x8x32xf32>
    %32 = vector.extract_strided_slice %27 {offsets = [0, 64], sizes = [16, 32], strides = [1, 1]} : vector<16x96xf32> to vector<16x32xf32>
    %cst_26 = arith.constant dense<0.000000e+00> : vector<2x8x8xf32>
    %33 = tpu.matmul %20, %29, %cst_26 {dimension_numbers = #tpu.dot_dimension_numbers<[2], [2], [1], [1], [0, 0, 0, 1, 1, 1], [0], [0]>} : vector<2x8x32xf32>, vector<2x8x32xf32>, vector<2x8x8xf32> -> vector<2x8x8xf32>
    %cst_27 = arith.constant 0.176776692 : f32
    %34 = vector.broadcast %cst_27 : f32 to vector<2x8x8xf32>
    %35 = arith.mulf %33, %34 : vector<2x8x8xf32>
    %cst_28 = arith.constant dense<0xFF800000> : vector<2x8xf32>
    %36 = vector.multi_reduction <maximumf>, %35, %cst_28 [2] : vector<2x8x8xf32> to vector<2x8xf32>
    %37 = vector.shape_cast %36 : vector<2x8xf32> to vector<2x8x1xf32>
    %38 = vector.broadcast %37 : vector<2x8x1xf32> to vector<2x8x8xf32>
    %39 = arith.subf %35, %38 : vector<2x8x8xf32>
    %40 = math.exp %39 : vector<2x8x8xf32>
    %cst_29 = arith.constant dense<0.000000e+00> : vector<2x8xf32>
    %41 = vector.multi_reduction <add>, %40, %cst_29 [2] : vector<2x8x8xf32> to vector<2x8xf32>
    %42 = vector.shape_cast %41 : vector<2x8xf32> to vector<2x8x1xf32>
    %43 = tpu.reciprocal %42 {approx = true} : vector<2x8x1xf32> -> vector<2x8x1xf32>
    %44 = arith.mulf %42, %43 : vector<2x8x1xf32>
    %cst_30 = arith.constant 2.000000e+00 : f32
    %45 = vector.broadcast %cst_30 : f32 to vector<2x8x1xf32>
    %46 = arith.subf %45, %44 : vector<2x8x1xf32>
    %47 = arith.mulf %43, %46 : vector<2x8x1xf32>
    %48 = vector.broadcast %47 : vector<2x8x1xf32> to vector<2x8x8xf32>
    %49 = arith.mulf %40, %48 : vector<2x8x8xf32>
    %cst_31 = arith.constant dense<0.000000e+00> : vector<2x8x32xf32>
    %50 = tpu.matmul %49, %31, %cst_31 {dimension_numbers = #tpu.dot_dimension_numbers<[2], [1], [1], [2], [0, 0, 0, 1, 1, 2], [0], [0]>} : vector<2x8x8xf32>, vector<2x8x32xf32>, vector<2x8x32xf32> -> vector<2x8x32xf32>
    %51 = vector.shape_cast %50 : vector<2x8x32xf32> to vector<16x32xf32>
    %c0_32 = arith.constant 0 : index
    %c0_33 = arith.constant 0 : index
    %c0_34 = arith.constant 0 : index
    %52 = vector.load %arg8[%c0_32, %c0_33, %c0_34] : memref<3x32x32xf32, #tpu.memory_space<vmem>>, vector<1x32x32xf32>
    %53 = vector.shape_cast %52 : vector<1x32x32xf32> to vector<32x32xf32>
    %cst_35 = arith.constant dense<0.000000e+00> : vector<16x32xf32>
    %54 = tpu.matmul %51, %53, %cst_35 {dimension_numbers = #tpu.dot_dimension_numbers<[1], [0], [0], [1], [0, 0, 1, 1], [], []>} : vector<16x32xf32>, vector<32x32xf32>, vector<16x32xf32> -> vector<16x32xf32>
    %55 = arith.addf %32, %54 : vector<16x32xf32>
    %56 = vector.shape_cast %55 : vector<16x32xf32> to vector<2x8x32xf32>
    %c0_36 = arith.constant 0 : index
    %c0_37 = arith.constant 0 : index
    %c0_38 = arith.constant 0 : index
    %57 = vector.load %arg9[%c0_36, %c0_37, %c0_38] : memref<2x8x32xf32, #tpu.memory_space<vmem>>, vector<2x8x32xf32>
    tpu.vector_store %arg9[%c0_36, %c0_37, %c0_38], %56 {strides = array<i32>} : memref<2x8x32xf32, #tpu.memory_space<vmem>>, vector<2x8x32xf32>,
    %c1_39 = arith.constant 1 : index
    %c0_40 = arith.constant 0 : index
    %c0_41 = arith.constant 0 : index
    %58 = vector.load %arg6[%c1_39, %c0_40, %c0_41] : memref<3x32x96xf32, #tpu.memory_space<vmem>>, vector<1x32x96xf32>
    %59 = vector.shape_cast %58 : vector<1x32x96xf32> to vector<32x96xf32>
    %cst_42 = arith.constant dense<0.000000e+00> : vector<16x96xf32>
    %60 = tpu.matmul %3, %59, %cst_42 {dimension_numbers = #tpu.dot_dimension_numbers<[1], [0], [0], [1], [0, 0, 1, 1], [], []>} : vector<16x32xf32>, vector<32x96xf32>, vector<16x96xf32> -> vector<16x96xf32>
    %c1_43 = arith.constant 1 : index
    %c0_44 = arith.constant 0 : index
    %c0_45 = arith.constant 0 : index
    %61 = vector.load %arg7[%c1_43, %c0_44, %c0_45] : memref<3x1x96xf32, #tpu.memory_space<vmem>>, vector<1x1x96xf32>
    %62 = vector.shape_cast %61 : vector<1x1x96xf32> to vector<1x96xf32>
    %63 = vector.broadcast %62 : vector<1x96xf32> to vector<16x96xf32>
    %64 = arith.addf %60, %63 : vector<16x96xf32>
    %65 = vector.extract_strided_slice %64 {offsets = [0, 0], sizes = [16, 32], strides = [1, 1]} : vector<16x96xf32> to vector<16x32xf32>
    %66 = vector.shape_cast %65 : vector<16x32xf32> to vector<2x8x32xf32>
    %67 = vector.extract_strided_slice %64 {offsets = [0, 32], sizes = [16, 32], strides = [1, 1]} : vector<16x96xf32> to vector<16x32xf32>
    %68 = vector.shape_cast %67 : vector<16x32xf32> to vector<2x8x32xf32>
    %69 = vector.extract_strided_slice %64 {offsets = [0, 64], sizes = [16, 32], strides = [1, 1]} : vector<16x96xf32> to vector<16x32xf32>
    %cst_46 = arith.constant dense<0.000000e+00> : vector<2x8x8xf32>
    %70 = tpu.matmul %20, %66, %cst_46 {dimension_numbers = #tpu.dot_dimension_numbers<[2], [2], [1], [1], [0, 0, 0, 1, 1, 1], [0], [0]>} : vector<2x8x32xf32>, vector<2x8x32xf32>, vector<2x8x8xf32> -> vector<2x8x8xf32>
    %cst_47 = arith.constant 0.176776692 : f32
    %71 = vector.broadcast %cst_47 : f32 to vector<2x8x8xf32>
    %72 = arith.mulf %70, %71 : vector<2x8x8xf32>
    %cst_48 = arith.constant dense<0xFF800000> : vector<2x8xf32>
    %73 = vector.multi_reduction <maximumf>, %72, %cst_48 [2] : vector<2x8x8xf32> to vector<2x8xf32>
    %74 = vector.shape_cast %73 : vector<2x8xf32> to vector<2x8x1xf32>
    %75 = vector.broadcast %74 : vector<2x8x1xf32> to vector<2x8x8xf32>
    %76 = arith.subf %72, %75 : vector<2x8x8xf32>
    %77 = math.exp %76 : vector<2x8x8xf32>
    %cst_49 = arith.constant dense<0.000000e+00> : vector<2x8xf32>
    %78 = vector.multi_reduction <add>, %77, %cst_49 [2] : vector<2x8x8xf32> to vector<2x8xf32>
    %79 = vector.shape_cast %78 : vector<2x8xf32> to vector<2x8x1xf32>
    %80 = tpu.reciprocal %79 {approx = true} : vector<2x8x1xf32> -> vector<2x8x1xf32>
    %81 = arith.mulf %79, %80 : vector<2x8x1xf32>
    %cst_50 = arith.constant 2.000000e+00 : f32
    %82 = vector.broadcast %cst_50 : f32 to vector<2x8x1xf32>
    %83 = arith.subf %82, %81 : vector<2x8x1xf32>
    %84 = arith.mulf %80, %83 : vector<2x8x1xf32>
    %85 = vector.broadcast %84 : vector<2x8x1xf32> to vector<2x8x8xf32>
    %86 = arith.mulf %77, %85 : vector<2x8x8xf32>
    %cst_51 = arith.constant dense<0.000000e+00> : vector<2x8x32xf32>
    %87 = tpu.matmul %86, %68, %cst_51 {dimension_numbers = #tpu.dot_dimension_numbers<[2], [1], [1], [2], [0, 0, 0, 1, 1, 2], [0], [0]>} : vector<2x8x8xf32>, vector<2x8x32xf32>, vector<2x8x32xf32> -> vector<2x8x32xf32>
    %88 = vector.shape_cast %87 : vector<2x8x32xf32> to vector<16x32xf32>
    %c1_52 = arith.constant 1 : index
    %c0_53 = arith.constant 0 : index
    %c0_54 = arith.constant 0 : index
    %89 = vector.load %arg8[%c1_52, %c0_53, %c0_54] : memref<3x32x32xf32, #tpu.memory_space<vmem>>, vector<1x32x32xf32>
    %90 = vector.shape_cast %89 : vector<1x32x32xf32> to vector<32x32xf32>
    %cst_55 = arith.constant dense<0.000000e+00> : vector<16x32xf32>
    %91 = tpu.matmul %88, %90, %cst_55 {dimension_numbers = #tpu.dot_dimension_numbers<[1], [0], [0], [1], [0, 0, 1, 1], [], []>} : vector<16x32xf32>, vector<32x32xf32>, vector<16x32xf32> -> vector<16x32xf32>
    %92 = arith.addf %69, %91 : vector<16x32xf32>
    %93 = vector.shape_cast %92 : vector<16x32xf32> to vector<2x8x32xf32>
    %c0_56 = arith.constant 0 : index
    %c0_57 = arith.constant 0 : index
    %c0_58 = arith.constant 0 : index
    %94 = vector.load %arg10[%c0_56, %c0_57, %c0_58] : memref<2x8x32xf32, #tpu.memory_space<vmem>>, vector<2x8x32xf32>
    tpu.vector_store %arg10[%c0_56, %c0_57, %c0_58], %93 {strides = array<i32>} : memref<2x8x32xf32, #tpu.memory_space<vmem>>, vector<2x8x32xf32>,
    %c2_59 = arith.constant 2 : index
    %c0_60 = arith.constant 0 : index
    %c0_61 = arith.constant 0 : index
    %95 = vector.load %arg6[%c2_59, %c0_60, %c0_61] : memref<3x32x96xf32, #tpu.memory_space<vmem>>, vector<1x32x96xf32>
    %96 = vector.shape_cast %95 : vector<1x32x96xf32> to vector<32x96xf32>
    %cst_62 = arith.constant dense<0.000000e+00> : vector<16x96xf32>
    %97 = tpu.matmul %5, %96, %cst_62 {dimension_numbers = #tpu.dot_dimension_numbers<[1], [0], [0], [1], [0, 0, 1, 1], [], []>} : vector<16x32xf32>, vector<32x96xf32>, vector<16x96xf32> -> vector<16x96xf32>
    %c2_63 = arith.constant 2 : index
    %c0_64 = arith.constant 0 : index
    %c0_65 = arith.constant 0 : index
    %98 = vector.load %arg7[%c2_63, %c0_64, %c0_65] : memref<3x1x96xf32, #tpu.memory_space<vmem>>, vector<1x1x96xf32>
    %99 = vector.shape_cast %98 : vector<1x1x96xf32> to vector<1x96xf32>
    %100 = vector.broadcast %99 : vector<1x96xf32> to vector<16x96xf32>
    %101 = arith.addf %97, %100 : vector<16x96xf32>
    %102 = vector.extract_strided_slice %101 {offsets = [0, 0], sizes = [16, 32], strides = [1, 1]} : vector<16x96xf32> to vector<16x32xf32>
    %103 = vector.shape_cast %102 : vector<16x32xf32> to vector<2x8x32xf32>
    %104 = vector.extract_strided_slice %101 {offsets = [0, 32], sizes = [16, 32], strides = [1, 1]} : vector<16x96xf32> to vector<16x32xf32>
    %105 = vector.shape_cast %104 : vector<16x32xf32> to vector<2x8x32xf32>
    %106 = vector.extract_strided_slice %101 {offsets = [0, 64], sizes = [16, 32], strides = [1, 1]} : vector<16x96xf32> to vector<16x32xf32>
    %cst_66 = arith.constant dense<0.000000e+00> : vector<2x8x8xf32>
    %107 = tpu.matmul %20, %103, %cst_66 {dimension_numbers = #tpu.dot_dimension_numbers<[2], [2], [1], [1], [0, 0, 0, 1, 1, 1], [0], [0]>} : vector<2x8x32xf32>, vector<2x8x32xf32>, vector<2x8x8xf32> -> vector<2x8x8xf32>
    %cst_67 = arith.constant 0.176776692 : f32
    %108 = vector.broadcast %cst_67 : f32 to vector<2x8x8xf32>
    %109 = arith.mulf %107, %108 : vector<2x8x8xf32>
    %cst_68 = arith.constant dense<0xFF800000> : vector<2x8xf32>
    %110 = vector.multi_reduction <maximumf>, %109, %cst_68 [2] : vector<2x8x8xf32> to vector<2x8xf32>
    %111 = vector.shape_cast %110 : vector<2x8xf32> to vector<2x8x1xf32>
    %112 = vector.broadcast %111 : vector<2x8x1xf32> to vector<2x8x8xf32>
    %113 = arith.subf %109, %112 : vector<2x8x8xf32>
    %114 = math.exp %113 : vector<2x8x8xf32>
    %cst_69 = arith.constant dense<0.000000e+00> : vector<2x8xf32>
    %115 = vector.multi_reduction <add>, %114, %cst_69 [2] : vector<2x8x8xf32> to vector<2x8xf32>
    %116 = vector.shape_cast %115 : vector<2x8xf32> to vector<2x8x1xf32>
    %117 = tpu.reciprocal %116 {approx = true} : vector<2x8x1xf32> -> vector<2x8x1xf32>
    %118 = arith.mulf %116, %117 : vector<2x8x1xf32>
    %cst_70 = arith.constant 2.000000e+00 : f32
    %119 = vector.broadcast %cst_70 : f32 to vector<2x8x1xf32>
    %120 = arith.subf %119, %118 : vector<2x8x1xf32>
    %121 = arith.mulf %117, %120 : vector<2x8x1xf32>
    %122 = vector.broadcast %121 : vector<2x8x1xf32> to vector<2x8x8xf32>
    %123 = arith.mulf %114, %122 : vector<2x8x8xf32>
    %cst_71 = arith.constant dense<0.000000e+00> : vector<2x8x32xf32>
    %124 = tpu.matmul %123, %105, %cst_71 {dimension_numbers = #tpu.dot_dimension_numbers<[2], [1], [1], [2], [0, 0, 0, 1, 1, 2], [0], [0]>} : vector<2x8x8xf32>, vector<2x8x32xf32>, vector<2x8x32xf32> -> vector<2x8x32xf32>
    %125 = vector.shape_cast %124 : vector<2x8x32xf32> to vector<16x32xf32>
    %c2_72 = arith.constant 2 : index
    %c0_73 = arith.constant 0 : index
    %c0_74 = arith.constant 0 : index
    %126 = vector.load %arg8[%c2_72, %c0_73, %c0_74] : memref<3x32x32xf32, #tpu.memory_space<vmem>>, vector<1x32x32xf32>
    %127 = vector.shape_cast %126 : vector<1x32x32xf32> to vector<32x32xf32>
    %cst_75 = arith.constant dense<0.000000e+00> : vector<16x32xf32>
    %128 = tpu.matmul %125, %127, %cst_75 {dimension_numbers = #tpu.dot_dimension_numbers<[1], [0], [0], [1], [0, 0, 1, 1], [], []>} : vector<16x32xf32>, vector<32x32xf32>, vector<16x32xf32> -> vector<16x32xf32>
    %129 = arith.addf %106, %128 : vector<16x32xf32>
    %130 = vector.shape_cast %129 : vector<16x32xf32> to vector<2x8x32xf32>
    %c0_76 = arith.constant 0 : index
    %c0_77 = arith.constant 0 : index
    %c0_78 = arith.constant 0 : index
    %131 = vector.load %arg11[%c0_76, %c0_77, %c0_78] : memref<2x8x32xf32, #tpu.memory_space<vmem>>, vector<2x8x32xf32>
    tpu.vector_store %arg11[%c0_76, %c0_77, %c0_78], %130 {strides = array<i32>} : memref<2x8x32xf32, #tpu.memory_space<vmem>>, vector<2x8x32xf32>,
    return
  }
  func.func @transform_0(%arg0: i32) -> (i32, i32, i32) {
    %c0_i32 = arith.constant 0 : i32
    %c0_i32_0 = arith.constant 0 : i32
    %c0_i32_1 = arith.constant 0 : i32
    return %arg0, %c0_i32, %c0_i32_0 : i32, i32, i32
  }
  func.func @transform_1(%arg0: i32) -> (i32, i32, i32) {
    %c0_i32 = arith.constant 0 : i32
    %c0_i32_0 = arith.constant 0 : i32
    %c0_i32_1 = arith.constant 0 : i32
    return %arg0, %c0_i32, %c0_i32_0 : i32, i32, i32
  }
  func.func @transform_2(%arg0: i32) -> (i32, i32, i32) {
    %c0_i32 = arith.constant 0 : i32
    %c0_i32_0 = arith.constant 0 : i32
    %c0_i32_1 = arith.constant 0 : i32
    return %arg0, %c0_i32, %c0_i32_0 : i32, i32, i32
  }
  func.func @transform_3(%arg0: i32) -> (i32, i32, i32) {
    %c0_i32 = arith.constant 0 : i32
    %c0_i32_0 = arith.constant 0 : i32
    %c0_i32_1 = arith.constant 0 : i32
    %c0_i32_2 = arith.constant 0 : i32
    return %c0_i32, %c0_i32_0, %c0_i32_1 : i32, i32, i32
  }
  func.func @transform_4(%arg0: i32) -> (i32, i32) {
    %c0_i32 = arith.constant 0 : i32
    %c0_i32_0 = arith.constant 0 : i32
    %c0_i32_1 = arith.constant 0 : i32
    return %c0_i32, %c0_i32_0 : i32, i32
  }
  func.func @transform_5(%arg0: i32) -> (i32, i32, i32) {
    %c0_i32 = arith.constant 0 : i32
    %c0_i32_0 = arith.constant 0 : i32
    %c0_i32_1 = arith.constant 0 : i32
    %c0_i32_2 = arith.constant 0 : i32
    return %c0_i32, %c0_i32_0, %c0_i32_1 : i32, i32, i32
  }
  func.func @transform_6(%arg0: i32) -> (i32, i32, i32) {
    %c0_i32 = arith.constant 0 : i32
    %c0_i32_0 = arith.constant 0 : i32
    %c0_i32_1 = arith.constant 0 : i32
    %c0_i32_2 = arith.constant 0 : i32
    return %c0_i32, %c0_i32_0, %c0_i32_1 : i32, i32, i32
  }
  func.func @transform_7(%arg0: i32) -> (i32, i32, i32) {
    %c0_i32 = arith.constant 0 : i32
    %c0_i32_0 = arith.constant 0 : i32
    %c0_i32_1 = arith.constant 0 : i32
    %c0_i32_2 = arith.constant 0 : i32
    return %c0_i32, %c0_i32_0, %c0_i32_1 : i32, i32, i32
  }
  func.func @transform_8(%arg0: i32) -> (i32, i32, i32) {
    %c0_i32 = arith.constant 0 : i32
    %c0_i32_0 = arith.constant 0 : i32
    %c0_i32_1 = arith.constant 0 : i32
    return %arg0, %c0_i32, %c0_i32_0 : i32, i32, i32
  }
  func.func @transform_9(%arg0: i32) -> (i32, i32, i32) {
    %c0_i32 = arith.constant 0 : i32
    %c0_i32_0 = arith.constant 0 : i32
    %c0_i32_1 = arith.constant 0 : i32
    return %arg0, %c0_i32, %c0_i32_0 : i32, i32, i32
  }
  func.func @transform_10(%arg0: i32) -> (i32, i32, i32) {
    %c0_i32 = arith.constant 0 : i32
    %c0_i32_0 = arith.constant 0 : i32
    %c0_i32_1 = arith.constant 0 : i32
    return %arg0, %c0_i32, %c0_i32_0 : i32, i32, i32
  }
}

</mosaic_0001>

<llo_original>
// kernel: tpu_custom_call.1
$region0: #{tpu_custom_call.1}
  #allocation0 [shape = 'u32[]', space=smem, size = 0x4, offset = 0x4, fixed_abs, tag = 'smem constant byte address 0x4 - core index']
  #allocation1 [shape = 'u32[144,128]{1,0:T(1,128)}', space=vmem, size = 0x12000, scoped, tag = 'internal scratch']
  %s0 = inlined_call_operand.hbm [shape: f32[2,8,32], index: 0, kind: input, shape index: {}]
  %s1 = inlined_call_operand.hbm [shape: f32[2,8,32], index: 1, kind: input, shape index: {}]
  %s2 = inlined_call_operand.hbm [shape: f32[2,8,32], index: 2, kind: input, shape index: {}]
  %s3 = inlined_call_operand.hbm [shape: f32[3,32,32], index: 3, kind: input, shape index: {}]
  %s4 = inlined_call_operand.vmem [shape: f32[1,32], index: 4, kind: input, shape index: {}]
  %s5 = inlined_call_operand.hbm [shape: f32[3,32,96], index: 5, kind: input, shape index: {}]
  %s6 = inlined_call_operand.vmem [shape: f32[3,1,96], index: 6, kind: input, shape index: {}]
  %s7 = inlined_call_operand.hbm [shape: f32[3,32,32], index: 7, kind: input, shape index: {}]
  %s8 = inlined_call_operand.hbm [shape: f32[2,8,32], index: 8, kind: output, shape index: {0}]
  %s9 = inlined_call_operand.hbm [shape: f32[2,8,32], index: 9, kind: output, shape index: {1}]
  %s10 = inlined_call_operand.hbm [shape: f32[2,8,32], index: 10, kind: output, shape index: {2}]
  %11 = xla_tuple %s8, %s9, %s10
  %s12 = sld [smem:[#allocation0]]
  $region82: #{tpu_custom_call.1} parent=0
    _
  %s14 = ssub.s32 1, %s12
  %s15 = scalar_select 0, %s14, %s12
  $region1: #{tpu_custom_call.1} parent=0
    #allocation2 [shape = 'u8[8192]{0}', space=vmem, size = 0x2000, scoped, tag = 'input window, operand 0, single buffered']
    #allocation3 [shape = 's32[1]{0}', space=sflag, size = 0x4, scoped, tag = 'scoped memory for tpu_custom_call.1']
    #allocation4 [shape = 's32[1]{0}', space=sflag, size = 0x4, scoped, tag = 'scoped memory for tpu_custom_call.1']
    #allocation5 [shape = 'u8[8192]{0}', space=vmem, size = 0x2000, scoped, tag = 'input window, operand 1, single buffered']
    #allocation6 [shape = 's32[1]{0}', space=sflag, size = 0x4, scoped, tag = 'scoped memory for tpu_custom_call.1']
    #allocation7 [shape = 'u8[8192]{0}', space=vmem, size = 0x2000, scoped, tag = 'input window, operand 2, single buffered']
    #allocation8 [shape = 'u8[49152]{0}', space=vmem, size = 0xc000, scoped, tag = 'input window, operand 3, single buffered']
    #allocation9 [shape = 's32[1]{0}', space=sflag, size = 0x4, scoped, tag = 'scoped memory for tpu_custom_call.1']
    #allocation10 [shape = 'u8[49152]{0}', space=vmem, size = 0xc000, scoped, tag = 'input window, operand 5, single buffered']
    #allocation11 [shape = 'u8[49152]{0}', space=vmem, size = 0xc000, scoped, tag = 'input window, operand 7, single buffered']
    #allocation12 [shape = 's32[1]{0}', space=sflag, size = 0x4, scoped, tag = 'scoped memory for tpu_custom_call.1']
    #allocation13 [shape = 'u8[8192]{0}', space=vmem, size = 0x2000, scoped, tag = 'output window, operand 0, single buffered']
    #allocation14 [shape = 'u8[8192]{0}', space=vmem, size = 0x2000, scoped, tag = 'output window, operand 1, single buffered']
    #allocation15 [shape = 's32[1]{0}', space=sflag, size = 0x4, scoped, tag = 'scoped memory for tpu_custom_call.1']
    #allocation16 [shape = 'u8[8192]{0}', space=vmem, size = 0x2000, scoped, tag = 'output window, operand 2, single buffered']
    %16 = vsyncpa [#allocation3], 0
    %17 = vsyncpa [#allocation6], 0
    %18 = vsyncpa [#allocation9], 0
    %19 = vsyncpa [#allocation12], 0
    %20 = vsyncpa [#allocation4], 0
    %21 = vsyncpa [#allocation15], 0
    // Predicated region
    $region2: #{tpu_custom_call.1} parent=1 // pred_check
      _
    $region3: #{tpu_custom_call.1} parent=1 // pred_check_branch
      %23 = sbr.rel (0) target = $region5
    $region4: #{tpu_custom_call.1} parent=1 // pred_region
      %s25 = ssub.s32 256, 256
      %26 = vsyncadd [#allocation3], %s25
      %s27 = sshll.u32 [#allocation2], 4
      %s28 = int_to_ptr.vmem [resolvable:$true] %s27
      %33 = dma.hbm_to_vmem [thread:$0]  %s0, 256, %s28, [#allocation3], 128, 128, 8
    $region5: #{tpu_custom_call.1} parent=1 // pred_fallthru
      _
    // Predicated region
    $region6: #{tpu_custom_call.1} parent=1 // pred_check
      _
    $region7: #{tpu_custom_call.1} parent=1 // pred_check_branch
      %35 = sbr.rel (0) target = $region9
    $region8: #{tpu_custom_call.1} parent=1 // pred_region
      %s37 = ssub.s32 256, 256
      %38 = vsyncadd [#allocation6], %s37
      %s39 = sshll.u32 [#allocation5], 4
      %s40 = int_to_ptr.vmem [resolvable:$true] %s39
      %45 = dma.hbm_to_vmem [thread:$0]  %s1, 256, %s40, [#allocation6], 128, 128, 8
    $region9: #{tpu_custom_call.1} parent=1 // pred_fallthru
      _
    // Predicated region
    $region10: #{tpu_custom_call.1} parent=1 // pred_check
      _
    $region11: #{tpu_custom_call.1} parent=1 // pred_check_branch
      %47 = sbr.rel (0) target = $region13
    $region12: #{tpu_custom_call.1} parent=1 // pred_region
      %s49 = ssub.s32 256, 256
      %50 = vsyncadd [#allocation6], %s49
      %s51 = sshll.u32 [#allocation7], 4
      %s52 = int_to_ptr.vmem [resolvable:$true] %s51
      %57 = dma.hbm_to_vmem [thread:$0]  %s2, 256, %s52, [#allocation6], 128, 128, 8
    $region13: #{tpu_custom_call.1} parent=1 // pred_fallthru
      _
    // Predicated region
    $region14: #{tpu_custom_call.1} parent=1 // pred_check
      _
    $region15: #{tpu_custom_call.1} parent=1 // pred_check_branch
      %59 = sbr.rel (0) target = $region17
    $region16: #{tpu_custom_call.1} parent=1 // pred_region
      %s61 = ssub.s32 1536, 1536
      %62 = vsyncadd [#allocation9], %s61
      %s63 = sshll.u32 [#allocation8], 4
      %s64 = int_to_ptr.vmem [resolvable:$true] %s63
      %69 = dma.hbm_to_vmem [thread:$0]  %s3, 1536, %s64, [#allocation9], 128, 128, 8
    $region17: #{tpu_custom_call.1} parent=1 // pred_fallthru
      _
    // Predicated region
    $region18: #{tpu_custom_call.1} parent=1 // pred_check
      _
    $region19: #{tpu_custom_call.1} parent=1 // pred_check_branch
      %71 = sbr.rel (0) target = $region21
    $region20: #{tpu_custom_call.1} parent=1 // pred_region
      _
    $region21: #{tpu_custom_call.1} parent=1 // pred_fallthru
      _
    // Predicated region
    $region22: #{tpu_custom_call.1} parent=1 // pred_check
      _
    $region23: #{tpu_custom_call.1} parent=1 // pred_check_branch
      %73 = sbr.rel (0) target = $region25
    $region24: #{tpu_custom_call.1} parent=1 // pred_region
      %s75 = ssub.s32 1536, 1536
      %76 = vsyncadd [#allocation9], %s75
      %s77 = sshll.u32 [#allocation10], 4
      %s78 = int_to_ptr.vmem [resolvable:$true] %s77
      %83 = dma.hbm_to_vmem [thread:$0]  %s5, 1536, %s78, [#allocation9], 128, 128, 8
    $region25: #{tpu_custom_call.1} parent=1 // pred_fallthru
      _
    // Predicated region
    $region26: #{tpu_custom_call.1} parent=1 // pred_check
      _
    $region27: #{tpu_custom_call.1} parent=1 // pred_check_branch
      %85 = sbr.rel (0) target = $region29
    $region28: #{tpu_custom_call.1} parent=1 // pred_region
      _
    $region29: #{tpu_custom_call.1} parent=1 // pred_fallthru
      _
    // Predicated region
    $region30: #{tpu_custom_call.1} parent=1 // pred_check
      _
    $region31: #{tpu_custom_call.1} parent=1 // pred_check_branch
      %87 = sbr.rel (0) target = $region33
    $region32: #{tpu_custom_call.1} parent=1 // pred_region
      %s89 = ssub.s32 1536, 1536
      %90 = vsyncadd [#allocation12], %s89
      %s91 = sshll.u32 [#allocation11], 4
      %s92 = int_to_ptr.vmem [resolvable:$true] %s91
      %97 = dma.hbm_to_vmem [thread:$0]  %s7, 1536, %s92, [#allocation12], 128, 128, 8
    $region33: #{tpu_custom_call.1} parent=1 // pred_fallthru
      _
    // Predicated region
    $region34: #{tpu_custom_call.1} parent=1 // pred_check
      _
    $region35: #{tpu_custom_call.1} parent=1 // pred_check_branch
      %99 = sbr.rel (0) target = $region37
    $region36: #{tpu_custom_call.1} parent=1 // pred_region
      %100 = dma.done [#allocation3], 256
    $region37: #{tpu_custom_call.1} parent=1 // pred_fallthru
      _
    // Predicated region
    $region38: #{tpu_custom_call.1} parent=1 // pred_check
      _
    $region39: #{tpu_custom_call.1} parent=1 // pred_check_branch
      %102 = sbr.rel (0) target = $region41
    $region40: #{tpu_custom_call.1} parent=1 // pred_region
      %103 = dma.done [#allocation6], 256
    $region41: #{tpu_custom_call.1} parent=1 // pred_fallthru
      _
    // Predicated region
    $region42: #{tpu_custom_call.1} parent=1 // pred_check
      _
    $region43: #{tpu_custom_call.1} parent=1 // pred_check_branch
      %105 = sbr.rel (0) target = $region45
    $region44: #{tpu_custom_call.1} parent=1 // pred_region
      %106 = dma.done [#allocation6], 256
    $region45: #{tpu_custom_call.1} parent=1 // pred_fallthru
      _
    // Predicated region
    $region46: #{tpu_custom_call.1} parent=1 // pred_check
      _
    $region47: #{tpu_custom_call.1} parent=1 // pred_check_branch
      %108 = sbr.rel (0) target = $region49
    $region48: #{tpu_custom_call.1} parent=1 // pred_region
      %109 = dma.done [#allocation9], 1536
    $region49: #{tpu_custom_call.1} parent=1 // pred_fallthru
      _
    // Predicated region
    $region50: #{tpu_custom_call.1} parent=1 // pred_check
      _
    $region51: #{tpu_custom_call.1} parent=1 // pred_check_branch
      %111 = sbr.rel (0) target = $region53
    $region52: #{tpu_custom_call.1} parent=1 // pred_region
      %112 = dma.done [#allocation9], 1536
    $region53: #{tpu_custom_call.1} parent=1 // pred_fallthru
      _
    // Predicated region
    $region54: #{tpu_custom_call.1} parent=1 // pred_check
      _
    $region55: #{tpu_custom_call.1} parent=1 // pred_check_branch
      %114 = sbr.rel (0) target = $region57
    $region56: #{tpu_custom_call.1} parent=1 // pred_region
      %115 = dma.done [#allocation12], 1536
    $region57: #{tpu_custom_call.1} parent=1 // pred_fallthru
      _
    %v116 = vld [vmem:[#allocation2] sm:$0xff]
    %v117 = vld [vmem:[#allocation2 + $0x8] sm:$0xff]
    %v118 = vld [vmem:[#allocation5] sm:$0xff]
    %v119 = vld [vmem:[#allocation5 + $0x8] sm:$0xff]
    %v120 = vld [vmem:[#allocation7] sm:$0xff]
    %v121 = vld [vmem:[#allocation7 + $0x8] sm:$0xff]
    %v122 = vld [vmem:[#allocation8] sm:$0xff]
    %v123 = vld [vmem:[#allocation8 + $0x8] sm:$0xff]
    %v124 = vld [vmem:[#allocation8 + $0x10] sm:$0xff]
    %v125 = vld [vmem:[#allocation8 + $0x18] sm:$0xff]
    %s126 = scalar_lea.vmem [#allocation8], 32
    %v127 = vld [vmem:[%s126] sm:$0xff]
    %v128 = vld [vmem:[%s126 + $0x8] sm:$0xff]
    %v129 = vld [vmem:[%s126 + $0x10] sm:$0xff]
    %v130 = vld [vmem:[%s126 + $0x18] sm:$0xff]
    %vm131 = vcmask 261120
    %v133 = vsel %vm131, %v118, 0
    %v136 = vsel %vm131, %v119, 0
    %138 = vmatprep.subr.mxu0 0.0
    %139 = vmatpush1.msra.mxu0 %v127
    %140 = vmatprep.subr.mxu0 0.0
    %141 = vmatpush1.msra.mxu0 %v128
    %142 = vmatprep.subr.mxu0 0.0
    %143 = vmatpush1.msra.mxu0 %v129
    %144 = vmatprep.subr.mxu0 0.0
    %145 = vmatpush1.msra.mxu0 %v130
    %146 = vmatprep.subr.mxu0 0.0
    %147 = vmatpush1.msra.mxu0 0.0
    %148 = vmatprep.subr.mxu0 0.0
    %149 = vmatpush1.msra.mxu0 0.0
    %150 = vmatprep.subr.mxu0 0.0
    %151 = vmatpush1.msra.mxu0 0.0
    %152 = vmatprep.subr.mxu0 0.0
    %153 = vmatpush1.msra.mxu0 0.0
    %154 = vmatprep.subr.mxu0 0.0
    %155 = vmatpush1.msra.mxu0 0.0
    %156 = vmatprep.subr.mxu0 0.0
    %157 = vmatpush1.msra.mxu0 0.0
    %158 = vmatprep.subr.mxu0 0.0
    %159 = vmatpush1.msra.mxu0 0.0
    %160 = vmatprep.subr.mxu0 0.0
    %161 = vmatpush1.msra.mxu0 0.0
    %162 = vmatprep.subr.mxu0 0.0
    %163 = vmatpush1.msra.mxu0 0.0
    %164 = vmatprep.subr.mxu0 0.0
    %165 = vmatpush1.msra.mxu0 0.0
    %166 = vmatprep.subr.mxu0 0.0
    %167 = vmatpush1.msra.mxu0 0.0
    %168 = vmatprep.subr.mxu0 0.0
    %169 = vmatpush1.msra.mxu0 0.0
    %170 = vmatprep.subr.mxu0 0.0
    %171 = vmatpush1.msra.mxu0 0.0
    %172 = vmatprep.subr.mxu0 0.0
    %173 = vmatpush1.msra.mxu0 0.0
    %174 = vmatprep.subr.mxu0 0.0
    %175 = vmatpush1.msra.mxu0 0.0
    %176 = vmatprep.subr.mxu0 0.0
    %177 = vmatpush1.msra.mxu0 0.0
    %178 = vmatprep.subr.mxu0 0.0
    %179 = vmatpush1.msra.mxu0 0.0
    %180 = vmatprep.subr.mxu0 0.0
    %181 = vmatpush1.msra.mxu0 0.0
    %182 = vmatprep.subr.mxu0 0.0
    %183 = vmatpush1.msra.mxu0 0.0
    %184 = vmatprep.subr.mxu0 0.0
    %185 = vmatpush1.msra.mxu0 0.0
    %186 = vmatprep.subr.mxu0 0.0
    %187 = vmatpush1.msra.mxu0 0.0
    %188 = vmatprep.subr.mxu0 0.0
    %189 = vmatpush1.msra.mxu0 0.0
    %190 = vmatprep.subr.mxu0 0.0
    %191 = vmatpush1.msra.mxu0 0.0
    %192 = vmatprep.subr.mxu0 0.0
    %193 = vmatpush1.msra.mxu0 0.0
    %194 = vmatprep.subr.mxu0 0.0
    %195 = vmatpush1.msra.mxu0 0.0
    %196 = vmatprep.subr.mxu0 0.0
    %197 = vmatpush1.msra.mxu0 0.0
    %198 = vmatprep.subr.mxu0 0.0
    %199 = vmatpush1.msra.mxu0 0.0
    %200 = vmatprep.subr.mxu0 0.0
    %201 = vmatpush1.msra.mxu0 0.0
    %202 = vmatprep.mubr.f32.mxu0 0.0
    %203 = vmatmul.mubr.f32.gmra.mrb[0].mxu0 %v133
    %v204 = vpop.f32.mrb[0].mxu0
    %v205 = vadd.f32 0.0, %v204
    %v206 = vpop.f32.mrb[0].mxu0
    %207 = vmatprep.mubr.f32.mxu0 0.0
    %208 = vmatmul.mubr.f32.gmra.mrb[0].mxu0 %v136
    %v209 = vpop.f32.mrb[0].mxu0
    %v210 = vadd.f32 0.0, %v209
    %v211 = vpop.f32.mrb[0].mxu0
    %212 = vdwg.mxu0
    %v214 = vsel %vm131, %v116, 0
    %v217 = vsel %vm131, %v117, 0
    %219 = vmatprep.subr.mxu0 0.0
    %220 = vmatpush1.msra.mxu0 %v122
    %221 = vmatprep.subr.mxu0 0.0
    %222 = vmatpush1.msra.mxu0 %v123
    %223 = vmatprep.subr.mxu0 0.0
    %224 = vmatpush1.msra.mxu0 %v124
    %225 = vmatprep.subr.mxu0 0.0
    %226 = vmatpush1.msra.mxu0 %v125
    %227 = vmatprep.subr.mxu0 0.0
    %228 = vmatpush1.msra.mxu0 0.0
    %229 = vmatprep.subr.mxu0 0.0
    %230 = vmatpush1.msra.mxu0 0.0
    %231 = vmatprep.subr.mxu0 0.0
    %232 = vmatpush1.msra.mxu0 0.0
    %233 = vmatprep.subr.mxu0 0.0
    %234 = vmatpush1.msra.mxu0 0.0
    %235 = vmatprep.subr.mxu0 0.0
    %236 = vmatpush1.msra.mxu0 0.0
    %237 = vmatprep.subr.mxu0 0.0
    %238 = vmatpush1.msra.mxu0 0.0
    %239 = vmatprep.subr.mxu0 0.0
    %240 = vmatpush1.msra.mxu0 0.0
    %241 = vmatprep.subr.mxu0 0.0
    %242 = vmatpush1.msra.mxu0 0.0
    %243 = vmatprep.subr.mxu0 0.0
    %244 = vmatpush1.msra.mxu0 0.0
    %245 = vmatprep.subr.mxu0 0.0
    %246 = vmatpush1.msra.mxu0 0.0
    %247 = vmatprep.subr.mxu0 0.0
    %248 = vmatpush1.msra.mxu0 0.0
    %249 = vmatprep.subr.mxu0 0.0
    %250 = vmatpush1.msra.mxu0 0.0
    %251 = vmatprep.subr.mxu0 0.0
    %252 = vmatpush1.msra.mxu0 0.0
    %253 = vmatprep.subr.mxu0 0.0
    %254 = vmatpush1.msra.mxu0 0.0
    %255 = vmatprep.subr.mxu0 0.0
    %256 = vmatpush1.msra.mxu0 0.0
    %257 = vmatprep.subr.mxu0 0.0
    %258 = vmatpush1.msra.mxu0 0.0
    %259 = vmatprep.subr.mxu0 0.0
    %260 = vmatpush1.msra.mxu0 0.0
    %261 = vmatprep.subr.mxu0 0.0
    %262 = vmatpush1.msra.mxu0 0.0
    %263 = vmatprep.subr.mxu0 0.0
    %264 = vmatpush1.msra.mxu0 0.0
    %265 = vmatprep.subr.mxu0 0.0
    %266 = vmatpush1.msra.mxu0 0.0
    %267 = vmatprep.subr.mxu0 0.0
    %268 = vmatpush1.msra.mxu0 0.0
    %269 = vmatprep.subr.mxu0 0.0
    %270 = vmatpush1.msra.mxu0 0.0
    %271 = vmatprep.subr.mxu0 0.0
    %272 = vmatpush1.msra.mxu0 0.0
    %273 = vmatprep.subr.mxu0 0.0
    %274 = vmatpush1.msra.mxu0 0.0
    %275 = vmatprep.subr.mxu0 0.0
    %276 = vmatpush1.msra.mxu0 0.0
    %277 = vmatprep.subr.mxu0 0.0
    %278 = vmatpush1.msra.mxu0 0.0
    %279 = vmatprep.subr.mxu0 0.0
    %280 = vmatpush1.msra.mxu0 0.0
    %281 = vmatprep.subr.mxu0 0.0
    %282 = vmatpush1.msra.mxu0 0.0
    %283 = vmatprep.mubr.f32.mxu0 0.0
    %284 = vmatmul.mubr.f32.gmra.mrb[0].mxu0 %v214
    %v285 = vpop.f32.mrb[0].mxu0
    %v286 = vadd.f32 %v205, %v285
    %v287 = vpop.f32.mrb[0].mxu0
    %288 = vmatprep.mubr.f32.mxu0 0.0
    %289 = vmatmul.mubr.f32.gmra.mrb[0].mxu0 %v217
    %v290 = vpop.f32.mrb[0].mxu0
    %v291 = vadd.f32 %v210, %v290
    %v292 = vpop.f32.mrb[0].mxu0
    %293 = vdwg.mxu0
    %s294 = scalar_lea.vmem [#allocation8], 64
    %v295 = vld [vmem:[%s294] sm:$0xff]
    %v296 = vld [vmem:[%s294 + $0x8] sm:$0xff]
    %v297 = vld [vmem:[%s294 + $0x10] sm:$0xff]
    %v298 = vld [vmem:[%s294 + $0x18] sm:$0xff]
    %v300 = vsel %vm131, %v120, 0
    %v303 = vsel %vm131, %v121, 0
    %305 = vmatprep.subr.mxu0 0.0
    %306 = vmatpush1.msra.mxu0 %v295
    %307 = vmatprep.subr.mxu0 0.0
    %308 = vmatpush1.msra.mxu0 %v296
    %309 = vmatprep.subr.mxu0 0.0
    %310 = vmatpush1.msra.mxu0 %v297
    %311 = vmatprep.subr.mxu0 0.0
    %312 = vmatpush1.msra.mxu0 %v298
    %313 = vmatprep.subr.mxu0 0.0
    %314 = vmatpush1.msra.mxu0 0.0
    %315 = vmatprep.subr.mxu0 0.0
    %316 = vmatpush1.msra.mxu0 0.0
    %317 = vmatprep.subr.mxu0 0.0
    %318 = vmatpush1.msra.mxu0 0.0
    %319 = vmatprep.subr.mxu0 0.0
    %320 = vmatpush1.msra.mxu0 0.0
    %321 = vmatprep.subr.mxu0 0.0
    %322 = vmatpush1.msra.mxu0 0.0
    %323 = vmatprep.subr.mxu0 0.0
    %324 = vmatpush1.msra.mxu0 0.0
    %325 = vmatprep.subr.mxu0 0.0
    %326 = vmatpush1.msra.mxu0 0.0
    %327 = vmatprep.subr.mxu0 0.0
    %328 = vmatpush1.msra.mxu0 0.0
    %329 = vmatprep.subr.mxu0 0.0
    %330 = vmatpush1.msra.mxu0 0.0
    %331 = vmatprep.subr.mxu0 0.0
    %332 = vmatpush1.msra.mxu0 0.0
    %333 = vmatprep.subr.mxu0 0.0
    %334 = vmatpush1.msra.mxu0 0.0
    %335 = vmatprep.subr.mxu0 0.0
    %336 = vmatpush1.msra.mxu0 0.0
    %337 = vmatprep.subr.mxu0 0.0
    %338 = vmatpush1.msra.mxu0 0.0
    %339 = vmatprep.subr.mxu0 0.0
    %340 = vmatpush1.msra.mxu0 0.0
    %341 = vmatprep.subr.mxu0 0.0
    %342 = vmatpush1.msra.mxu0 0.0
    %343 = vmatprep.subr.mxu0 0.0
    %344 = vmatpush1.msra.mxu0 0.0
    %345 = vmatprep.subr.mxu0 0.0
    %346 = vmatpush1.msra.mxu0 0.0
    %347 = vmatprep.subr.mxu0 0.0
    %348 = vmatpush1.msra.mxu0 0.0
    %349 = vmatprep.subr.mxu0 0.0
    %350 = vmatpush1.msra.mxu0 0.0
    %351 = vmatprep.subr.mxu0 0.0
    %352 = vmatpush1.msra.mxu0 0.0
    %353 = vmatprep.subr.mxu0 0.0
    %354 = vmatpush1.msra.mxu0 0.0
    %355 = vmatprep.subr.mxu0 0.0
    %356 = vmatpush1.msra.mxu0 0.0
    %357 = vmatprep.subr.mxu0 0.0
    %358 = vmatpush1.msra.mxu0 0.0
    %359 = vmatprep.subr.mxu0 0.0
    %360 = vmatpush1.msra.mxu0 0.0
    %361 = vmatprep.subr.mxu0 0.0
    %362 = vmatpush1.msra.mxu0 0.0
    %363 = vmatprep.subr.mxu0 0.0
    %364 = vmatpush1.msra.mxu0 0.0
    %365 = vmatprep.subr.mxu0 0.0
    %366 = vmatpush1.msra.mxu0 0.0
    %367 = vmatprep.subr.mxu0 0.0
    %368 = vmatpush1.msra.mxu0 0.0
    %369 = vmatprep.mubr.f32.mxu0 0.0
    %370 = vmatmul.mubr.f32.gmra.mrb[0].mxu0 %v300
    %v371 = vpop.f32.mrb[0].mxu0
    %v372 = vadd.f32 0.0, %v371
    %v373 = vpop.f32.mrb[0].mxu0
    %374 = vmatprep.mubr.f32.mxu0 0.0
    %375 = vmatmul.mubr.f32.gmra.mrb[0].mxu0 %v303
    %v376 = vpop.f32.mrb[0].mxu0
    %v377 = vadd.f32 0.0, %v376
    %v378 = vpop.f32.mrb[0].mxu0
    %379 = vdwg.mxu0
    %v380 = vadd.f32 %v286, %v372
    %v381 = vadd.f32 %v291, %v377
    %v382 = vld [vmem:[%s4] sm:$0x1]
    %v384 = vlaneseq
    %v385 = vshrl.u32 %v384, 7
    %v386 = vsub.s32 0, %v385
    %v387 = vrot.slane %v382, %v386
    %v389 = vadd.f32 %v380, %v387
    %v390 = vadd.f32 %v381, %v387
    %v391 = vld [vmem:[#allocation10] sm:$0xff]
    %v392 = vld [vmem:[#allocation10 + $0x8] sm:$0xff]
    %v393 = vld [vmem:[#allocation10 + $0x10] sm:$0xff]
    %v394 = vld [vmem:[#allocation10 + $0x18] sm:$0xff]
    %v395 = vld [vmem:[%s6] sm:$0x1]
    %v397 = vlaneseq
    %v398 = vshrl.u32 %v397, 7
    %v399 = vsub.s32 0, %v398
    %v400 = vrot.slane %v395, %v399
    %402 = vmatprep.subr.mxu0 0.0
    %403 = vmatpush1.msra.mxu0 %v391
    %404 = vmatprep.subr.mxu0 0.0
    %405 = vmatpush1.msra.mxu0 %v392
    %406 = vmatprep.subr.mxu0 0.0
    %407 = vmatpush1.msra.mxu0 %v393
    %408 = vmatprep.subr.mxu0 0.0
    %409 = vmatpush1.msra.mxu0 %v394
    %410 = vmatprep.subr.mxu0 0.0
    %411 = vmatpush1.msra.mxu0 0.0
    %412 = vmatprep.subr.mxu0 0.0
    %413 = vmatpush1.msra.mxu0 0.0
    %414 = vmatprep.subr.mxu0 0.0
    %415 = vmatpush1.msra.mxu0 0.0
    %416 = vmatprep.subr.mxu0 0.0
    %417 = vmatpush1.msra.mxu0 0.0
    %418 = vmatprep.subr.mxu0 0.0
    %419 = vmatpush1.msra.mxu0 0.0
    %420 = vmatprep.subr.mxu0 0.0
    %421 = vmatpush1.msra.mxu0 0.0
    %422 = vmatprep.subr.mxu0 0.0
    %423 = vmatpush1.msra.mxu0 0.0
    %424 = vmatprep.subr.mxu0 0.0
    %425 = vmatpush1.msra.mxu0 0.0
    %426 = vmatprep.subr.mxu0 0.0
    %427 = vmatpush1.msra.mxu0 0.0
    %428 = vmatprep.subr.mxu0 0.0
    %429 = vmatpush1.msra.mxu0 0.0
    %430 = vmatprep.subr.mxu0 0.0
    %431 = vmatpush1.msra.mxu0 0.0
    %432 = vmatprep.subr.mxu0 0.0
    %433 = vmatpush1.msra.mxu0 0.0
    %434 = vmatprep.subr.mxu0 0.0
    %435 = vmatpush1.msra.mxu0 0.0
    %436 = vmatprep.subr.mxu0 0.0
    %437 = vmatpush1.msra.mxu0 0.0
    %438 = vmatprep.subr.mxu0 0.0
    %439 = vmatpush1.msra.mxu0 0.0
    %440 = vmatprep.subr.mxu0 0.0
    %441 = vmatpush1.msra.mxu0 0.0
    %442 = vmatprep.subr.mxu0 0.0
    %443 = vmatpush1.msra.mxu0 0.0
    %444 = vmatprep.subr.mxu0 0.0
    %445 = vmatpush1.msra.mxu0 0.0
    %446 = vmatprep.subr.mxu0 0.0
    %447 = vmatpush1.msra.mxu0 0.0
    %448 = vmatprep.subr.mxu0 0.0
    %449 = vmatpush1.msra.mxu0 0.0
    %450 = vmatprep.subr.mxu0 0.0
    %451 = vmatpush1.msra.mxu0 0.0
    %452 = vmatprep.subr.mxu0 0.0
    %453 = vmatpush1.msra.mxu0 0.0
    %454 = vmatprep.subr.mxu0 0.0
    %455 = vmatpush1.msra.mxu0 0.0
    %456 = vmatprep.subr.mxu0 0.0
    %457 = vmatpush1.msra.mxu0 0.0
    %458 = vmatprep.subr.mxu0 0.0
    %459 = vmatpush1.msra.mxu0 0.0
    %460 = vmatprep.subr.mxu0 0.0
    %461 = vmatpush1.msra.mxu0 0.0
    %462 = vmatprep.subr.mxu0 0.0
    %463 = vmatpush1.msra.mxu0 0.0
    %464 = vmatprep.subr.mxu0 0.0
    %465 = vmatpush1.msra.mxu0 0.0
    %466 = vmatprep.mubr.f32.mxu0 0.0
    %467 = vmatmul.mubr.f32.gmra.mrb[0].mxu0 %v214
    %v468 = vpop.f32.mrb[0].mxu0
    %v469 = vadd.f32 %v400, %v468
    %v470 = vpop.f32.mrb[0].mxu0
    %471 = vmatprep.mubr.f32.mxu0 0.0
    %472 = vmatmul.mubr.f32.gmra.mrb[0].mxu0 %v217
    %v473 = vpop.f32.mrb[0].mxu0
    %v474 = vadd.f32 %v400, %v473
    %v475 = vpop.f32.mrb[0].mxu0
    %476 = vdwg.mxu0
    %v478 = vsel %vm131, %v389, 0
    %v481 = vsel %vm131, %v469, 0
    %483 = vmatprep.subr.mxu0 0.0
    %484 = vmatpush1.xpose.msra.mxu0 %v481
    %485 = vmatprep.subr.mxu0 0.0
    %486 = vmatpush1.xpose.msra.mxu0 0.0
    %487 = vmatprep.subr.mxu0 0.0
    %488 = vmatpush1.xpose.msra.mxu0 0.0
    %489 = vmatprep.subr.mxu0 0.0
    %490 = vmatpush1.xpose.msra.mxu0 0.0
    %491 = vmatprep.subr.mxu0 0.0
    %492 = vmatpush1.xpose.msra.mxu0 0.0
    %493 = vmatprep.subr.mxu0 0.0
    %494 = vmatpush1.xpose.msra.mxu0 0.0
    %495 = vmatprep.subr.mxu0 0.0
    %496 = vmatpush1.xpose.msra.mxu0 0.0
    %497 = vmatprep.subr.mxu0 0.0
    %498 = vmatpush1.xpose.msra.mxu0 0.0
    %499 = vmatprep.subr.mxu0 0.0
    %500 = vmatpush1.xpose.msra.mxu0 0.0
    %501 = vmatprep.subr.mxu0 0.0
    %502 = vmatpush1.xpose.msra.mxu0 0.0
    %503 = vmatprep.subr.mxu0 0.0
    %504 = vmatpush1.xpose.msra.mxu0 0.0
    %505 = vmatprep.subr.mxu0 0.0
    %506 = vmatpush1.xpose.msra.mxu0 0.0
    %507 = vmatprep.subr.mxu0 0.0
    %508 = vmatpush1.xpose.msra.mxu0 0.0
    %509 = vmatprep.subr.mxu0 0.0
    %510 = vmatpush1.xpose.msra.mxu0 0.0
    %511 = vmatprep.subr.mxu0 0.0
    %512 = vmatpush1.xpose.msra.mxu0 0.0
    %513 = vmatprep.subr.mxu0 0.0
    %514 = vmatpush1.xpose.msra.mxu0 0.0
    %515 = vmatprep.subr.mxu0 0.0
    %516 = vmatpush1.xpose.msra.mxu0 0.0
    %517 = vmatprep.subr.mxu0 0.0
    %518 = vmatpush1.xpose.msra.mxu0 0.0
    %519 = vmatprep.subr.mxu0 0.0
    %520 = vmatpush1.xpose.msra.mxu0 0.0
    %521 = vmatprep.subr.mxu0 0.0
    %522 = vmatpush1.xpose.msra.mxu0 0.0
    %523 = vmatprep.subr.mxu0 0.0
    %524 = vmatpush1.xpose.msra.mxu0 0.0
    %525 = vmatprep.subr.mxu0 0.0
    %526 = vmatpush1.xpose.msra.mxu0 0.0
    %527 = vmatprep.subr.mxu0 0.0
    %528 = vmatpush1.xpose.msra.mxu0 0.0
    %529 = vmatprep.subr.mxu0 0.0
    %530 = vmatpush1.xpose.msra.mxu0 0.0
    %531 = vmatprep.subr.mxu0 0.0
    %532 = vmatpush1.xpose.msra.mxu0 0.0
    %533 = vmatprep.subr.mxu0 0.0
    %534 = vmatpush1.xpose.msra.mxu0 0.0
    %535 = vmatprep.subr.mxu0 0.0
    %536 = vmatpush1.xpose.msra.mxu0 0.0
    %537 = vmatprep.subr.mxu0 0.0
    %538 = vmatpush1.xpose.msra.mxu0 0.0
    %539 = vmatprep.subr.mxu0 0.0
    %540 = vmatpush1.xpose.msra.mxu0 0.0
    %541 = vmatprep.subr.mxu0 0.0
    %542 = vmatpush1.xpose.msra.mxu0 0.0
    %543 = vmatprep.subr.mxu0 0.0
    %544 = vmatpush1.xpose.msra.mxu0 0.0
    %545 = vmatprep.subr.mxu0 0.0
    %546 = vmatpush1.xpose.msra.mxu0 0.0
    %547 = vmatprep.mubr.f32.mxu0 0.0
    %548 = vmatmul.mubr.f32.gmra.mrb[0].mxu0 %v478
    %v549 = vpop.f32.mrb[0].mxu0
    %v550 = vadd.f32 0.0, %v549
    %v551 = vpop.f32.mrb[0].mxu0
    %552 = vdwg.mxu0
    %v554 = vsel %vm131, %v390, 0
    %v557 = vsel %vm131, %v474, 0
    %559 = vmatprep.subr.mxu0 0.0
    %560 = vmatpush1.xpose.msra.mxu0 %v557
    %561 = vmatprep.subr.mxu0 0.0
    %562 = vmatpush1.xpose.msra.mxu0 0.0
    %563 = vmatprep.subr.mxu0 0.0
    %564 = vmatpush1.xpose.msra.mxu0 0.0
    %565 = vmatprep.subr.mxu0 0.0
    %566 = vmatpush1.xpose.msra.mxu0 0.0
    %567 = vmatprep.subr.mxu0 0.0
    %568 = vmatpush1.xpose.msra.mxu0 0.0
    %569 = vmatprep.subr.mxu0 0.0
    %570 = vmatpush1.xpose.msra.mxu0 0.0
    %571 = vmatprep.subr.mxu0 0.0
    %572 = vmatpush1.xpose.msra.mxu0 0.0
    %573 = vmatprep.subr.mxu0 0.0
    %574 = vmatpush1.xpose.msra.mxu0 0.0
    %575 = vmatprep.subr.mxu0 0.0
    %576 = vmatpush1.xpose.msra.mxu0 0.0
    %577 = vmatprep.subr.mxu0 0.0
    %578 = vmatpush1.xpose.msra.mxu0 0.0
    %579 = vmatprep.subr.mxu0 0.0
    %580 = vmatpush1.xpose.msra.mxu0 0.0
    %581 = vmatprep.subr.mxu0 0.0
    %582 = vmatpush1.xpose.msra.mxu0 0.0
    %583 = vmatprep.subr.mxu0 0.0
    %584 = vmatpush1.xpose.msra.mxu0 0.0
    %585 = vmatprep.subr.mxu0 0.0
    %586 = vmatpush1.xpose.msra.mxu0 0.0
    %587 = vmatprep.subr.mxu0 0.0
    %588 = vmatpush1.xpose.msra.mxu0 0.0
    %589 = vmatprep.subr.mxu0 0.0
    %590 = vmatpush1.xpose.msra.mxu0 0.0
    %591 = vmatprep.subr.mxu0 0.0
    %592 = vmatpush1.xpose.msra.mxu0 0.0
    %593 = vmatprep.subr.mxu0 0.0
    %594 = vmatpush1.xpose.msra.mxu0 0.0
    %595 = vmatprep.subr.mxu0 0.0
    %596 = vmatpush1.xpose.msra.mxu0 0.0
    %597 = vmatprep.subr.mxu0 0.0
    %598 = vmatpush1.xpose.msra.mxu0 0.0
    %599 = vmatprep.subr.mxu0 0.0
    %600 = vmatpush1.xpose.msra.mxu0 0.0
    %601 = vmatprep.subr.mxu0 0.0
    %602 = vmatpush1.xpose.msra.mxu0 0.0
    %603 = vmatprep.subr.mxu0 0.0
    %604 = vmatpush1.xpose.msra.mxu0 0.0
    %605 = vmatprep.subr.mxu0 0.0
    %606 = vmatpush1.xpose.msra.mxu0 0.0
    %607 = vmatprep.subr.mxu0 0.0
    %608 = vmatpush1.xpose.msra.mxu0 0.0
    %609 = vmatprep.subr.mxu0 0.0
    %610 = vmatpush1.xpose.msra.mxu0 0.0
    %611 = vmatprep.subr.mxu0 0.0
    %612 = vmatpush1.xpose.msra.mxu0 0.0
    %613 = vmatprep.subr.mxu0 0.0
    %614 = vmatpush1.xpose.msra.mxu0 0.0
    %615 = vmatprep.subr.mxu0 0.0
    %616 = vmatpush1.xpose.msra.mxu0 0.0
    %617 = vmatprep.subr.mxu0 0.0
    %618 = vmatpush1.xpose.msra.mxu0 0.0
    %619 = vmatprep.subr.mxu0 0.0
    %620 = vmatpush1.xpose.msra.mxu0 0.0
    %621 = vmatprep.subr.mxu0 0.0
    %622 = vmatpush1.xpose.msra.mxu0 0.0
    %623 = vmatprep.mubr.f32.mxu0 0.0
    %624 = vmatmul.mubr.f32.gmra.mrb[0].mxu0 %v554
    %v625 = vpop.f32.mrb[0].mxu0
    %v626 = vadd.f32 0.0, %v625
    %v627 = vpop.f32.mrb[0].mxu0
    %628 = vdwg.mxu0
    %v629 = vmul.f32 %v550, 0.17677669
    %v630 = vmul.f32 %v626, 0.17677669
    %vm631 = vcmask 64512
    %v632 = vsel %vm631, %v629, -inf
    %633 = vmax.xlane.f32.xlu0 %v632
    %v634 = vpop.xlane.xlu0 %633
    %v635 = vsel %vm631, %v630, -inf
    %636 = vmax.xlane.f32.xlu0 %v635
    %v637 = vpop.xlane.xlu0 %636
    %v638 = vsub.f32 %v629, %v634
    %v639 = vsub.f32 %v630, %v637
    %v640 = vmul.f32 %v638, 1.442695
    %v641 = vpow.pop %v640
    %v642 = vmul.f32 %v639, 1.442695
    %v643 = vpow.pop %v642
    %v644 = vsel %vm631, %v641, 0.0
    %645 = vadd.xlane.f32.xlu0 %v644
    %v646 = vpop.xlane.xlu0 %645
    %v647 = vsel %vm631, %v643, 0.0
    %648 = vadd.xlane.f32.xlu0 %v647
    %v649 = vpop.xlane.xlu0 %648
    %v650 = vrcp.pop %v646
    %v651 = vrcp.pop %v649
    %v652 = vmul.f32 %v646, %v650
    %v653 = vmul.f32 %v649, %v651
    %v654 = vsub.f32 2.0, %v652
    %v655 = vsub.f32 2.0, %v653
    %v656 = vmul.f32 %v650, %v654
    %v657 = vmul.f32 %v651, %v655
    %v658 = vmul.f32 %v641, %v656
    %v659 = vmul.f32 %v643, %v657
    %660 = vrot.lane.b32.xlu0 %v469, 96
    %v661 = vpop.permute.xlu0 %660
    %v664 = vsel %vm631, %v658, 0
    %666 = vmatprep.subr.mxu0 0.0
    %667 = vmatpush1.msra.mxu0 %v661
    %668 = vmatprep.subr.mxu0 0.0
    %669 = vmatpush1.msra.mxu0 0.0
    %670 = vmatprep.subr.mxu0 0.0
    %671 = vmatpush1.msra.mxu0 0.0
    %672 = vmatprep.subr.mxu0 0.0
    %673 = vmatpush1.msra.mxu0 0.0
    %674 = vmatprep.subr.mxu0 0.0
    %675 = vmatpush1.msra.mxu0 0.0
    %676 = vmatprep.subr.mxu0 0.0
    %677 = vmatpush1.msra.mxu0 0.0
    %678 = vmatprep.subr.mxu0 0.0
    %679 = vmatpush1.msra.mxu0 0.0
    %680 = vmatprep.subr.mxu0 0.0
    %681 = vmatpush1.msra.mxu0 0.0
    %682 = vmatprep.subr.mxu0 0.0
    %683 = vmatpush1.msra.mxu0 0.0
    %684 = vmatprep.subr.mxu0 0.0
    %685 = vmatpush1.msra.mxu0 0.0
    %686 = vmatprep.subr.mxu0 0.0
    %687 = vmatpush1.msra.mxu0 0.0
    %688 = vmatprep.subr.mxu0 0.0
    %689 = vmatpush1.msra.mxu0 0.0
    %690 = vmatprep.subr.mxu0 0.0
    %691 = vmatpush1.msra.mxu0 0.0
    %692 = vmatprep.subr.mxu0 0.0
    %693 = vmatpush1.msra.mxu0 0.0
    %694 = vmatprep.subr.mxu0 0.0
    %695 = vmatpush1.msra.mxu0 0.0
    %696 = vmatprep.subr.mxu0 0.0
    %697 = vmatpush1.msra.mxu0 0.0
    %698 = vmatprep.subr.mxu0 0.0
    %699 = vmatpush1.msra.mxu0 0.0
    %700 = vmatprep.subr.mxu0 0.0
    %701 = vmatpush1.msra.mxu0 0.0
    %702 = vmatprep.subr.mxu0 0.0
    %703 = vmatpush1.msra.mxu0 0.0
    %704 = vmatprep.subr.mxu0 0.0
    %705 = vmatpush1.msra.mxu0 0.0
    %706 = vmatprep.subr.mxu0 0.0
    %707 = vmatpush1.msra.mxu0 0.0
    %708 = vmatprep.subr.mxu0 0.0
    %709 = vmatpush1.msra.mxu0 0.0
    %710 = vmatprep.subr.mxu0 0.0
    %711 = vmatpush1.msra.mxu0 0.0
    %712 = vmatprep.subr.mxu0 0.0
    %713 = vmatpush1.msra.mxu0 0.0
    %714 = vmatprep.subr.mxu0 0.0
    %715 = vmatpush1.msra.mxu0 0.0
    %716 = vmatprep.subr.mxu0 0.0
    %717 = vmatpush1.msra.mxu0 0.0
    %718 = vmatprep.subr.mxu0 0.0
    %719 = vmatpush1.msra.mxu0 0.0
    %720 = vmatprep.subr.mxu0 0.0
    %721 = vmatpush1.msra.mxu0 0.0
    %722 = vmatprep.subr.mxu0 0.0
    %723 = vmatpush1.msra.mxu0 0.0
    %724 = vmatprep.subr.mxu0 0.0
    %725 = vmatpush1.msra.mxu0 0.0
    %726 = vmatprep.subr.mxu0 0.0
    %727 = vmatpush1.msra.mxu0 0.0
    %728 = vmatprep.subr.mxu0 0.0
    %729 = vmatpush1.msra.mxu0 0.0
    %730 = vmatprep.mubr.f32.mxu0 0.0
    %731 = vmatmul.mubr.f32.gmra.mrb[0].mxu0 %v664
    %v732 = vpop.f32.mrb[0].mxu0
    %v733 = vadd.f32 0.0, %v732
    %v734 = vpop.f32.mrb[0].mxu0
    %735 = vdwg.mxu0
    %736 = vrot.lane.b32.xlu0 %v474, 96
    %v737 = vpop.permute.xlu0 %736
    %v740 = vsel %vm631, %v659, 0
    %742 = vmatprep.subr.mxu0 0.0
    %743 = vmatpush1.msra.mxu0 %v737
    %744 = vmatprep.subr.mxu0 0.0
    %745 = vmatpush1.msra.mxu0 0.0
    %746 = vmatprep.subr.mxu0 0.0
    %747 = vmatpush1.msra.mxu0 0.0
    %748 = vmatprep.subr.mxu0 0.0
    %749 = vmatpush1.msra.mxu0 0.0
    %750 = vmatprep.subr.mxu0 0.0
    %751 = vmatpush1.msra.mxu0 0.0
    %752 = vmatprep.subr.mxu0 0.0
    %753 = vmatpush1.msra.mxu0 0.0
    %754 = vmatprep.subr.mxu0 0.0
    %755 = vmatpush1.msra.mxu0 0.0
    %756 = vmatprep.subr.mxu0 0.0
    %757 = vmatpush1.msra.mxu0 0.0
    %758 = vmatprep.subr.mxu0 0.0
    %759 = vmatpush1.msra.mxu0 0.0
    %760 = vmatprep.subr.mxu0 0.0
    %761 = vmatpush1.msra.mxu0 0.0
    %762 = vmatprep.subr.mxu0 0.0
    %763 = vmatpush1.msra.mxu0 0.0
    %764 = vmatprep.subr.mxu0 0.0
    %765 = vmatpush1.msra.mxu0 0.0
    %766 = vmatprep.subr.mxu0 0.0
    %767 = vmatpush1.msra.mxu0 0.0
    %768 = vmatprep.subr.mxu0 0.0
    %769 = vmatpush1.msra.mxu0 0.0
    %770 = vmatprep.subr.mxu0 0.0
    %771 = vmatpush1.msra.mxu0 0.0
    %772 = vmatprep.subr.mxu0 0.0
    %773 = vmatpush1.msra.mxu0 0.0
    %774 = vmatprep.subr.mxu0 0.0
    %775 = vmatpush1.msra.mxu0 0.0
    %776 = vmatprep.subr.mxu0 0.0
    %777 = vmatpush1.msra.mxu0 0.0
    %778 = vmatprep.subr.mxu0 0.0
    %779 = vmatpush1.msra.mxu0 0.0
    %780 = vmatprep.subr.mxu0 0.0
    %781 = vmatpush1.msra.mxu0 0.0
    %782 = vmatprep.subr.mxu0 0.0
    %783 = vmatpush1.msra.mxu0 0.0
    %784 = vmatprep.subr.mxu0 0.0
    %785 = vmatpush1.msra.mxu0 0.0
    %786 = vmatprep.subr.mxu0 0.0
    %787 = vmatpush1.msra.mxu0 0.0
    %788 = vmatprep.subr.mxu0 0.0
    %789 = vmatpush1.msra.mxu0 0.0
    %790 = vmatprep.subr.mxu0 0.0
    %791 = vmatpush1.msra.mxu0 0.0
    %792 = vmatprep.subr.mxu0 0.0
    %793 = vmatpush1.msra.mxu0 0.0
    %794 = vmatprep.subr.mxu0 0.0
    %795 = vmatpush1.msra.mxu0 0.0
    %796 = vmatprep.subr.mxu0 0.0
    %797 = vmatpush1.msra.mxu0 0.0
    %798 = vmatprep.subr.mxu0 0.0
    %799 = vmatpush1.msra.mxu0 0.0
    %800 = vmatprep.subr.mxu0 0.0
    %801 = vmatpush1.msra.mxu0 0.0
    %802 = vmatprep.subr.mxu0 0.0
    %803 = vmatpush1.msra.mxu0 0.0
    %804 = vmatprep.subr.mxu0 0.0
    %805 = vmatpush1.msra.mxu0 0.0
    %806 = vmatprep.mubr.f32.mxu0 0.0
    %807 = vmatmul.mubr.f32.gmra.mrb[0].mxu0 %v740
    %v808 = vpop.f32.mrb[0].mxu0
    %v809 = vadd.f32 0.0, %v808
    %v810 = vpop.f32.mrb[0].mxu0
    %811 = vdwg.mxu0
    %v812 = vld [vmem:[#allocation11] sm:$0xff]
    %v813 = vld [vmem:[#allocation11 + $0x8] sm:$0xff]
    %v814 = vld [vmem:[#allocation11 + $0x10] sm:$0xff]
    %v815 = vld [vmem:[#allocation11 + $0x18] sm:$0xff]
    %v817 = vsel %vm131, %v733, 0
    %v820 = vsel %vm131, %v809, 0
    %822 = vmatprep.subr.mxu0 0.0
    %823 = vmatpush1.msra.mxu0 %v812
    %824 = vmatprep.subr.mxu0 0.0
    %825 = vmatpush1.msra.mxu0 %v813
    %826 = vmatprep.subr.mxu0 0.0
    %827 = vmatpush1.msra.mxu0 %v814
    %828 = vmatprep.subr.mxu0 0.0
    %829 = vmatpush1.msra.mxu0 %v815
    %830 = vmatprep.subr.mxu0 0.0
    %831 = vmatpush1.msra.mxu0 0.0
    %832 = vmatprep.subr.mxu0 0.0
    %833 = vmatpush1.msra.mxu0 0.0
    %834 = vmatprep.subr.mxu0 0.0
    %835 = vmatpush1.msra.mxu0 0.0
    %836 = vmatprep.subr.mxu0 0.0
    %837 = vmatpush1.msra.mxu0 0.0
    %838 = vmatprep.subr.mxu0 0.0
    %839 = vmatpush1.msra.mxu0 0.0
    %840 = vmatprep.subr.mxu0 0.0
    %841 = vmatpush1.msra.mxu0 0.0
    %842 = vmatprep.subr.mxu0 0.0
    %843 = vmatpush1.msra.mxu0 0.0
    %844 = vmatprep.subr.mxu0 0.0
    %845 = vmatpush1.msra.mxu0 0.0
    %846 = vmatprep.subr.mxu0 0.0
    %847 = vmatpush1.msra.mxu0 0.0
    %848 = vmatprep.subr.mxu0 0.0
    %849 = vmatpush1.msra.mxu0 0.0
    %850 = vmatprep.subr.mxu0 0.0
    %851 = vmatpush1.msra.mxu0 0.0
    %852 = vmatprep.subr.mxu0 0.0
    %853 = vmatpush1.msra.mxu0 0.0
    %854 = vmatprep.subr.mxu0 0.0
    %855 = vmatpush1.msra.mxu0 0.0
    %856 = vmatprep.subr.mxu0 0.0
    %857 = vmatpush1.msra.mxu0 0.0
    %858 = vmatprep.subr.mxu0 0.0
    %859 = vmatpush1.msra.mxu0 0.0
    %860 = vmatprep.subr.mxu0 0.0
    %861 = vmatpush1.msra.mxu0 0.0
    %862 = vmatprep.subr.mxu0 0.0
    %863 = vmatpush1.msra.mxu0 0.0
    %864 = vmatprep.subr.mxu0 0.0
    %865 = vmatpush1.msra.mxu0 0.0
    %866 = vmatprep.subr.mxu0 0.0
    %867 = vmatpush1.msra.mxu0 0.0
    %868 = vmatprep.subr.mxu0 0.0
    %869 = vmatpush1.msra.mxu0 0.0
    %870 = vmatprep.subr.mxu0 0.0
    %871 = vmatpush1.msra.mxu0 0.0
    %872 = vmatprep.subr.mxu0 0.0
    %873 = vmatpush1.msra.mxu0 0.0
    %874 = vmatprep.subr.mxu0 0.0
    %875 = vmatpush1.msra.mxu0 0.0
    %876 = vmatprep.subr.mxu0 0.0
    %877 = vmatpush1.msra.mxu0 0.0
    %878 = vmatprep.subr.mxu0 0.0
    %879 = vmatpush1.msra.mxu0 0.0
    %880 = vmatprep.subr.mxu0 0.0
    %881 = vmatpush1.msra.mxu0 0.0
    %882 = vmatprep.subr.mxu0 0.0
    %883 = vmatpush1.msra.mxu0 0.0
    %884 = vmatprep.subr.mxu0 0.0
    %885 = vmatpush1.msra.mxu0 0.0
    %886 = vmatprep.mubr.f32.mxu0 0.0
    %887 = vmatmul.mubr.f32.gmra.mrb[0].mxu0 %v817
    %v888 = vpop.f32.mrb[0].mxu0
    %v889 = vadd.f32 0.0, %v888
    %v890 = vpop.f32.mrb[0].mxu0
    %891 = vmatprep.mubr.f32.mxu0 0.0
    %892 = vmatmul.mubr.f32.gmra.mrb[0].mxu0 %v820
    %v893 = vpop.f32.mrb[0].mxu0
    %v894 = vadd.f32 0.0, %v893
    %v895 = vpop.f32.mrb[0].mxu0
    %896 = vdwg.mxu0
    %899 = vrot.lane.b32.xlu0 %v889, 64
    %v900 = vpop.permute.xlu0 %899
    %901 = vrot.lane.b32.xlu0 %v894, 64
    %v902 = vpop.permute.xlu0 %901
    %v905 = vadd.f32 %v469, %v900
    %v906 = vadd.f32 %v474, %v902
    %909 = vrot.lane.b32.xlu0 %v905, 64
    %v910 = vpop.permute.xlu0 %909
    %911 = vrot.lane.b32.xlu0 %v906, 64
    %v912 = vpop.permute.xlu0 %911
    %915 = vst.msk [vmem:[#allocation13] sm:$0xff] %vm131, %v910
    %916 = vst.msk [vmem:[#allocation13 + $0x8] sm:$0xff] %vm131, %v912
    %s917 = scalar_lea.vmem [#allocation10], 32
    %v918 = vld [vmem:[%s917] sm:$0xff]
    %v919 = vld [vmem:[%s917 + $0x8] sm:$0xff]
    %v920 = vld [vmem:[%s917 + $0x10] sm:$0xff]
    %v921 = vld [vmem:[%s917 + $0x18] sm:$0xff]
    %s922 = scalar_lea.vmem %s6, 1
    %v923 = vld [vmem:[%s922] sm:$0x1]
    %v925 = vlaneseq
    %v926 = vshrl.u32 %v925, 7
    %v927 = vsub.s32 0, %v926
    %v928 = vrot.slane %v923, %v927
    %930 = vmatprep.subr.mxu0 0.0
    %931 = vmatpush1.msra.mxu0 %v918
    %932 = vmatprep.subr.mxu0 0.0
    %933 = vmatpush1.msra.mxu0 %v919
    %934 = vmatprep.subr.mxu0 0.0
    %935 = vmatpush1.msra.mxu0 %v920
    %936 = vmatprep.subr.mxu0 0.0
    %937 = vmatpush1.msra.mxu0 %v921
    %938 = vmatprep.subr.mxu0 0.0
    %939 = vmatpush1.msra.mxu0 0.0
    %940 = vmatprep.subr.mxu0 0.0
    %941 = vmatpush1.msra.mxu0 0.0
    %942 = vmatprep.subr.mxu0 0.0
    %943 = vmatpush1.msra.mxu0 0.0
    %944 = vmatprep.subr.mxu0 0.0
    %945 = vmatpush1.msra.mxu0 0.0
    %946 = vmatprep.subr.mxu0 0.0
    %947 = vmatpush1.msra.mxu0 0.0
    %948 = vmatprep.subr.mxu0 0.0
    %949 = vmatpush1.msra.mxu0 0.0
    %950 = vmatprep.subr.mxu0 0.0
    %951 = vmatpush1.msra.mxu0 0.0
    %952 = vmatprep.subr.mxu0 0.0
    %953 = vmatpush1.msra.mxu0 0.0
    %954 = vmatprep.subr.mxu0 0.0
    %955 = vmatpush1.msra.mxu0 0.0
    %956 = vmatprep.subr.mxu0 0.0
    %957 = vmatpush1.msra.mxu0 0.0
    %958 = vmatprep.subr.mxu0 0.0
    %959 = vmatpush1.msra.mxu0 0.0
    %960 = vmatprep.subr.mxu0 0.0
    %961 = vmatpush1.msra.mxu0 0.0
    %962 = vmatprep.subr.mxu0 0.0
    %963 = vmatpush1.msra.mxu0 0.0
    %964 = vmatprep.subr.mxu0 0.0
    %965 = vmatpush1.msra.mxu0 0.0
    %966 = vmatprep.subr.mxu0 0.0
    %967 = vmatpush1.msra.mxu0 0.0
    %968 = vmatprep.subr.mxu0 0.0
    %969 = vmatpush1.msra.mxu0 0.0
    %970 = vmatprep.subr.mxu0 0.0
    %971 = vmatpush1.msra.mxu0 0.0
    %972 = vmatprep.subr.mxu0 0.0
    %973 = vmatpush1.msra.mxu0 0.0
    %974 = vmatprep.subr.mxu0 0.0
    %975 = vmatpush1.msra.mxu0 0.0
    %976 = vmatprep.subr.mxu0 0.0
    %977 = vmatpush1.msra.mxu0 0.0
    %978 = vmatprep.subr.mxu0 0.0
    %979 = vmatpush1.msra.mxu0 0.0
    %980 = vmatprep.subr.mxu0 0.0
    %981 = vmatpush1.msra.mxu0 0.0
    %982 = vmatprep.subr.mxu0 0.0
    %983 = vmatpush1.msra.mxu0 0.0
    %984 = vmatprep.subr.mxu0 0.0
    %985 = vmatpush1.msra.mxu0 0.0
    %986 = vmatprep.subr.mxu0 0.0
    %987 = vmatpush1.msra.mxu0 0.0
    %988 = vmatprep.subr.mxu0 0.0
    %989 = vmatpush1.msra.mxu0 0.0
    %990 = vmatprep.subr.mxu0 0.0
    %991 = vmatpush1.msra.mxu0 0.0
    %992 = vmatprep.subr.mxu0 0.0
    %993 = vmatpush1.msra.mxu0 0.0
    %994 = vmatprep.mubr.f32.mxu0 0.0
    %995 = vmatmul.mubr.f32.gmra.mrb[0].mxu0 %v133
    %v996 = vpop.f32.mrb[0].mxu0
    %v997 = vadd.f32 %v928, %v996
    %v998 = vpop.f32.mrb[0].mxu0
    %999 = vmatprep.mubr.f32.mxu0 0.0
    %1000 = vmatmul.mubr.f32.gmra.mrb[0].mxu0 %v136
    %v1001 = vpop.f32.mrb[0].mxu0
    %v1002 = vadd.f32 %v928, %v1001
    %v1003 = vpop.f32.mrb[0].mxu0
    %1004 = vdwg.mxu0
    %v1006 = vsel %vm131, %v997, 0
    %1008 = vmatprep.subr.mxu0 0.0
    %1009 = vmatpush1.xpose.msra.mxu0 %v1006
    %1010 = vmatprep.subr.mxu0 0.0
    %1011 = vmatpush1.xpose.msra.mxu0 0.0
    %1012 = vmatprep.subr.mxu0 0.0
    %1013 = vmatpush1.xpose.msra.mxu0 0.0
    %1014 = vmatprep.subr.mxu0 0.0
    %1015 = vmatpush1.xpose.msra.mxu0 0.0
    %1016 = vmatprep.subr.mxu0 0.0
    %1017 = vmatpush1.xpose.msra.mxu0 0.0
    %1018 = vmatprep.subr.mxu0 0.0
    %1019 = vmatpush1.xpose.msra.mxu0 0.0
    %1020 = vmatprep.subr.mxu0 0.0
    %1021 = vmatpush1.xpose.msra.mxu0 0.0
    %1022 = vmatprep.subr.mxu0 0.0
    %1023 = vmatpush1.xpose.msra.mxu0 0.0
    %1024 = vmatprep.subr.mxu0 0.0
    %1025 = vmatpush1.xpose.msra.mxu0 0.0
    %1026 = vmatprep.subr.mxu0 0.0
    %1027 = vmatpush1.xpose.msra.mxu0 0.0
    %1028 = vmatprep.subr.mxu0 0.0
    %1029 = vmatpush1.xpose.msra.mxu0 0.0
    %1030 = vmatprep.subr.mxu0 0.0
    %1031 = vmatpush1.xpose.msra.mxu0 0.0
    %1032 = vmatprep.subr.mxu0 0.0
    %1033 = vmatpush1.xpose.msra.mxu0 0.0
    %1034 = vmatprep.subr.mxu0 0.0
    %1035 = vmatpush1.xpose.msra.mxu0 0.0
    %1036 = vmatprep.subr.mxu0 0.0
    %1037 = vmatpush1.xpose.msra.mxu0 0.0
    %1038 = vmatprep.subr.mxu0 0.0
    %1039 = vmatpush1.xpose.msra.mxu0 0.0
    %1040 = vmatprep.subr.mxu0 0.0
    %1041 = vmatpush1.xpose.msra.mxu0 0.0
    %1042 = vmatprep.subr.mxu0 0.0
    %1043 = vmatpush1.xpose.msra.mxu0 0.0
    %1044 = vmatprep.subr.mxu0 0.0
    %1045 = vmatpush1.xpose.msra.mxu0 0.0
    %1046 = vmatprep.subr.mxu0 0.0
    %1047 = vmatpush1.xpose.msra.mxu0 0.0
    %1048 = vmatprep.subr.mxu0 0.0
    %1049 = vmatpush1.xpose.msra.mxu0 0.0
    %1050 = vmatprep.subr.mxu0 0.0
    %1051 = vmatpush1.xpose.msra.mxu0 0.0
    %1052 = vmatprep.subr.mxu0 0.0
    %1053 = vmatpush1.xpose.msra.mxu0 0.0
    %1054 = vmatprep.subr.mxu0 0.0
    %1055 = vmatpush1.xpose.msra.mxu0 0.0
    %1056 = vmatprep.subr.mxu0 0.0
    %1057 = vmatpush1.xpose.msra.mxu0 0.0
    %1058 = vmatprep.subr.mxu0 0.0
    %1059 = vmatpush1.xpose.msra.mxu0 0.0
    %1060 = vmatprep.subr.mxu0 0.0
    %1061 = vmatpush1.xpose.msra.mxu0 0.0
    %1062 = vmatprep.subr.mxu0 0.0
    %1063 = vmatpush1.xpose.msra.mxu0 0.0
    %1064 = vmatprep.subr.mxu0 0.0
    %1065 = vmatpush1.xpose.msra.mxu0 0.0
    %1066 = vmatprep.subr.mxu0 0.0
    %1067 = vmatpush1.xpose.msra.mxu0 0.0
    %1068 = vmatprep.subr.mxu0 0.0
    %1069 = vmatpush1.xpose.msra.mxu0 0.0
    %1070 = vmatprep.subr.mxu0 0.0
    %1071 = vmatpush1.xpose.msra.mxu0 0.0
    %1072 = vmatprep.mubr.f32.mxu0 0.0
    %1073 = vmatmul.mubr.f32.gmra.mrb[0].mxu0 %v478
    %v1074 = vpop.f32.mrb[0].mxu0
    %v1075 = vadd.f32 0.0, %v1074
    %v1076 = vpop.f32.mrb[0].mxu0
    %1077 = vdwg.mxu0
    %v1079 = vsel %vm131, %v1002, 0
    %1081 = vmatprep.subr.mxu0 0.0
    %1082 = vmatpush1.xpose.msra.mxu0 %v1079
    %1083 = vmatprep.subr.mxu0 0.0
    %1084 = vmatpush1.xpose.msra.mxu0 0.0
    %1085 = vmatprep.subr.mxu0 0.0
    %1086 = vmatpush1.xpose.msra.mxu0 0.0
    %1087 = vmatprep.subr.mxu0 0.0
    %1088 = vmatpush1.xpose.msra.mxu0 0.0
    %1089 = vmatprep.subr.mxu0 0.0
    %1090 = vmatpush1.xpose.msra.mxu0 0.0
    %1091 = vmatprep.subr.mxu0 0.0
    %1092 = vmatpush1.xpose.msra.mxu0 0.0
    %1093 = vmatprep.subr.mxu0 0.0
    %1094 = vmatpush1.xpose.msra.mxu0 0.0
    %1095 = vmatprep.subr.mxu0 0.0
    %1096 = vmatpush1.xpose.msra.mxu0 0.0
    %1097 = vmatprep.subr.mxu0 0.0
    %1098 = vmatpush1.xpose.msra.mxu0 0.0
    %1099 = vmatprep.subr.mxu0 0.0
    %1100 = vmatpush1.xpose.msra.mxu0 0.0
    %1101 = vmatprep.subr.mxu0 0.0
    %1102 = vmatpush1.xpose.msra.mxu0 0.0
    %1103 = vmatprep.subr.mxu0 0.0
    %1104 = vmatpush1.xpose.msra.mxu0 0.0
    %1105 = vmatprep.subr.mxu0 0.0
    %1106 = vmatpush1.xpose.msra.mxu0 0.0
    %1107 = vmatprep.subr.mxu0 0.0
    %1108 = vmatpush1.xpose.msra.mxu0 0.0
    %1109 = vmatprep.subr.mxu0 0.0
    %1110 = vmatpush1.xpose.msra.mxu0 0.0
    %1111 = vmatprep.subr.mxu0 0.0
    %1112 = vmatpush1.xpose.msra.mxu0 0.0
    %1113 = vmatprep.subr.mxu0 0.0
    %1114 = vmatpush1.xpose.msra.mxu0 0.0
    %1115 = vmatprep.subr.mxu0 0.0
    %1116 = vmatpush1.xpose.msra.mxu0 0.0
    %1117 = vmatprep.subr.mxu0 0.0
    %1118 = vmatpush1.xpose.msra.mxu0 0.0
    %1119 = vmatprep.subr.mxu0 0.0
    %1120 = vmatpush1.xpose.msra.mxu0 0.0
    %1121 = vmatprep.subr.mxu0 0.0
    %1122 = vmatpush1.xpose.msra.mxu0 0.0
    %1123 = vmatprep.subr.mxu0 0.0
    %1124 = vmatpush1.xpose.msra.mxu0 0.0
    %1125 = vmatprep.subr.mxu0 0.0
    %1126 = vmatpush1.xpose.msra.mxu0 0.0
    %1127 = vmatprep.subr.mxu0 0.0
    %1128 = vmatpush1.xpose.msra.mxu0 0.0
    %1129 = vmatprep.subr.mxu0 0.0
    %1130 = vmatpush1.xpose.msra.mxu0 0.0
    %1131 = vmatprep.subr.mxu0 0.0
    %1132 = vmatpush1.xpose.msra.mxu0 0.0
    %1133 = vmatprep.subr.mxu0 0.0
    %1134 = vmatpush1.xpose.msra.mxu0 0.0
    %1135 = vmatprep.subr.mxu0 0.0
    %1136 = vmatpush1.xpose.msra.mxu0 0.0
    %1137 = vmatprep.subr.mxu0 0.0
    %1138 = vmatpush1.xpose.msra.mxu0 0.0
    %1139 = vmatprep.subr.mxu0 0.0
    %1140 = vmatpush1.xpose.msra.mxu0 0.0
    %1141 = vmatprep.subr.mxu0 0.0
    %1142 = vmatpush1.xpose.msra.mxu0 0.0
    %1143 = vmatprep.subr.mxu0 0.0
    %1144 = vmatpush1.xpose.msra.mxu0 0.0
    %1145 = vmatprep.mubr.f32.mxu0 0.0
    %1146 = vmatmul.mubr.f32.gmra.mrb[0].mxu0 %v554
    %v1147 = vpop.f32.mrb[0].mxu0
    %v1148 = vadd.f32 0.0, %v1147
    %v1149 = vpop.f32.mrb[0].mxu0
    %1150 = vdwg.mxu0
    %v1151 = vmul.f32 %v1075, 0.17677669
    %v1152 = vmul.f32 %v1148, 0.17677669
    %v1153 = vsel %vm631, %v1151, -inf
    %1154 = vmax.xlane.f32.xlu0 %v1153
    %v1155 = vpop.xlane.xlu0 %1154
    %v1156 = vsel %vm631, %v1152, -inf
    %1157 = vmax.xlane.f32.xlu0 %v1156
    %v1158 = vpop.xlane.xlu0 %1157
    %v1159 = vsub.f32 %v1151, %v1155
    %v1160 = vsub.f32 %v1152, %v1158
    %v1161 = vmul.f32 %v1159, 1.442695
    %v1162 = vpow.pop %v1161
    %v1163 = vmul.f32 %v1160, 1.442695
    %v1164 = vpow.pop %v1163
    %v1165 = vsel %vm631, %v1162, 0.0
    %1166 = vadd.xlane.f32.xlu0 %v1165
    %v1167 = vpop.xlane.xlu0 %1166
    %v1168 = vsel %vm631, %v1164, 0.0
    %1169 = vadd.xlane.f32.xlu0 %v1168
    %v1170 = vpop.xlane.xlu0 %1169
    %v1171 = vrcp.pop %v1167
    %v1172 = vrcp.pop %v1170
    %v1173 = vmul.f32 %v1167, %v1171
    %v1174 = vmul.f32 %v1170, %v1172
    %v1175 = vsub.f32 2.0, %v1173
    %v1176 = vsub.f32 2.0, %v1174
    %v1177 = vmul.f32 %v1171, %v1175
    %v1178 = vmul.f32 %v1172, %v1176
    %v1179 = vmul.f32 %v1162, %v1177
    %v1180 = vmul.f32 %v1164, %v1178
    %1181 = vrot.lane.b32.xlu0 %v997, 96
    %v1182 = vpop.permute.xlu0 %1181
    %v1185 = vsel %vm631, %v1179, 0
    %1187 = vmatprep.subr.mxu0 0.0
    %1188 = vmatpush1.msra.mxu0 %v1182
    %1189 = vmatprep.subr.mxu0 0.0
    %1190 = vmatpush1.msra.mxu0 0.0
    %1191 = vmatprep.subr.mxu0 0.0
    %1192 = vmatpush1.msra.mxu0 0.0
    %1193 = vmatprep.subr.mxu0 0.0
    %1194 = vmatpush1.msra.mxu0 0.0
    %1195 = vmatprep.subr.mxu0 0.0
    %1196 = vmatpush1.msra.mxu0 0.0
    %1197 = vmatprep.subr.mxu0 0.0
    %1198 = vmatpush1.msra.mxu0 0.0
    %1199 = vmatprep.subr.mxu0 0.0
    %1200 = vmatpush1.msra.mxu0 0.0
    %1201 = vmatprep.subr.mxu0 0.0
    %1202 = vmatpush1.msra.mxu0 0.0
    %1203 = vmatprep.subr.mxu0 0.0
    %1204 = vmatpush1.msra.mxu0 0.0
    %1205 = vmatprep.subr.mxu0 0.0
    %1206 = vmatpush1.msra.mxu0 0.0
    %1207 = vmatprep.subr.mxu0 0.0
    %1208 = vmatpush1.msra.mxu0 0.0
    %1209 = vmatprep.subr.mxu0 0.0
    %1210 = vmatpush1.msra.mxu0 0.0
    %1211 = vmatprep.subr.mxu0 0.0
    %1212 = vmatpush1.msra.mxu0 0.0
    %1213 = vmatprep.subr.mxu0 0.0
    %1214 = vmatpush1.msra.mxu0 0.0
    %1215 = vmatprep.subr.mxu0 0.0
    %1216 = vmatpush1.msra.mxu0 0.0
    %1217 = vmatprep.subr.mxu0 0.0
    %1218 = vmatpush1.msra.mxu0 0.0
    %1219 = vmatprep.subr.mxu0 0.0
    %1220 = vmatpush1.msra.mxu0 0.0
    %1221 = vmatprep.subr.mxu0 0.0
    %1222 = vmatpush1.msra.mxu0 0.0
    %1223 = vmatprep.subr.mxu0 0.0
    %1224 = vmatpush1.msra.mxu0 0.0
    %1225 = vmatprep.subr.mxu0 0.0
    %1226 = vmatpush1.msra.mxu0 0.0
    %1227 = vmatprep.subr.mxu0 0.0
    %1228 = vmatpush1.msra.mxu0 0.0
    %1229 = vmatprep.subr.mxu0 0.0
    %1230 = vmatpush1.msra.mxu0 0.0
    %1231 = vmatprep.subr.mxu0 0.0
    %1232 = vmatpush1.msra.mxu0 0.0
    %1233 = vmatprep.subr.mxu0 0.0
    %1234 = vmatpush1.msra.mxu0 0.0
    %1235 = vmatprep.subr.mxu0 0.0
    %1236 = vmatpush1.msra.mxu0 0.0
    %1237 = vmatprep.subr.mxu0 0.0
    %1238 = vmatpush1.msra.mxu0 0.0
    %1239 = vmatprep.subr.mxu0 0.0
    %1240 = vmatpush1.msra.mxu0 0.0
    %1241 = vmatprep.subr.mxu0 0.0
    %1242 = vmatpush1.msra.mxu0 0.0
    %1243 = vmatprep.subr.mxu0 0.0
    %1244 = vmatpush1.msra.mxu0 0.0
    %1245 = vmatprep.subr.mxu0 0.0
    %1246 = vmatpush1.msra.mxu0 0.0
    %1247 = vmatprep.subr.mxu0 0.0
    %1248 = vmatpush1.msra.mxu0 0.0
    %1249 = vmatprep.subr.mxu0 0.0
    %1250 = vmatpush1.msra.mxu0 0.0
    %1251 = vmatprep.mubr.f32.mxu0 0.0
    %1252 = vmatmul.mubr.f32.gmra.mrb[0].mxu0 %v1185
    %v1253 = vpop.f32.mrb[0].mxu0
    %v1254 = vadd.f32 0.0, %v1253
    %v1255 = vpop.f32.mrb[0].mxu0
    %1256 = vdwg.mxu0
    %1257 = vrot.lane.b32.xlu0 %v1002, 96
    %v1258 = vpop.permute.xlu0 %1257
    %v1261 = vsel %vm631, %v1180, 0
    %1263 = vmatprep.subr.mxu0 0.0
    %1264 = vmatpush1.msra.mxu0 %v1258
    %1265 = vmatprep.subr.mxu0 0.0
    %1266 = vmatpush1.msra.mxu0 0.0
    %1267 = vmatprep.subr.mxu0 0.0
    %1268 = vmatpush1.msra.mxu0 0.0
    %1269 = vmatprep.subr.mxu0 0.0
    %1270 = vmatpush1.msra.mxu0 0.0
    %1271 = vmatprep.subr.mxu0 0.0
    %1272 = vmatpush1.msra.mxu0 0.0
    %1273 = vmatprep.subr.mxu0 0.0
    %1274 = vmatpush1.msra.mxu0 0.0
    %1275 = vmatprep.subr.mxu0 0.0
    %1276 = vmatpush1.msra.mxu0 0.0
    %1277 = vmatprep.subr.mxu0 0.0
    %1278 = vmatpush1.msra.mxu0 0.0
    %1279 = vmatprep.subr.mxu0 0.0
    %1280 = vmatpush1.msra.mxu0 0.0
    %1281 = vmatprep.subr.mxu0 0.0
    %1282 = vmatpush1.msra.mxu0 0.0
    %1283 = vmatprep.subr.mxu0 0.0
    %1284 = vmatpush1.msra.mxu0 0.0
    %1285 = vmatprep.subr.mxu0 0.0
    %1286 = vmatpush1.msra.mxu0 0.0
    %1287 = vmatprep.subr.mxu0 0.0
    %1288 = vmatpush1.msra.mxu0 0.0
    %1289 = vmatprep.subr.mxu0 0.0
    %1290 = vmatpush1.msra.mxu0 0.0
    %1291 = vmatprep.subr.mxu0 0.0
    %1292 = vmatpush1.msra.mxu0 0.0
    %1293 = vmatprep.subr.mxu0 0.0
    %1294 = vmatpush1.msra.mxu0 0.0
    %1295 = vmatprep.subr.mxu0 0.0
    %1296 = vmatpush1.msra.mxu0 0.0
    %1297 = vmatprep.subr.mxu0 0.0
    %1298 = vmatpush1.msra.mxu0 0.0
    %1299 = vmatprep.subr.mxu0 0.0
    %1300 = vmatpush1.msra.mxu0 0.0
    %1301 = vmatprep.subr.mxu0 0.0
    %1302 = vmatpush1.msra.mxu0 0.0
    %1303 = vmatprep.subr.mxu0 0.0
    %1304 = vmatpush1.msra.mxu0 0.0
    %1305 = vmatprep.subr.mxu0 0.0
    %1306 = vmatpush1.msra.mxu0 0.0
    %1307 = vmatprep.subr.mxu0 0.0
    %1308 = vmatpush1.msra.mxu0 0.0
    %1309 = vmatprep.subr.mxu0 0.0
    %1310 = vmatpush1.msra.mxu0 0.0
    %1311 = vmatprep.subr.mxu0 0.0
    %1312 = vmatpush1.msra.mxu0 0.0
    %1313 = vmatprep.subr.mxu0 0.0
    %1314 = vmatpush1.msra.mxu0 0.0
    %1315 = vmatprep.subr.mxu0 0.0
    %1316 = vmatpush1.msra.mxu0 0.0
    %1317 = vmatprep.subr.mxu0 0.0
    %1318 = vmatpush1.msra.mxu0 0.0
    %1319 = vmatprep.subr.mxu0 0.0
    %1320 = vmatpush1.msra.mxu0 0.0
    %1321 = vmatprep.subr.mxu0 0.0
    %1322 = vmatpush1.msra.mxu0 0.0
    %1323 = vmatprep.subr.mxu0 0.0
    %1324 = vmatpush1.msra.mxu0 0.0
    %1325 = vmatprep.subr.mxu0 0.0
    %1326 = vmatpush1.msra.mxu0 0.0
    %1327 = vmatprep.mubr.f32.mxu0 0.0
    %1328 = vmatmul.mubr.f32.gmra.mrb[0].mxu0 %v1261
    %v1329 = vpop.f32.mrb[0].mxu0
    %v1330 = vadd.f32 0.0, %v1329
    %v1331 = vpop.f32.mrb[0].mxu0
    %1332 = vdwg.mxu0
    %s1333 = scalar_lea.vmem [#allocation11], 32
    %v1334 = vld [vmem:[%s1333] sm:$0xff]
    %v1335 = vld [vmem:[%s1333 + $0x8] sm:$0xff]
    %v1336 = vld [vmem:[%s1333 + $0x10] sm:$0xff]
    %v1337 = vld [vmem:[%s1333 + $0x18] sm:$0xff]
    %v1339 = vsel %vm131, %v1254, 0
    %v1342 = vsel %vm131, %v1330, 0
    %1344 = vmatprep.subr.mxu0 0.0
    %1345 = vmatpush1.msra.mxu0 %v1334
    %1346 = vmatprep.subr.mxu0 0.0
    %1347 = vmatpush1.msra.mxu0 %v1335
    %1348 = vmatprep.subr.mxu0 0.0
    %1349 = vmatpush1.msra.mxu0 %v1336
    %1350 = vmatprep.subr.mxu0 0.0
    %1351 = vmatpush1.msra.mxu0 %v1337
    %1352 = vmatprep.subr.mxu0 0.0
    %1353 = vmatpush1.msra.mxu0 0.0
    %1354 = vmatprep.subr.mxu0 0.0
    %1355 = vmatpush1.msra.mxu0 0.0
    %1356 = vmatprep.subr.mxu0 0.0
    %1357 = vmatpush1.msra.mxu0 0.0
    %1358 = vmatprep.subr.mxu0 0.0
    %1359 = vmatpush1.msra.mxu0 0.0
    %1360 = vmatprep.subr.mxu0 0.0
    %1361 = vmatpush1.msra.mxu0 0.0
    %1362 = vmatprep.subr.mxu0 0.0
    %1363 = vmatpush1.msra.mxu0 0.0
    %1364 = vmatprep.subr.mxu0 0.0
    %1365 = vmatpush1.msra.mxu0 0.0
    %1366 = vmatprep.subr.mxu0 0.0
    %1367 = vmatpush1.msra.mxu0 0.0
    %1368 = vmatprep.subr.mxu0 0.0
    %1369 = vmatpush1.msra.mxu0 0.0
    %1370 = vmatprep.subr.mxu0 0.0
    %1371 = vmatpush1.msra.mxu0 0.0
    %1372 = vmatprep.subr.mxu0 0.0
    %1373 = vmatpush1.msra.mxu0 0.0
    %1374 = vmatprep.subr.mxu0 0.0
    %1375 = vmatpush1.msra.mxu0 0.0
    %1376 = vmatprep.subr.mxu0 0.0
    %1377 = vmatpush1.msra.mxu0 0.0
    %1378 = vmatprep.subr.mxu0 0.0
    %1379 = vmatpush1.msra.mxu0 0.0
    %1380 = vmatprep.subr.mxu0 0.0
    %1381 = vmatpush1.msra.mxu0 0.0
    %1382 = vmatprep.subr.mxu0 0.0
    %1383 = vmatpush1.msra.mxu0 0.0
    %1384 = vmatprep.subr.mxu0 0.0
    %1385 = vmatpush1.msra.mxu0 0.0
    %1386 = vmatprep.subr.mxu0 0.0
    %1387 = vmatpush1.msra.mxu0 0.0
    %1388 = vmatprep.subr.mxu0 0.0
    %1389 = vmatpush1.msra.mxu0 0.0
    %1390 = vmatprep.subr.mxu0 0.0
    %1391 = vmatpush1.msra.mxu0 0.0
    %1392 = vmatprep.subr.mxu0 0.0
    %1393 = vmatpush1.msra.mxu0 0.0
    %1394 = vmatprep.subr.mxu0 0.0
    %1395 = vmatpush1.msra.mxu0 0.0
    %1396 = vmatprep.subr.mxu0 0.0
    %1397 = vmatpush1.msra.mxu0 0.0
    %1398 = vmatprep.subr.mxu0 0.0
    %1399 = vmatpush1.msra.mxu0 0.0
    %1400 = vmatprep.subr.mxu0 0.0
    %1401 = vmatpush1.msra.mxu0 0.0
    %1402 = vmatprep.subr.mxu0 0.0
    %1403 = vmatpush1.msra.mxu0 0.0
    %1404 = vmatprep.subr.mxu0 0.0
    %1405 = vmatpush1.msra.mxu0 0.0
    %1406 = vmatprep.subr.mxu0 0.0
    %1407 = vmatpush1.msra.mxu0 0.0
    %1408 = vmatprep.mubr.f32.mxu0 0.0
    %1409 = vmatmul.mubr.f32.gmra.mrb[0].mxu0 %v1339
    %v1410 = vpop.f32.mrb[0].mxu0
    %v1411 = vadd.f32 0.0, %v1410
    %v1412 = vpop.f32.mrb[0].mxu0
    %1413 = vmatprep.mubr.f32.mxu0 0.0
    %1414 = vmatmul.mubr.f32.gmra.mrb[0].mxu0 %v1342
    %v1415 = vpop.f32.mrb[0].mxu0
    %v1416 = vadd.f32 0.0, %v1415
    %v1417 = vpop.f32.mrb[0].mxu0
    %1418 = vdwg.mxu0
    %1421 = vrot.lane.b32.xlu0 %v1411, 64
    %v1422 = vpop.permute.xlu0 %1421
    %1423 = vrot.lane.b32.xlu0 %v1416, 64
    %v1424 = vpop.permute.xlu0 %1423
    %v1427 = vadd.f32 %v997, %v1422
    %v1428 = vadd.f32 %v1002, %v1424
    %1431 = vrot.lane.b32.xlu0 %v1427, 64
    %v1432 = vpop.permute.xlu0 %1431
    %1433 = vrot.lane.b32.xlu0 %v1428, 64
    %v1434 = vpop.permute.xlu0 %1433
    %1437 = vst.msk [vmem:[#allocation14] sm:$0xff] %vm131, %v1432
    %1438 = vst.msk [vmem:[#allocation14 + $0x8] sm:$0xff] %vm131, %v1434
    %s1439 = scalar_lea.vmem [#allocation10], 64
    %v1440 = vld [vmem:[%s1439] sm:$0xff]
    %v1441 = vld [vmem:[%s1439 + $0x8] sm:$0xff]
    %v1442 = vld [vmem:[%s1439 + $0x10] sm:$0xff]
    %v1443 = vld [vmem:[%s1439 + $0x18] sm:$0xff]
    %s1444 = scalar_lea.vmem %s6, 2
    %v1445 = vld [vmem:[%s1444] sm:$0x1]
    %v1447 = vlaneseq
    %v1448 = vshrl.u32 %v1447, 7
    %v1449 = vsub.s32 0, %v1448
    %v1450 = vrot.slane %v1445, %v1449
    %1452 = vmatprep.subr.mxu0 0.0
    %1453 = vmatpush1.msra.mxu0 %v1440
    %1454 = vmatprep.subr.mxu0 0.0
    %1455 = vmatpush1.msra.mxu0 %v1441
    %1456 = vmatprep.subr.mxu0 0.0
    %1457 = vmatpush1.msra.mxu0 %v1442
    %1458 = vmatprep.subr.mxu0 0.0
    %1459 = vmatpush1.msra.mxu0 %v1443
    %1460 = vmatprep.subr.mxu0 0.0
    %1461 = vmatpush1.msra.mxu0 0.0
    %1462 = vmatprep.subr.mxu0 0.0
    %1463 = vmatpush1.msra.mxu0 0.0
    %1464 = vmatprep.subr.mxu0 0.0
    %1465 = vmatpush1.msra.mxu0 0.0
    %1466 = vmatprep.subr.mxu0 0.0
    %1467 = vmatpush1.msra.mxu0 0.0
    %1468 = vmatprep.subr.mxu0 0.0
    %1469 = vmatpush1.msra.mxu0 0.0
    %1470 = vmatprep.subr.mxu0 0.0
    %1471 = vmatpush1.msra.mxu0 0.0
    %1472 = vmatprep.subr.mxu0 0.0
    %1473 = vmatpush1.msra.mxu0 0.0
    %1474 = vmatprep.subr.mxu0 0.0
    %1475 = vmatpush1.msra.mxu0 0.0
    %1476 = vmatprep.subr.mxu0 0.0
    %1477 = vmatpush1.msra.mxu0 0.0
    %1478 = vmatprep.subr.mxu0 0.0
    %1479 = vmatpush1.msra.mxu0 0.0
    %1480 = vmatprep.subr.mxu0 0.0
    %1481 = vmatpush1.msra.mxu0 0.0
    %1482 = vmatprep.subr.mxu0 0.0
    %1483 = vmatpush1.msra.mxu0 0.0
    %1484 = vmatprep.subr.mxu0 0.0
    %1485 = vmatpush1.msra.mxu0 0.0
    %1486 = vmatprep.subr.mxu0 0.0
    %1487 = vmatpush1.msra.mxu0 0.0
    %1488 = vmatprep.subr.mxu0 0.0
    %1489 = vmatpush1.msra.mxu0 0.0
    %1490 = vmatprep.subr.mxu0 0.0
    %1491 = vmatpush1.msra.mxu0 0.0
    %1492 = vmatprep.subr.mxu0 0.0
    %1493 = vmatpush1.msra.mxu0 0.0
    %1494 = vmatprep.subr.mxu0 0.0
    %1495 = vmatpush1.msra.mxu0 0.0
    %1496 = vmatprep.subr.mxu0 0.0
    %1497 = vmatpush1.msra.mxu0 0.0
    %1498 = vmatprep.subr.mxu0 0.0
    %1499 = vmatpush1.msra.mxu0 0.0
    %1500 = vmatprep.subr.mxu0 0.0
    %1501 = vmatpush1.msra.mxu0 0.0
    %1502 = vmatprep.subr.mxu0 0.0
    %1503 = vmatpush1.msra.mxu0 0.0
    %1504 = vmatprep.subr.mxu0 0.0
    %1505 = vmatpush1.msra.mxu0 0.0
    %1506 = vmatprep.subr.mxu0 0.0
    %1507 = vmatpush1.msra.mxu0 0.0
    %1508 = vmatprep.subr.mxu0 0.0
    %1509 = vmatpush1.msra.mxu0 0.0
    %1510 = vmatprep.subr.mxu0 0.0
    %1511 = vmatpush1.msra.mxu0 0.0
    %1512 = vmatprep.subr.mxu0 0.0
    %1513 = vmatpush1.msra.mxu0 0.0
    %1514 = vmatprep.subr.mxu0 0.0
    %1515 = vmatpush1.msra.mxu0 0.0
    %1516 = vmatprep.mubr.f32.mxu0 0.0
    %1517 = vmatmul.mubr.f32.gmra.mrb[0].mxu0 %v300
    %v1518 = vpop.f32.mrb[0].mxu0
    %v1519 = vadd.f32 %v1450, %v1518
    %v1520 = vpop.f32.mrb[0].mxu0
    %1521 = vmatprep.mubr.f32.mxu0 0.0
    %1522 = vmatmul.mubr.f32.gmra.mrb[0].mxu0 %v303
    %v1523 = vpop.f32.mrb[0].mxu0
    %v1524 = vadd.f32 %v1450, %v1523
    %v1525 = vpop.f32.mrb[0].mxu0
    %1526 = vdwg.mxu0
    %v1528 = vsel %vm131, %v1519, 0
    %1530 = vmatprep.subr.mxu0 0.0
    %1531 = vmatpush1.xpose.msra.mxu0 %v1528
    %1532 = vmatprep.subr.mxu0 0.0
    %1533 = vmatpush1.xpose.msra.mxu0 0.0
    %1534 = vmatprep.subr.mxu0 0.0
    %1535 = vmatpush1.xpose.msra.mxu0 0.0
    %1536 = vmatprep.subr.mxu0 0.0
    %1537 = vmatpush1.xpose.msra.mxu0 0.0
    %1538 = vmatprep.subr.mxu0 0.0
    %1539 = vmatpush1.xpose.msra.mxu0 0.0
    %1540 = vmatprep.subr.mxu0 0.0
    %1541 = vmatpush1.xpose.msra.mxu0 0.0
    %1542 = vmatprep.subr.mxu0 0.0
    %1543 = vmatpush1.xpose.msra.mxu0 0.0
    %1544 = vmatprep.subr.mxu0 0.0
    %1545 = vmatpush1.xpose.msra.mxu0 0.0
    %1546 = vmatprep.subr.mxu0 0.0
    %1547 = vmatpush1.xpose.msra.mxu0 0.0
    %1548 = vmatprep.subr.mxu0 0.0
    %1549 = vmatpush1.xpose.msra.mxu0 0.0
    %1550 = vmatprep.subr.mxu0 0.0
    %1551 = vmatpush1.xpose.msra.mxu0 0.0
    %1552 = vmatprep.subr.mxu0 0.0
    %1553 = vmatpush1.xpose.msra.mxu0 0.0
    %1554 = vmatprep.subr.mxu0 0.0
    %1555 = vmatpush1.xpose.msra.mxu0 0.0
    %1556 = vmatprep.subr.mxu0 0.0
    %1557 = vmatpush1.xpose.msra.mxu0 0.0
    %1558 = vmatprep.subr.mxu0 0.0
    %1559 = vmatpush1.xpose.msra.mxu0 0.0
    %1560 = vmatprep.subr.mxu0 0.0
    %1561 = vmatpush1.xpose.msra.mxu0 0.0
    %1562 = vmatprep.subr.mxu0 0.0
    %1563 = vmatpush1.xpose.msra.mxu0 0.0
    %1564 = vmatprep.subr.mxu0 0.0
    %1565 = vmatpush1.xpose.msra.mxu0 0.0
    %1566 = vmatprep.subr.mxu0 0.0
    %1567 = vmatpush1.xpose.msra.mxu0 0.0
    %1568 = vmatprep.subr.mxu0 0.0
    %1569 = vmatpush1.xpose.msra.mxu0 0.0
    %1570 = vmatprep.subr.mxu0 0.0
    %1571 = vmatpush1.xpose.msra.mxu0 0.0
    %1572 = vmatprep.subr.mxu0 0.0
    %1573 = vmatpush1.xpose.msra.mxu0 0.0
    %1574 = vmatprep.subr.mxu0 0.0
    %1575 = vmatpush1.xpose.msra.mxu0 0.0
    %1576 = vmatprep.subr.mxu0 0.0
    %1577 = vmatpush1.xpose.msra.mxu0 0.0
    %1578 = vmatprep.subr.mxu0 0.0
    %1579 = vmatpush1.xpose.msra.mxu0 0.0
    %1580 = vmatprep.subr.mxu0 0.0
    %1581 = vmatpush1.xpose.msra.mxu0 0.0
    %1582 = vmatprep.subr.mxu0 0.0
    %1583 = vmatpush1.xpose.msra.mxu0 0.0
    %1584 = vmatprep.subr.mxu0 0.0
    %1585 = vmatpush1.xpose.msra.mxu0 0.0
    %1586 = vmatprep.subr.mxu0 0.0
    %1587 = vmatpush1.xpose.msra.mxu0 0.0
    %1588 = vmatprep.subr.mxu0 0.0
    %1589 = vmatpush1.xpose.msra.mxu0 0.0
    %1590 = vmatprep.subr.mxu0 0.0
    %1591 = vmatpush1.xpose.msra.mxu0 0.0
    %1592 = vmatprep.subr.mxu0 0.0
    %1593 = vmatpush1.xpose.msra.mxu0 0.0
    %1594 = vmatprep.mubr.f32.mxu0 0.0
    %1595 = vmatmul.mubr.f32.gmra.mrb[0].mxu0 %v478
    %v1596 = vpop.f32.mrb[0].mxu0
    %v1597 = vadd.f32 0.0, %v1596
    %v1598 = vpop.f32.mrb[0].mxu0
    %1599 = vdwg.mxu0
    %v1601 = vsel %vm131, %v1524, 0
    %1603 = vmatprep.subr.mxu0 0.0
    %1604 = vmatpush1.xpose.msra.mxu0 %v1601
    %1605 = vmatprep.subr.mxu0 0.0
    %1606 = vmatpush1.xpose.msra.mxu0 0.0
    %1607 = vmatprep.subr.mxu0 0.0
    %1608 = vmatpush1.xpose.msra.mxu0 0.0
    %1609 = vmatprep.subr.mxu0 0.0
    %1610 = vmatpush1.xpose.msra.mxu0 0.0
    %1611 = vmatprep.subr.mxu0 0.0
    %1612 = vmatpush1.xpose.msra.mxu0 0.0
    %1613 = vmatprep.subr.mxu0 0.0
    %1614 = vmatpush1.xpose.msra.mxu0 0.0
    %1615 = vmatprep.subr.mxu0 0.0
    %1616 = vmatpush1.xpose.msra.mxu0 0.0
    %1617 = vmatprep.subr.mxu0 0.0
    %1618 = vmatpush1.xpose.msra.mxu0 0.0
    %1619 = vmatprep.subr.mxu0 0.0
    %1620 = vmatpush1.xpose.msra.mxu0 0.0
    %1621 = vmatprep.subr.mxu0 0.0
    %1622 = vmatpush1.xpose.msra.mxu0 0.0
    %1623 = vmatprep.subr.mxu0 0.0
    %1624 = vmatpush1.xpose.msra.mxu0 0.0
    %1625 = vmatprep.subr.mxu0 0.0
    %1626 = vmatpush1.xpose.msra.mxu0 0.0
    %1627 = vmatprep.subr.mxu0 0.0
    %1628 = vmatpush1.xpose.msra.mxu0 0.0
    %1629 = vmatprep.subr.mxu0 0.0
    %1630 = vmatpush1.xpose.msra.mxu0 0.0
    %1631 = vmatprep.subr.mxu0 0.0
    %1632 = vmatpush1.xpose.msra.mxu0 0.0
    %1633 = vmatprep.subr.mxu0 0.0
    %1634 = vmatpush1.xpose.msra.mxu0 0.0
    %1635 = vmatprep.subr.mxu0 0.0
    %1636 = vmatpush1.xpose.msra.mxu0 0.0
    %1637 = vmatprep.subr.mxu0 0.0
    %1638 = vmatpush1.xpose.msra.mxu0 0.0
    %1639 = vmatprep.subr.mxu0 0.0
    %1640 = vmatpush1.xpose.msra.mxu0 0.0
    %1641 = vmatprep.subr.mxu0 0.0
    %1642 = vmatpush1.xpose.msra.mxu0 0.0
    %1643 = vmatprep.subr.mxu0 0.0
    %1644 = vmatpush1.xpose.msra.mxu0 0.0
    %1645 = vmatprep.subr.mxu0 0.0
    %1646 = vmatpush1.xpose.msra.mxu0 0.0
    %1647 = vmatprep.subr.mxu0 0.0
    %1648 = vmatpush1.xpose.msra.mxu0 0.0
    %1649 = vmatprep.subr.mxu0 0.0
    %1650 = vmatpush1.xpose.msra.mxu0 0.0
    %1651 = vmatprep.subr.mxu0 0.0
    %1652 = vmatpush1.xpose.msra.mxu0 0.0
    %1653 = vmatprep.subr.mxu0 0.0
    %1654 = vmatpush1.xpose.msra.mxu0 0.0
    %1655 = vmatprep.subr.mxu0 0.0
    %1656 = vmatpush1.xpose.msra.mxu0 0.0
    %1657 = vmatprep.subr.mxu0 0.0
    %1658 = vmatpush1.xpose.msra.mxu0 0.0
    %1659 = vmatprep.subr.mxu0 0.0
    %1660 = vmatpush1.xpose.msra.mxu0 0.0
    %1661 = vmatprep.subr.mxu0 0.0
    %1662 = vmatpush1.xpose.msra.mxu0 0.0
    %1663 = vmatprep.subr.mxu0 0.0
    %1664 = vmatpush1.xpose.msra.mxu0 0.0
    %1665 = vmatprep.subr.mxu0 0.0
    %1666 = vmatpush1.xpose.msra.mxu0 0.0
    %1667 = vmatprep.mubr.f32.mxu0 0.0
    %1668 = vmatmul.mubr.f32.gmra.mrb[0].mxu0 %v554
    %v1669 = vpop.f32.mrb[0].mxu0
    %v1670 = vadd.f32 0.0, %v1669
    %v1671 = vpop.f32.mrb[0].mxu0
    %1672 = vdwg.mxu0
    %v1673 = vmul.f32 %v1597, 0.17677669
    %v1674 = vmul.f32 %v1670, 0.17677669
    %v1675 = vsel %vm631, %v1673, -inf
    %1676 = vmax.xlane.f32.xlu0 %v1675
    %v1677 = vpop.xlane.xlu0 %1676
    %v1678 = vsel %vm631, %v1674, -inf
    %1679 = vmax.xlane.f32.xlu0 %v1678
    %v1680 = vpop.xlane.xlu0 %1679
    %v1681 = vsub.f32 %v1673, %v1677
    %v1682 = vsub.f32 %v1674, %v1680
    %v1683 = vmul.f32 %v1681, 1.442695
    %v1684 = vpow.pop %v1683
    %v1685 = vmul.f32 %v1682, 1.442695
    %v1686 = vpow.pop %v1685
    %v1687 = vsel %vm631, %v1684, 0.0
    %1688 = vadd.xlane.f32.xlu0 %v1687
    %v1689 = vpop.xlane.xlu0 %1688
    %v1690 = vsel %vm631, %v1686, 0.0
    %1691 = vadd.xlane.f32.xlu0 %v1690
    %v1692 = vpop.xlane.xlu0 %1691
    %v1693 = vrcp.pop %v1689
    %v1694 = vrcp.pop %v1692
    %v1695 = vmul.f32 %v1689, %v1693
    %v1696 = vmul.f32 %v1692, %v1694
    %v1697 = vsub.f32 2.0, %v1695
    %v1698 = vsub.f32 2.0, %v1696
    %v1699 = vmul.f32 %v1693, %v1697
    %v1700 = vmul.f32 %v1694, %v1698
    %v1701 = vmul.f32 %v1684, %v1699
    %v1702 = vmul.f32 %v1686, %v1700
    %1703 = vrot.lane.b32.xlu0 %v1519, 96
    %v1704 = vpop.permute.xlu0 %1703
    %v1707 = vsel %vm631, %v1701, 0
    %1709 = vmatprep.subr.mxu0 0.0
    %1710 = vmatpush1.msra.mxu0 %v1704
    %1711 = vmatprep.subr.mxu0 0.0
    %1712 = vmatpush1.msra.mxu0 0.0
    %1713 = vmatprep.subr.mxu0 0.0
    %1714 = vmatpush1.msra.mxu0 0.0
    %1715 = vmatprep.subr.mxu0 0.0
    %1716 = vmatpush1.msra.mxu0 0.0
    %1717 = vmatprep.subr.mxu0 0.0
    %1718 = vmatpush1.msra.mxu0 0.0
    %1719 = vmatprep.subr.mxu0 0.0
    %1720 = vmatpush1.msra.mxu0 0.0
    %1721 = vmatprep.subr.mxu0 0.0
    %1722 = vmatpush1.msra.mxu0 0.0
    %1723 = vmatprep.subr.mxu0 0.0
    %1724 = vmatpush1.msra.mxu0 0.0
    %1725 = vmatprep.subr.mxu0 0.0
    %1726 = vmatpush1.msra.mxu0 0.0
    %1727 = vmatprep.subr.mxu0 0.0
    %1728 = vmatpush1.msra.mxu0 0.0
    %1729 = vmatprep.subr.mxu0 0.0
    %1730 = vmatpush1.msra.mxu0 0.0
    %1731 = vmatprep.subr.mxu0 0.0
    %1732 = vmatpush1.msra.mxu0 0.0
    %1733 = vmatprep.subr.mxu0 0.0
    %1734 = vmatpush1.msra.mxu0 0.0
    %1735 = vmatprep.subr.mxu0 0.0
    %1736 = vmatpush1.msra.mxu0 0.0
    %1737 = vmatprep.subr.mxu0 0.0
    %1738 = vmatpush1.msra.mxu0 0.0
    %1739 = vmatprep.subr.mxu0 0.0
    %1740 = vmatpush1.msra.mxu0 0.0
    %1741 = vmatprep.subr.mxu0 0.0
    %1742 = vmatpush1.msra.mxu0 0.0
    %1743 = vmatprep.subr.mxu0 0.0
    %1744 = vmatpush1.msra.mxu0 0.0
    %1745 = vmatprep.subr.mxu0 0.0
    %1746 = vmatpush1.msra.mxu0 0.0
    %1747 = vmatprep.subr.mxu0 0.0
    %1748 = vmatpush1.msra.mxu0 0.0
    %1749 = vmatprep.subr.mxu0 0.0
    %1750 = vmatpush1.msra.mxu0 0.0
    %1751 = vmatprep.subr.mxu0 0.0
    %1752 = vmatpush1.msra.mxu0 0.0
    %1753 = vmatprep.subr.mxu0 0.0
    %1754 = vmatpush1.msra.mxu0 0.0
    %1755 = vmatprep.subr.mxu0 0.0
    %1756 = vmatpush1.msra.mxu0 0.0
    %1757 = vmatprep.subr.mxu0 0.0
    %1758 = vmatpush1.msra.mxu0 0.0
    %1759 = vmatprep.subr.mxu0 0.0
    %1760 = vmatpush1.msra.mxu0 0.0
    %1761 = vmatprep.subr.mxu0 0.0
    %1762 = vmatpush1.msra.mxu0 0.0
    %1763 = vmatprep.subr.mxu0 0.0
    %1764 = vmatpush1.msra.mxu0 0.0
    %1765 = vmatprep.subr.mxu0 0.0
    %1766 = vmatpush1.msra.mxu0 0.0
    %1767 = vmatprep.subr.mxu0 0.0
    %1768 = vmatpush1.msra.mxu0 0.0
    %1769 = vmatprep.subr.mxu0 0.0
    %1770 = vmatpush1.msra.mxu0 0.0
    %1771 = vmatprep.subr.mxu0 0.0
    %1772 = vmatpush1.msra.mxu0 0.0
    %1773 = vmatprep.mubr.f32.mxu0 0.0
    %1774 = vmatmul.mubr.f32.gmra.mrb[0].mxu0 %v1707
    %v1775 = vpop.f32.mrb[0].mxu0
    %v1776 = vadd.f32 0.0, %v1775
    %v1777 = vpop.f32.mrb[0].mxu0
    %1778 = vdwg.mxu0
    %1779 = vrot.lane.b32.xlu0 %v1524, 96
    %v1780 = vpop.permute.xlu0 %1779
    %v1783 = vsel %vm631, %v1702, 0
    %1785 = vmatprep.subr.mxu0 0.0
    %1786 = vmatpush1.msra.mxu0 %v1780
    %1787 = vmatprep.subr.mxu0 0.0
    %1788 = vmatpush1.msra.mxu0 0.0
    %1789 = vmatprep.subr.mxu0 0.0
    %1790 = vmatpush1.msra.mxu0 0.0
    %1791 = vmatprep.subr.mxu0 0.0
    %1792 = vmatpush1.msra.mxu0 0.0
    %1793 = vmatprep.subr.mxu0 0.0
    %1794 = vmatpush1.msra.mxu0 0.0
    %1795 = vmatprep.subr.mxu0 0.0
    %1796 = vmatpush1.msra.mxu0 0.0
    %1797 = vmatprep.subr.mxu0 0.0
    %1798 = vmatpush1.msra.mxu0 0.0
    %1799 = vmatprep.subr.mxu0 0.0
    %1800 = vmatpush1.msra.mxu0 0.0
    %1801 = vmatprep.subr.mxu0 0.0
    %1802 = vmatpush1.msra.mxu0 0.0
    %1803 = vmatprep.subr.mxu0 0.0
    %1804 = vmatpush1.msra.mxu0 0.0
    %1805 = vmatprep.subr.mxu0 0.0
    %1806 = vmatpush1.msra.mxu0 0.0
    %1807 = vmatprep.subr.mxu0 0.0
    %1808 = vmatpush1.msra.mxu0 0.0
    %1809 = vmatprep.subr.mxu0 0.0
    %1810 = vmatpush1.msra.mxu0 0.0
    %1811 = vmatprep.subr.mxu0 0.0
    %1812 = vmatpush1.msra.mxu0 0.0
    %1813 = vmatprep.subr.mxu0 0.0
    %1814 = vmatpush1.msra.mxu0 0.0
    %1815 = vmatprep.subr.mxu0 0.0
    %1816 = vmatpush1.msra.mxu0 0.0
    %1817 = vmatprep.subr.mxu0 0.0
    %1818 = vmatpush1.msra.mxu0 0.0
    %1819 = vmatprep.subr.mxu0 0.0
    %1820 = vmatpush1.msra.mxu0 0.0
    %1821 = vmatprep.subr.mxu0 0.0
    %1822 = vmatpush1.msra.mxu0 0.0
    %1823 = vmatprep.subr.mxu0 0.0
    %1824 = vmatpush1.msra.mxu0 0.0
    %1825 = vmatprep.subr.mxu0 0.0
    %1826 = vmatpush1.msra.mxu0 0.0
    %1827 = vmatprep.subr.mxu0 0.0
    %1828 = vmatpush1.msra.mxu0 0.0
    %1829 = vmatprep.subr.mxu0 0.0
    %1830 = vmatpush1.msra.mxu0 0.0
    %1831 = vmatprep.subr.mxu0 0.0
    %1832 = vmatpush1.msra.mxu0 0.0
    %1833 = vmatprep.subr.mxu0 0.0
    %1834 = vmatpush1.msra.mxu0 0.0
    %1835 = vmatprep.subr.mxu0 0.0
    %1836 = vmatpush1.msra.mxu0 0.0
    %1837 = vmatprep.subr.mxu0 0.0
    %1838 = vmatpush1.msra.mxu0 0.0
    %1839 = vmatprep.subr.mxu0 0.0
    %1840 = vmatpush1.msra.mxu0 0.0
    %1841 = vmatprep.subr.mxu0 0.0
    %1842 = vmatpush1.msra.mxu0 0.0
    %1843 = vmatprep.subr.mxu0 0.0
    %1844 = vmatpush1.msra.mxu0 0.0
    %1845 = vmatprep.subr.mxu0 0.0
    %1846 = vmatpush1.msra.mxu0 0.0
    %1847 = vmatprep.subr.mxu0 0.0
    %1848 = vmatpush1.msra.mxu0 0.0
    %1849 = vmatprep.mubr.f32.mxu0 0.0
    %1850 = vmatmul.mubr.f32.gmra.mrb[0].mxu0 %v1783
    %v1851 = vpop.f32.mrb[0].mxu0
    %v1852 = vadd.f32 0.0, %v1851
    %v1853 = vpop.f32.mrb[0].mxu0
    %1854 = vdwg.mxu0
    %s1855 = scalar_lea.vmem [#allocation11], 64
    %v1856 = vld [vmem:[%s1855] sm:$0xff]
    %v1857 = vld [vmem:[%s1855 + $0x8] sm:$0xff]
    %v1858 = vld [vmem:[%s1855 + $0x10] sm:$0xff]
    %v1859 = vld [vmem:[%s1855 + $0x18] sm:$0xff]
    %v1861 = vsel %vm131, %v1776, 0
    %v1864 = vsel %vm131, %v1852, 0
    %1866 = vmatprep.subr.mxu0 0.0
    %1867 = vmatpush1.msra.mxu0 %v1856
    %1868 = vmatprep.subr.mxu0 0.0
    %1869 = vmatpush1.msra.mxu0 %v1857
    %1870 = vmatprep.subr.mxu0 0.0
    %1871 = vmatpush1.msra.mxu0 %v1858
    %1872 = vmatprep.subr.mxu0 0.0
    %1873 = vmatpush1.msra.mxu0 %v1859
    %1874 = vmatprep.subr.mxu0 0.0
    %1875 = vmatpush1.msra.mxu0 0.0
    %1876 = vmatprep.subr.mxu0 0.0
    %1877 = vmatpush1.msra.mxu0 0.0
    %1878 = vmatprep.subr.mxu0 0.0
    %1879 = vmatpush1.msra.mxu0 0.0
    %1880 = vmatprep.subr.mxu0 0.0
    %1881 = vmatpush1.msra.mxu0 0.0
    %1882 = vmatprep.subr.mxu0 0.0
    %1883 = vmatpush1.msra.mxu0 0.0
    %1884 = vmatprep.subr.mxu0 0.0
    %1885 = vmatpush1.msra.mxu0 0.0
    %1886 = vmatprep.subr.mxu0 0.0
    %1887 = vmatpush1.msra.mxu0 0.0
    %1888 = vmatprep.subr.mxu0 0.0
    %1889 = vmatpush1.msra.mxu0 0.0
    %1890 = vmatprep.subr.mxu0 0.0
    %1891 = vmatpush1.msra.mxu0 0.0
    %1892 = vmatprep.subr.mxu0 0.0
    %1893 = vmatpush1.msra.mxu0 0.0
    %1894 = vmatprep.subr.mxu0 0.0
    %1895 = vmatpush1.msra.mxu0 0.0
    %1896 = vmatprep.subr.mxu0 0.0
    %1897 = vmatpush1.msra.mxu0 0.0
    %1898 = vmatprep.subr.mxu0 0.0
    %1899 = vmatpush1.msra.mxu0 0.0
    %1900 = vmatprep.subr.mxu0 0.0
    %1901 = vmatpush1.msra.mxu0 0.0
    %1902 = vmatprep.subr.mxu0 0.0
    %1903 = vmatpush1.msra.mxu0 0.0
    %1904 = vmatprep.subr.mxu0 0.0
    %1905 = vmatpush1.msra.mxu0 0.0
    %1906 = vmatprep.subr.mxu0 0.0
    %1907 = vmatpush1.msra.mxu0 0.0
    %1908 = vmatprep.subr.mxu0 0.0
    %1909 = vmatpush1.msra.mxu0 0.0
    %1910 = vmatprep.subr.mxu0 0.0
    %1911 = vmatpush1.msra.mxu0 0.0
    %1912 = vmatprep.subr.mxu0 0.0
    %1913 = vmatpush1.msra.mxu0 0.0
    %1914 = vmatprep.subr.mxu0 0.0
    %1915 = vmatpush1.msra.mxu0 0.0
    %1916 = vmatprep.subr.mxu0 0.0
    %1917 = vmatpush1.msra.mxu0 0.0
    %1918 = vmatprep.subr.mxu0 0.0
    %1919 = vmatpush1.msra.mxu0 0.0
    %1920 = vmatprep.subr.mxu0 0.0
    %1921 = vmatpush1.msra.mxu0 0.0
    %1922 = vmatprep.subr.mxu0 0.0
    %1923 = vmatpush1.msra.mxu0 0.0
    %1924 = vmatprep.subr.mxu0 0.0
    %1925 = vmatpush1.msra.mxu0 0.0
    %1926 = vmatprep.subr.mxu0 0.0
    %1927 = vmatpush1.msra.mxu0 0.0
    %1928 = vmatprep.subr.mxu0 0.0
    %1929 = vmatpush1.msra.mxu0 0.0
    %1930 = vmatprep.mubr.f32.mxu0 0.0
    %1931 = vmatmul.mubr.f32.gmra.mrb[0].mxu0 %v1861
    %v1932 = vpop.f32.mrb[0].mxu0
    %v1933 = vadd.f32 0.0, %v1932
    %v1934 = vpop.f32.mrb[0].mxu0
    %1935 = vmatprep.mubr.f32.mxu0 0.0
    %1936 = vmatmul.mubr.f32.gmra.mrb[0].mxu0 %v1864
    %v1937 = vpop.f32.mrb[0].mxu0
    %v1938 = vadd.f32 0.0, %v1937
    %v1939 = vpop.f32.mrb[0].mxu0
    %1940 = vdwg.mxu0
    %1943 = vrot.lane.b32.xlu0 %v1933, 64
    %v1944 = vpop.permute.xlu0 %1943
    %1945 = vrot.lane.b32.xlu0 %v1938, 64
    %v1946 = vpop.permute.xlu0 %1945
    %v1949 = vadd.f32 %v1519, %v1944
    %v1950 = vadd.f32 %v1524, %v1946
    %1953 = vrot.lane.b32.xlu0 %v1949, 64
    %v1954 = vpop.permute.xlu0 %1953
    %1955 = vrot.lane.b32.xlu0 %v1950, 64
    %v1956 = vpop.permute.xlu0 %1955
    %1959 = vst.msk [vmem:[#allocation16] sm:$0xff] %vm131, %v1954
    %1960 = vst.msk [vmem:[#allocation16 + $0x8] sm:$0xff] %vm131, %v1956
    // Predicated region
    $region58: #{tpu_custom_call.1} parent=1 // pred_check
      _
    $region59: #{tpu_custom_call.1} parent=1 // pred_check_branch
      %1962 = sbr.rel (0) target = $region61
    $region60: #{tpu_custom_call.1} parent=1 // pred_region
      %s1964 = ssub.s32 256, 256
      %1965 = vsyncadd [#allocation4], %s1964
      %s1966 = sshll.u32 [#allocation13], 4
      %s1967 = int_to_ptr.vmem [resolvable:$true] %s1966
      %1972 = dma.vmem_to_hbm [thread:$0]  %s1967, 256, %s8, [#allocation4], 128, 128, 8
    $region61: #{tpu_custom_call.1} parent=1 // pred_fallthru
      _
    // Predicated region
    $region62: #{tpu_custom_call.1} parent=1 // pred_check
      _
    $region63: #{tpu_custom_call.1} parent=1 // pred_check_branch
      %1974 = sbr.rel (0) target = $region65
    $region64: #{tpu_custom_call.1} parent=1 // pred_region
      %s1976 = ssub.s32 256, 256
      %1977 = vsyncadd [#allocation15], %s1976
      %s1978 = sshll.u32 [#allocation14], 4
      %s1979 = int_to_ptr.vmem [resolvable:$true] %s1978
      %1984 = dma.vmem_to_hbm [thread:$0]  %s1979, 256, %s9, [#allocation15], 128, 128, 8
    $region65: #{tpu_custom_call.1} parent=1 // pred_fallthru
      _
    // Predicated region
    $region66: #{tpu_custom_call.1} parent=1 // pred_check
      _
    $region67: #{tpu_custom_call.1} parent=1 // pred_check_branch
      %1986 = sbr.rel (0) target = $region69
    $region68: #{tpu_custom_call.1} parent=1 // pred_region
      %s1988 = ssub.s32 256, 256
      %1989 = vsyncadd [#allocation15], %s1988
      %s1990 = sshll.u32 [#allocation16], 4
      %s1991 = int_to_ptr.vmem [resolvable:$true] %s1990
      %1996 = dma.vmem_to_hbm [thread:$0]  %s1991, 256, %s10, [#allocation15], 128, 128, 8
    $region69: #{tpu_custom_call.1} parent=1 // pred_fallthru
      _
    // Predicated region
    $region70: #{tpu_custom_call.1} parent=1 // pred_check
      _
    $region71: #{tpu_custom_call.1} parent=1 // pred_check_branch
      %1998 = sbr.rel (0) target = $region73
    $region72: #{tpu_custom_call.1} parent=1 // pred_region
      %1999 = dma.done [#allocation4], 256
    $region73: #{tpu_custom_call.1} parent=1 // pred_fallthru
      _
    // Predicated region
    $region74: #{tpu_custom_call.1} parent=1 // pred_check
      _
    $region75: #{tpu_custom_call.1} parent=1 // pred_check_branch
      %2001 = sbr.rel (0) target = $region77
    $region76: #{tpu_custom_call.1} parent=1 // pred_region
      %2002 = dma.done [#allocation15], 256
    $region77: #{tpu_custom_call.1} parent=1 // pred_fallthru
      _
    // Predicated region
    $region78: #{tpu_custom_call.1} parent=1 // pred_check
      _
    $region79: #{tpu_custom_call.1} parent=1 // pred_check_branch
      %2004 = sbr.rel (0) target = $region81
    $region80: #{tpu_custom_call.1} parent=1 // pred_region
      %2005 = dma.done [#allocation15], 256
    $region81: #{tpu_custom_call.1} parent=1 // pred_fallthru
      _
    %2006 = vsyncpa [#allocation3], 1
    %2007 = vsyncpa [#allocation6], 1
    %2008 = vsyncpa [#allocation9], 1
    %2009 = vsyncpa [#allocation12], 1
    %2010 = vsyncpa [#allocation4], 1
    %2011 = vsyncpa [#allocation15], 1

// kernel: tpu_custom_call.1
$region0: #{tpu_custom_call.1}
  #allocation0 [shape = 'u32[]', space=smem, size = 0x4, offset = 0x4, fixed_abs, tag = 'smem constant byte address 0x4 - core index']
  #allocation1 [shape = 'u32[144,128]{1,0:T(1,128)}', space=vmem, size = 0x12000, scoped, tag = 'internal scratch']
  %s0 = inlined_call_operand.hbm [shape: f32[2,8,32], index: 0, kind: input, shape index: {}]
  %s1 = inlined_call_operand.hbm [shape: f32[2,8,32], index: 1, kind: input, shape index: {}]
  %s2 = inlined_call_operand.hbm [shape: f32[2,8,32], index: 2, kind: input, shape index: {}]
  %s3 = inlined_call_operand.hbm [shape: f32[3,32,32], index: 3, kind: input, shape index: {}]
  %s4 = inlined_call_operand.vmem [shape: f32[1,32], index: 4, kind: input, shape index: {}]
  %s5 = inlined_call_operand.hbm [shape: f32[3,32,96], index: 5, kind: input, shape index: {}]
  %s6 = inlined_call_operand.vmem [shape: f32[3,1,96], index: 6, kind: input, shape index: {}]
  %s7 = inlined_call_operand.hbm [shape: f32[3,32,32], index: 7, kind: input, shape index: {}]
  %s8 = inlined_call_operand.hbm [shape: f32[2,8,32], index: 8, kind: output, shape index: {0}]
  %s9 = inlined_call_operand.hbm [shape: f32[2,8,32], index: 9, kind: output, shape index: {1}]
  %s10 = inlined_call_operand.hbm [shape: f32[2,8,32], index: 10, kind: output, shape index: {2}]
  %11 = xla_tuple %s8, %s9, %s10
  %s12 = sld [smem:[#allocation0]]
  $region82: #{tpu_custom_call.1} parent=0
    _
  %s14 = ssub.s32 1, %s12
  %s15 = scalar_select 0, %s14, %s12
  $region1: #{tpu_custom_call.1} parent=0
    #allocation2 [shape = 'u8[8192]{0}', space=vmem, size = 0x2000, scoped, tag = 'input window, operand 0, single buffered']
    #allocation3 [shape = 's32[1]{0}', space=sflag, size = 0x4, scoped, tag = 'scoped memory for tpu_custom_call.1']
    #allocation4 [shape = 's32[1]{0}', space=sflag, size = 0x4, scoped, tag = 'scoped memory for tpu_custom_call.1']
    #allocation5 [shape = 'u8[8192]{0}', space=vmem, size = 0x2000, scoped, tag = 'input window, operand 1, single buffered']
    #allocation6 [shape = 's32[1]{0}', space=sflag, size = 0x4, scoped, tag = 'scoped memory for tpu_custom_call.1']
    #allocation7 [shape = 'u8[8192]{0}', space=vmem, size = 0x2000, scoped, tag = 'input window, operand 2, single buffered']
    #allocation8 [shape = 'u8[49152]{0}', space=vmem, size = 0xc000, scoped, tag = 'input window, operand 3, single buffered']
    #allocation9 [shape = 's32[1]{0}', space=sflag, size = 0x4, scoped, tag = 'scoped memory for tpu_custom_call.1']
    #allocation10 [shape = 'u8[49152]{0}', space=vmem, size = 0xc000, scoped, tag = 'input window, operand 5, single buffered']
    #allocation11 [shape = 'u8[49152]{0}', space=vmem, size = 0xc000, scoped, tag = 'input window, operand 7, single buffered']
    #allocation12 [shape = 's32[1]{0}', space=sflag, size = 0x4, scoped, tag = 'scoped memory for tpu_custom_call.1']
    #allocation13 [shape = 'u8[8192]{0}', space=vmem, size = 0x2000, scoped, tag = 'output window, operand 0, single buffered']
    #allocation14 [shape = 'u8[8192]{0}', space=vmem, size = 0x2000, scoped, tag = 'output window, operand 1, single buffered']
    #allocation15 [shape = 's32[1]{0}', space=sflag, size = 0x4, scoped, tag = 'scoped memory for tpu_custom_call.1']
    #allocation16 [shape = 'u8[8192]{0}', space=vmem, size = 0x2000, scoped, tag = 'output window, operand 2, single buffered']
    %16 = vsyncpa [#allocation3], 0
    %17 = vsyncpa [#allocation6], 0
    %18 = vsyncpa [#allocation9], 0
    %19 = vsyncpa [#allocation12], 0
    %20 = vsyncpa [#allocation4], 0
    %21 = vsyncpa [#allocation15], 0
    // Predicated region
    $region2: #{tpu_custom_call.1} parent=1 // pred_check
      _
    $region3: #{tpu_custom_call.1} parent=1 // pred_check_branch
      %23 = sbr.rel (0) target = $region5
    $region4: #{tpu_custom_call.1} parent=1 // pred_region
      %s25 = ssub.s32 256, 256
      %26 = vsyncadd [#allocation3], %s25
      %s27 = sshll.u32 [#allocation2], 4
      %s28 = int_to_ptr.vmem [resolvable:$true] %s27
      %33 = dma.hbm_to_vmem [thread:$0]  %s0, 256, %s28, [#allocation3], 128, 128, 8
    $region5: #{tpu_custom_call.1} parent=1 // pred_fallthru
      _
    // Predicated region
    $region6: #{tpu_custom_call.1} parent=1 // pred_check
      _
    $region7: #{tpu_custom_call.1} parent=1 // pred_check_branch
      %35 = sbr.rel (0) target = $region9
    $region8: #{tpu_custom_call.1} parent=1 // pred_region
      %s37 = ssub.s32 256, 256
      %38 = vsyncadd [#allocation6], %s37
      %s39 = sshll.u32 [#allocation5], 4
      %s40 = int_to_ptr.vmem [resolvable:$true] %s39
      %45 = dma.hbm_to_vmem [thread:$0]  %s1, 256, %s40, [#allocation6], 128, 128, 8
    $region9: #{tpu_custom_call.1} parent=1 // pred_fallthru
      _
    // Predicated region
    $region10: #{tpu_custom_call.1} parent=1 // pred_check
      _
    $region11: #{tpu_custom_call.1} parent=1 // pred_check_branch
      %47 = sbr.rel (0) target = $region13
    $region12: #{tpu_custom_call.1} parent=1 // pred_region
      %s49 = ssub.s32 256, 256
      %50 = vsyncadd [#allocation6], %s49
      %s51 = sshll.u32 [#allocation7], 4
      %s52 = int_to_ptr.vmem [resolvable:$true] %s51
      %57 = dma.hbm_to_vmem [thread:$0]  %s2, 256, %s52, [#allocation6], 128, 128, 8
    $region13: #{tpu_custom_call.1} parent=1 // pred_fallthru
      _
    // Predicated region
    $region14: #{tpu_custom_call.1} parent=1 // pred_check
      _
    $region15: #{tpu_custom_call.1} parent=1 // pred_check_branch
      %59 = sbr.rel (0) target = $region17
    $region16: #{tpu_custom_call.1} parent=1 // pred_region
      %s61 = ssub.s32 1536, 1536
      %62 = vsyncadd [#allocation9], %s61
      %s63 = sshll.u32 [#allocation8], 4
      %s64 = int_to_ptr.vmem [resolvable:$true] %s63
      %69 = dma.hbm_to_vmem [thread:$0]  %s3, 1536, %s64, [#allocation9], 128, 128, 8
    $region17: #{tpu_custom_call.1} parent=1 // pred_fallthru
      _
    // Predicated region
    $region18: #{tpu_custom_call.1} parent=1 // pred_check
      _
    $region19: #{tpu_custom_call.1} parent=1 // pred_check_branch
      %71 = sbr.rel (0) target = $region21
    $region20: #{tpu_custom_call.1} parent=1 // pred_region
      _
    $region21: #{tpu_custom_call.1} parent=1 // pred_fallthru
      _
    // Predicated region
    $region22: #{tpu_custom_call.1} parent=1 // pred_check
      _
    $region23: #{tpu_custom_call.1} parent=1 // pred_check_branch
      %73 = sbr.rel (0) target = $region25
    $region24: #{tpu_custom_call.1} parent=1 // pred_region
      %s75 = ssub.s32 1536, 1536
      %76 = vsyncadd [#allocation9], %s75
      %s77 = sshll.u32 [#allocation10], 4
      %s78 = int_to_ptr.vmem [resolvable:$true] %s77
      %83 = dma.hbm_to_vmem [thread:$0]  %s5, 1536, %s78, [#allocation9], 128, 128, 8
    $region25: #{tpu_custom_call.1} parent=1 // pred_fallthru
      _
    // Predicated region
    $region26: #{tpu_custom_call.1} parent=1 // pred_check
      _
    $region27: #{tpu_custom_call.1} parent=1 // pred_check_branch
      %85 = sbr.rel (0) target = $region29
    $region28: #{tpu_custom_call.1} parent=1 // pred_region
      _
    $region29: #{tpu_custom_call.1} parent=1 // pred_fallthru
      _
    // Predicated region
    $region30: #{tpu_custom_call.1} parent=1 // pred_check
      _
    $region31: #{tpu_custom_call.1} parent=1 // pred_check_branch
      %87 = sbr.rel (0) target = $region33
    $region32: #{tpu_custom_call.1} parent=1 // pred_region
      %s89 = ssub.s32 1536, 1536
      %90 = vsyncadd [#allocation12], %s89
      %s91 = sshll.u32 [#allocation11], 4
      %s92 = int_to_ptr.vmem [resolvable:$true] %s91
      %97 = dma.hbm_to_vmem [thread:$0]  %s7, 1536, %s92, [#allocation12], 128, 128, 8
    $region33: #{tpu_custom_call.1} parent=1 // pred_fallthru
      _
    // Predicated region
    $region34: #{tpu_custom_call.1} parent=1 // pred_check
      _
    $region35: #{tpu_custom_call.1} parent=1 // pred_check_branch
      %99 = sbr.rel (0) target = $region37
    $region36: #{tpu_custom_call.1} parent=1 // pred_region
      %100 = dma.done [#allocation3], 256
    $region37: #{tpu_custom_call.1} parent=1 // pred_fallthru
      _
    // Predicated region
    $region38: #{tpu_custom_call.1} parent=1 // pred_check
      _
    $region39: #{tpu_custom_call.1} parent=1 // pred_check_branch
      %102 = sbr.rel (0) target = $region41
    $region40: #{tpu_custom_call.1} parent=1 // pred_region
      %103 = dma.done [#allocation6], 256
    $region41: #{tpu_custom_call.1} parent=1 // pred_fallthru
      _
    // Predicated region
    $region42: #{tpu_custom_call.1} parent=1 // pred_check
      _
    $region43: #{tpu_custom_call.1} parent=1 // pred_check_branch
      %105 = sbr.rel (0) target = $region45
    $region44: #{tpu_custom_call.1} parent=1 // pred_region
      %106 = dma.done [#allocation6], 256
    $region45: #{tpu_custom_call.1} parent=1 // pred_fallthru
      _
    // Predicated region
    $region46: #{tpu_custom_call.1} parent=1 // pred_check
      _
    $region47: #{tpu_custom_call.1} parent=1 // pred_check_branch
      %108 = sbr.rel (0) target = $region49
    $region48: #{tpu_custom_call.1} parent=1 // pred_region
      %109 = dma.done [#allocation9], 1536
    $region49: #{tpu_custom_call.1} parent=1 // pred_fallthru
      _
    // Predicated region
    $region50: #{tpu_custom_call.1} parent=1 // pred_check
      _
    $region51: #{tpu_custom_call.1} parent=1 // pred_check_branch
      %111 = sbr.rel (0) target = $region53
    $region52: #{tpu_custom_call.1} parent=1 // pred_region
      %112 = dma.done [#allocation9], 1536
    $region53: #{tpu_custom_call.1} parent=1 // pred_fallthru
      _
    // Predicated region
    $region54: #{tpu_custom_call.1} parent=1 // pred_check
      _
    $region55: #{tpu_custom_call.1} parent=1 // pred_check_branch
      %114 = sbr.rel (0) target = $region57
    $region56: #{tpu_custom_call.1} parent=1 // pred_region
      %115 = dma.done [#allocation12], 1536
    $region57: #{tpu_custom_call.1} parent=1 // pred_fallthru
      _
    %v116 = vld [vmem:[#allocation2] sm:$0xff]
    %v117 = vld [vmem:[#allocation2 + $0x8] sm:$0xff]
    %v118 = vld [vmem:[#allocation5] sm:$0xff]
    %v119 = vld [vmem:[#allocation5 + $0x8] sm:$0xff]
    %v120 = vld [vmem:[#allocation7] sm:$0xff]
    %v121 = vld [vmem:[#allocation7 + $0x8] sm:$0xff]
    %v122 = vld [vmem:[#allocation8] sm:$0xff]
    %v123 = vld [vmem:[#allocation8 + $0x8] sm:$0xff]
    %v124 = vld [vmem:[#allocation8 + $0x10] sm:$0xff]
    %v125 = vld [vmem:[#allocation8 + $0x18] sm:$0xff]
    %s126 = scalar_lea.vmem [#allocation8], 32
    %v127 = vld [vmem:[%s126] sm:$0xff]
    %v128 = vld [vmem:[%s126 + $0x8] sm:$0xff]
    %v129 = vld [vmem:[%s126 + $0x10] sm:$0xff]
    %v130 = vld [vmem:[%s126 + $0x18] sm:$0xff]
    %vm131 = vcmask 261120
    %v133 = vsel %vm131, %v118, 0
    %v136 = vsel %vm131, %v119, 0
    %138 = vmatprep.subr.mxu0 0.0
    %139 = vmatpush1.msra.mxu0 %v127
    %140 = vmatprep.subr.mxu0 0.0
    %141 = vmatpush1.msra.mxu0 %v128
    %142 = vmatprep.subr.mxu0 0.0
    %143 = vmatpush1.msra.mxu0 %v129
    %144 = vmatprep.subr.mxu0 0.0
    %145 = vmatpush1.msra.mxu0 %v130
    %146 = vmatprep.subr.mxu0 0.0
    %147 = vmatpush1.msra.mxu0 0.0
    %148 = vmatprep.subr.mxu0 0.0
    %149 = vmatpush1.msra.mxu0 0.0
    %150 = vmatprep.subr.mxu0 0.0
    %151 = vmatpush1.msra.mxu0 0.0
    %152 = vmatprep.subr.mxu0 0.0
    %153 = vmatpush1.msra.mxu0 0.0
    %154 = vmatprep.subr.mxu0 0.0
    %155 = vmatpush1.msra.mxu0 0.0
    %156 = vmatprep.subr.mxu0 0.0
    %157 = vmatpush1.msra.mxu0 0.0
    %158 = vmatprep.subr.mxu0 0.0
    %159 = vmatpush1.msra.mxu0 0.0
    %160 = vmatprep.subr.mxu0 0.0
    %161 = vmatpush1.msra.mxu0 0.0
    %162 = vmatprep.subr.mxu0 0.0
    %163 = vmatpush1.msra.mxu0 0.0
    %164 = vmatprep.subr.mxu0 0.0
    %165 = vmatpush1.msra.mxu0 0.0
    %166 = vmatprep.subr.mxu0 0.0
    %167 = vmatpush1.msra.mxu0 0.0
    %168 = vmatprep.subr.mxu0 0.0
    %169 = vmatpush1.msra.mxu0 0.0
    %170 = vmatprep.subr.mxu0 0.0
    %171 = vmatpush1.msra.mxu0 0.0
    %172 = vmatprep.subr.mxu0 0.0
    %173 = vmatpush1.msra.mxu0 0.0
    %174 = vmatprep.subr.mxu0 0.0
    %175 = vmatpush1.msra.mxu0 0.0
    %176 = vmatprep.subr.mxu0 0.0
    %177 = vmatpush1.msra.mxu0 0.0
    %178 = vmatprep.subr.mxu0 0.0
    %179 = vmatpush1.msra.mxu0 0.0
    %180 = vmatprep.subr.mxu0 0.0
    %181 = vmatpush1.msra.mxu0 0.0
    %182 = vmatprep.subr.mxu0 0.0
    %183 = vmatpush1.msra.mxu0 0.0
    %184 = vmatprep.subr.mxu0 0.0
    %185 = vmatpush1.msra.mxu0 0.0
    %186 = vmatprep.subr.mxu0 0.0
    %187 = vmatpush1.msra.mxu0 0.0
    %188 = vmatprep.subr.mxu0 0.0
    %189 = vmatpush1.msra.mxu0 0.0
    %190 = vmatprep.subr.mxu0 0.0
    %191 = vmatpush1.msra.mxu0 0.0
    %192 = vmatprep.subr.mxu0 0.0
    %193 = vmatpush1.msra.mxu0 0.0
    %194 = vmatprep.subr.mxu0 0.0
    %195 = vmatpush1.msra.mxu0 0.0
    %196 = vmatprep.subr.mxu0 0.0
    %197 = vmatpush1.msra.mxu0 0.0
    %198 = vmatprep.subr.mxu0 0.0
    %199 = vmatpush1.msra.mxu0 0.0
    %200 = vmatprep.subr.mxu0 0.0
    %201 = vmatpush1.msra.mxu0 0.0
    %202 = vmatprep.mubr.f32.mxu0 0.0
    %203 = vmatmul.mubr.f32.gmra.mrb[0].mxu0 %v133
    %v204 = vpop.f32.mrb[0].mxu0
    %v205 = vadd.f32 0.0, %v204
    %v206 = vpop.f32.mrb[0].mxu0
    %207 = vmatprep.mubr.f32.mxu0 0.0
    %208 = vmatmul.mubr.f32.gmra.mrb[0].mxu0 %v136
    %v209 = vpop.f32.mrb[0].mxu0
    %v210 = vadd.f32 0.0, %v209
    %v211 = vpop.f32.mrb[0].mxu0
    %212 = vdwg.mxu0
    %v214 = vsel %vm131, %v116, 0
    %v217 = vsel %vm131, %v117, 0
    %219 = vmatprep.subr.mxu0 0.0
    %220 = vmatpush1.msra.mxu0 %v122
    %221 = vmatprep.subr.mxu0 0.0
    %222 = vmatpush1.msra.mxu0 %v123
    %223 = vmatprep.subr.mxu0 0.0
    %224 = vmatpush1.msra.mxu0 %v124
    %225 = vmatprep.subr.mxu0 0.0
    %226 = vmatpush1.msra.mxu0 %v125
    %227 = vmatprep.subr.mxu0 0.0
    %228 = vmatpush1.msra.mxu0 0.0
    %229 = vmatprep.subr.mxu0 0.0
    %230 = vmatpush1.msra.mxu0 0.0
    %231 = vmatprep.subr.mxu0 0.0
    %232 = vmatpush1.msra.mxu0 0.0
    %233 = vmatprep.subr.mxu0 0.0
    %234 = vmatpush1.msra.mxu0 0.0
    %235 = vmatprep.subr.mxu0 0.0
    %236 = vmatpush1.msra.mxu0 0.0
    %237 = vmatprep.subr.mxu0 0.0
    %238 = vmatpush1.msra.mxu0 0.0
    %239 = vmatprep.subr.mxu0 0.0
    %240 = vmatpush1.msra.mxu0 0.0
    %241 = vmatprep.subr.mxu0 0.0
    %242 = vmatpush1.msra.mxu0 0.0
    %243 = vmatprep.subr.mxu0 0.0
    %244 = vmatpush1.msra.mxu0 0.0
    %245 = vmatprep.subr.mxu0 0.0
    %246 = vmatpush1.msra.mxu0 0.0
    %247 = vmatprep.subr.mxu0 0.0
    %248 = vmatpush1.msra.mxu0 0.0
    %249 = vmatprep.subr.mxu0 0.0
    %250 = vmatpush1.msra.mxu0 0.0
    %251 = vmatprep.subr.mxu0 0.0
    %252 = vmatpush1.msra.mxu0 0.0
    %253 = vmatprep.subr.mxu0 0.0
    %254 = vmatpush1.msra.mxu0 0.0
    %255 = vmatprep.subr.mxu0 0.0
    %256 = vmatpush1.msra.mxu0 0.0
    %257 = vmatprep.subr.mxu0 0.0
    %258 = vmatpush1.msra.mxu0 0.0
    %259 = vmatprep.subr.mxu0 0.0
    %260 = vmatpush1.msra.mxu0 0.0
    %261 = vmatprep.subr.mxu0 0.0
    %262 = vmatpush1.msra.mxu0 0.0
    %263 = vmatprep.subr.mxu0 0.0
    %264 = vmatpush1.msra.mxu0 0.0
    %265 = vmatprep.subr.mxu0 0.0
    %266 = vmatpush1.msra.mxu0 0.0
    %267 = vmatprep.subr.mxu0 0.0
    %268 = vmatpush1.msra.mxu0 0.0
    %269 = vmatprep.subr.mxu0 0.0
    %270 = vmatpush1.msra.mxu0 0.0
    %271 = vmatprep.subr.mxu0 0.0
    %272 = vmatpush1.msra.mxu0 0.0
    %273 = vmatprep.subr.mxu0 0.0
    %274 = vmatpush1.msra.mxu0 0.0
    %275 = vmatprep.subr.mxu0 0.0
    %276 = vmatpush1.msra.mxu0 0.0
    %277 = vmatprep.subr.mxu0 0.0
    %278 = vmatpush1.msra.mxu0 0.0
    %279 = vmatprep.subr.mxu0 0.0
    %280 = vmatpush1.msra.mxu0 0.0
    %281 = vmatprep.subr.mxu0 0.0
    %282 = vmatpush1.msra.mxu0 0.0
    %283 = vmatprep.mubr.f32.mxu0 0.0
    %284 = vmatmul.mubr.f32.gmra.mrb[0].mxu0 %v214
    %v285 = vpop.f32.mrb[0].mxu0
    %v286 = vadd.f32 %v205, %v285
    %v287 = vpop.f32.mrb[0].mxu0
    %288 = vmatprep.mubr.f32.mxu0 0.0
    %289 = vmatmul.mubr.f32.gmra.mrb[0].mxu0 %v217
    %v290 = vpop.f32.mrb[0].mxu0
    %v291 = vadd.f32 %v210, %v290
    %v292 = vpop.f32.mrb[0].mxu0
    %293 = vdwg.mxu0
    %s294 = scalar_lea.vmem [#allocation8], 64
    %v295 = vld [vmem:[%s294] sm:$0xff]
    %v296 = vld [vmem:[%s294 + $0x8] sm:$0xff]
    %v297 = vld [vmem:[%s294 + $0x10] sm:$0xff]
    %v298 = vld [vmem:[%s294 + $0x18] sm:$0xff]
    %v300 = vsel %vm131, %v120, 0
    %v303 = vsel %vm131, %v121, 0
    %305 = vmatprep.subr.mxu0 0.0
    %306 = vmatpush1.msra.mxu0 %v295
    %307 = vmatprep.subr.mxu0 0.0
    %308 = vmatpush1.msra.mxu0 %v296
    %309 = vmatprep.subr.mxu0 0.0
    %310 = vmatpush1.msra.mxu0 %v297
    %311 = vmatprep.subr.mxu0 0.0
    %312 = vmatpush1.msra.mxu0 %v298
    %313 = vmatprep.subr.mxu0 0.0
    %314 = vmatpush1.msra.mxu0 0.0
    %315 = vmatprep.subr.mxu0 0.0
    %316 = vmatpush1.msra.mxu0 0.0
    %317 = vmatprep.subr.mxu0 0.0
    %318 = vmatpush1.msra.mxu0 0.0
    %319 = vmatprep.subr.mxu0 0.0
    %320 = vmatpush1.msra.mxu0 0.0
    %321 = vmatprep.subr.mxu0 0.0
    %322 = vmatpush1.msra.mxu0 0.0
    %323 = vmatprep.subr.mxu0 0.0
    %324 = vmatpush1.msra.mxu0 0.0
    %325 = vmatprep.subr.mxu0 0.0
    %326 = vmatpush1.msra.mxu0 0.0
    %327 = vmatprep.subr.mxu0 0.0
    %328 = vmatpush1.msra.mxu0 0.0
    %329 = vmatprep.subr.mxu0 0.0
    %330 = vmatpush1.msra.mxu0 0.0
    %331 = vmatprep.subr.mxu0 0.0
    %332 = vmatpush1.msra.mxu0 0.0
    %333 = vmatprep.subr.mxu0 0.0
    %334 = vmatpush1.msra.mxu0 0.0
    %335 = vmatprep.subr.mxu0 0.0
    %336 = vmatpush1.msra.mxu0 0.0
    %337 = vmatprep.subr.mxu0 0.0
    %338 = vmatpush1.msra.mxu0 0.0
    %339 = vmatprep.subr.mxu0 0.0
    %340 = vmatpush1.msra.mxu0 0.0
    %341 = vmatprep.subr.mxu0 0.0
    %342 = vmatpush1.msra.mxu0 0.0
    %343 = vmatprep.subr.mxu0 0.0
    %344 = vmatpush1.msra.mxu0 0.0
    %345 = vmatprep.subr.mxu0 0.0
    %346 = vmatpush1.msra.mxu0 0.0
    %347 = vmatprep.subr.mxu0 0.0
    %348 = vmatpush1.msra.mxu0 0.0
    %349 = vmatprep.subr.mxu0 0.0
    %350 = vmatpush1.msra.mxu0 0.0
    %351 = vmatprep.subr.mxu0 0.0
    %352 = vmatpush1.msra.mxu0 0.0
    %353 = vmatprep.subr.mxu0 0.0
    %354 = vmatpush1.msra.mxu0 0.0
    %355 = vmatprep.subr.mxu0 0.0
    %356 = vmatpush1.msra.mxu0 0.0
    %357 = vmatprep.subr.mxu0 0.0
    %358 = vmatpush1.msra.mxu0 0.0
    %359 = vmatprep.subr.mxu0 0.0
    %360 = vmatpush1.msra.mxu0 0.0
    %361 = vmatprep.subr.mxu0 0.0
    %362 = vmatpush1.msra.mxu0 0.0
    %363 = vmatprep.subr.mxu0 0.0
    %364 = vmatpush1.msra.mxu0 0.0
    %365 = vmatprep.subr.mxu0 0.0
    %366 = vmatpush1.msra.mxu0 0.0
    %367 = vmatprep.subr.mxu0 0.0
    %368 = vmatpush1.msra.mxu0 0.0
    %369 = vmatprep.mubr.f32.mxu0 0.0
    %370 = vmatmul.mubr.f32.gmra.mrb[0].mxu0 %v300
    %v371 = vpop.f32.mrb[0].mxu0
    %v372 = vadd.f32 0.0, %v371
    %v373 = vpop.f32.mrb[0].mxu0
    %374 = vmatprep.mubr.f32.mxu0 0.0
    %375 = vmatmul.mubr.f32.gmra.mrb[0].mxu0 %v303
    %v376 = vpop.f32.mrb[0].mxu0
    %v377 = vadd.f32 0.0, %v376
    %v378 = vpop.f32.mrb[0].mxu0
    %379 = vdwg.mxu0
    %v380 = vadd.f32 %v286, %v372
    %v381 = vadd.f32 %v291, %v377
    %v382 = vld [vmem:[%s4] sm:$0x1]
    %v384 = vlaneseq
    %v385 = vshrl.u32 %v384, 7
    %v386 = vsub.s32 0, %v385
    %v387 = vrot.slane %v382, %v386
    %v389 = vadd.f32 %v380, %v387
    %v390 = vadd.f32 %v381, %v387
    %v391 = vld [vmem:[#allocation10] sm:$0xff]
    %v392 = vld [vmem:[#allocation10 + $0x8] sm:$0xff]
    %v393 = vld [vmem:[#allocation10 + $0x10] sm:$0xff]
    %v394 = vld [vmem:[#allocation10 + $0x18] sm:$0xff]
    %v395 = vld [vmem:[%s6] sm:$0x1]
    %v397 = vlaneseq
    %v398 = vshrl.u32 %v397, 7
    %v399 = vsub.s32 0, %v398
    %v400 = vrot.slane %v395, %v399
    %402 = vmatprep.subr.mxu0 0.0
    %403 = vmatpush1.msra.mxu0 %v391
    %404 = vmatprep.subr.mxu0 0.0
    %405 = vmatpush1.msra.mxu0 %v392
    %406 = vmatprep.subr.mxu0 0.0
    %407 = vmatpush1.msra.mxu0 %v393
    %408 = vmatprep.subr.mxu0 0.0
    %409 = vmatpush1.msra.mxu0 %v394
    %410 = vmatprep.subr.mxu0 0.0
    %411 = vmatpush1.msra.mxu0 0.0
    %412 = vmatprep.subr.mxu0 0.0
    %413 = vmatpush1.msra.mxu0 0.0
    %414 = vmatprep.subr.mxu0 0.0
    %415 = vmatpush1.msra.mxu0 0.0
    %416 = vmatprep.subr.mxu0 0.0
    %417 = vmatpush1.msra.mxu0 0.0
    %418 = vmatprep.subr.mxu0 0.0
    %419 = vmatpush1.msra.mxu0 0.0
    %420 = vmatprep.subr.mxu0 0.0
    %421 = vmatpush1.msra.mxu0 0.0
    %422 = vmatprep.subr.mxu0 0.0
    %423 = vmatpush1.msra.mxu0 0.0
    %424 = vmatprep.subr.mxu0 0.0
    %425 = vmatpush1.msra.mxu0 0.0
    %426 = vmatprep.subr.mxu0 0.0
    %427 = vmatpush1.msra.mxu0 0.0
    %428 = vmatprep.subr.mxu0 0.0
    %429 = vmatpush1.msra.mxu0 0.0
    %430 = vmatprep.subr.mxu0 0.0
    %431 = vmatpush1.msra.mxu0 0.0
    %432 = vmatprep.subr.mxu0 0.0
    %433 = vmatpush1.msra.mxu0 0.0
    %434 = vmatprep.subr.mxu0 0.0
    %435 = vmatpush1.msra.mxu0 0.0
    %436 = vmatprep.subr.mxu0 0.0
    %437 = vmatpush1.msra.mxu0 0.0
    %438 = vmatprep.subr.mxu0 0.0
    %439 = vmatpush1.msra.mxu0 0.0
    %440 = vmatprep.subr.mxu0 0.0
    %441 = vmatpush1.msra.mxu0 0.0
    %442 = vmatprep.subr.mxu0 0.0
    %443 = vmatpush1.msra.mxu0 0.0
    %444 = vmatprep.subr.mxu0 0.0
    %445 = vmatpush1.msra.mxu0 0.0
    %446 = vmatprep.subr.mxu0 0.0
    %447 = vmatpush1.msra.mxu0 0.0
    %448 = vmatprep.subr.mxu0 0.0
    %449 = vmatpush1.msra.mxu0 0.0
    %450 = vmatprep.subr.mxu0 0.0
    %451 = vmatpush1.msra.mxu0 0.0
    %452 = vmatprep.subr.mxu0 0.0
    %453 = vmatpush1.msra.mxu0 0.0
    %454 = vmatprep.subr.mxu0 0.0
    %455 = vmatpush1.msra.mxu0 0.0
    %456 = vmatprep.subr.mxu0 0.0
    %457 = vmatpush1.msra.mxu0 0.0
    %458 = vmatprep.subr.mxu0 0.0
    %459 = vmatpush1.msra.mxu0 0.0
    %460 = vmatprep.subr.mxu0 0.0
    %461 = vmatpush1.msra.mxu0 0.0
    %462 = vmatprep.subr.mxu0 0.0
    %463 = vmatpush1.msra.mxu0 0.0
    %464 = vmatprep.subr.mxu0 0.0
    %465 = vmatpush1.msra.mxu0 0.0
    %466 = vmatprep.mubr.f32.mxu0 0.0
    %467 = vmatmul.mubr.f32.gmra.mrb[0].mxu0 %v214
    %v468 = vpop.f32.mrb[0].mxu0
    %v469 = vadd.f32 %v400, %v468
    %v470 = vpop.f32.mrb[0].mxu0
    %471 = vmatprep.mubr.f32.mxu0 0.0
    %472 = vmatmul.mubr.f32.gmra.mrb[0].mxu0 %v217
    %v473 = vpop.f32.mrb[0].mxu0
    %v474 = vadd.f32 %v400, %v473
    %v475 = vpop.f32.mrb[0].mxu0
    %476 = vdwg.mxu0
    %v478 = vsel %vm131, %v389, 0
    %v481 = vsel %vm131, %v469, 0
    %483 = vmatprep.subr.mxu0 0.0
    %484 = vmatpush1.xpose.msra.mxu0 %v481
    %485 = vmatprep.subr.mxu0 0.0
    %486 = vmatpush1.xpose.msra.mxu0 0.0
    %487 = vmatprep.subr.mxu0 0.0
    %488 = vmatpush1.xpose.msra.mxu0 0.0
    %489 = vmatprep.subr.mxu0 0.0
    %490 = vmatpush1.xpose.msra.mxu0 0.0
    %491 = vmatprep.subr.mxu0 0.0
    %492 = vmatpush1.xpose.msra.mxu0 0.0
    %493 = vmatprep.subr.mxu0 0.0
    %494 = vmatpush1.xpose.msra.mxu0 0.0
    %495 = vmatprep.subr.mxu0 0.0
    %496 = vmatpush1.xpose.msra.mxu0 0.0
    %497 = vmatprep.subr.mxu0 0.0
    %498 = vmatpush1.xpose.msra.mxu0 0.0
    %499 = vmatprep.subr.mxu0 0.0
    %500 = vmatpush1.xpose.msra.mxu0 0.0
    %501 = vmatprep.subr.mxu0 0.0
    %502 = vmatpush1.xpose.msra.mxu0 0.0
    %503 = vmatprep.subr.mxu0 0.0
    %504 = vmatpush1.xpose.msra.mxu0 0.0
    %505 = vmatprep.subr.mxu0 0.0
    %506 = vmatpush1.xpose.msra.mxu0 0.0
    %507 = vmatprep.subr.mxu0 0.0
    %508 = vmatpush1.xpose.msra.mxu0 0.0
    %509 = vmatprep.subr.mxu0 0.0
    %510 = vmatpush1.xpose.msra.mxu0 0.0
    %511 = vmatprep.subr.mxu0 0.0
    %512 = vmatpush1.xpose.msra.mxu0 0.0
    %513 = vmatprep.subr.mxu0 0.0
    %514 = vmatpush1.xpose.msra.mxu0 0.0
    %515 = vmatprep.subr.mxu0 0.0
    %516 = vmatpush1.xpose.msra.mxu0 0.0
    %517 = vmatprep.subr.mxu0 0.0
    %518 = vmatpush1.xpose.msra.mxu0 0.0
    %519 = vmatprep.subr.mxu0 0.0
    %520 = vmatpush1.xpose.msra.mxu0 0.0
    %521 = vmatprep.subr.mxu0 0.0
    %522 = vmatpush1.xpose.msra.mxu0 0.0
    %523 = vmatprep.subr.mxu0 0.0
    %524 = vmatpush1.xpose.msra.mxu0 0.0
    %525 = vmatprep.subr.mxu0 0.0
    %526 = vmatpush1.xpose.msra.mxu0 0.0
    %527 = vmatprep.subr.mxu0 0.0
    %528 = vmatpush1.xpose.msra.mxu0 0.0
    %529 = vmatprep.subr.mxu0 0.0
    %530 = vmatpush1.xpose.msra.mxu0 0.0
    %531 = vmatprep.subr.mxu0 0.0
    %532 = vmatpush1.xpose.msra.mxu0 0.0
    %533 = vmatprep.subr.mxu0 0.0
    %534 = vmatpush1.xpose.msra.mxu0 0.0
    %535 = vmatprep.subr.mxu0 0.0
    %536 = vmatpush1.xpose.msra.mxu0 0.0
    %537 = vmatprep.subr.mxu0 0.0
    %538 = vmatpush1.xpose.msra.mxu0 0.0
    %539 = vmatprep.subr.mxu0 0.0
    %540 = vmatpush1.xpose.msra.mxu0 0.0
    %541 = vmatprep.subr.mxu0 0.0
    %542 = vmatpush1.xpose.msra.mxu0 0.0
    %543 = vmatprep.subr.mxu0 0.0
    %544 = vmatpush1.xpose.msra.mxu0 0.0
    %545 = vmatprep.subr.mxu0 0.0
    %546 = vmatpush1.xpose.msra.mxu0 0.0
    %547 = vmatprep.mubr.f32.mxu0 0.0
    %548 = vmatmul.mubr.f32.gmra.mrb[0].mxu0 %v478
    %v549 = vpop.f32.mrb[0].mxu0
    %v550 = vadd.f32 0.0, %v549
    %v551 = vpop.f32.mrb[0].mxu0
    %552 = vdwg.mxu0
    %v554 = vsel %vm131, %v390, 0
    %v557 = vsel %vm131, %v474, 0
    %559 = vmatprep.subr.mxu0 0.0
    %560 = vmatpush1.xpose.msra.mxu0 %v557
    %561 = vmatprep.subr.mxu0 0.0
    %562 = vmatpush1.xpose.msra.mxu0 0.0
    %563 = vmatprep.subr.mxu0 0.0
    %564 = vmatpush1.xpose.msra.mxu0 0.0
    %565 = vmatprep.subr.mxu0 0.0
    %566 = vmatpush1.xpose.msra.mxu0 0.0
    %567 = vmatprep.subr.mxu0 0.0
    %568 = vmatpush1.xpose.msra.mxu0 0.0
    %569 = vmatprep.subr.mxu0 0.0
    %570 = vmatpush1.xpose.msra.mxu0 0.0
    %571 = vmatprep.subr.mxu0 0.0
    %572 = vmatpush1.xpose.msra.mxu0 0.0
    %573 = vmatprep.subr.mxu0 0.0
    %574 = vmatpush1.xpose.msra.mxu0 0.0
    %575 = vmatprep.subr.mxu0 0.0
    %576 = vmatpush1.xpose.msra.mxu0 0.0
    %577 = vmatprep.subr.mxu0 0.0
    %578 = vmatpush1.xpose.msra.mxu0 0.0
    %579 = vmatprep.subr.mxu0 0.0
    %580 = vmatpush1.xpose.msra.mxu0 0.0
    %581 = vmatprep.subr.mxu0 0.0
    %582 = vmatpush1.xpose.msra.mxu0 0.0
    %583 = vmatprep.subr.mxu0 0.0
    %584 = vmatpush1.xpose.msra.mxu0 0.0
    %585 = vmatprep.subr.mxu0 0.0
    %586 = vmatpush1.xpose.msra.mxu0 0.0
    %587 = vmatprep.subr.mxu0 0.0
    %588 = vmatpush1.xpose.msra.mxu0 0.0
    %589 = vmatprep.subr.mxu0 0.0
    %590 = vmatpush1.xpose.msra.mxu0 0.0
    %591 = vmatprep.subr.mxu0 0.0
    %592 = vmatpush1.xpose.msra.mxu0 0.0
    %593 = vmatprep.subr.mxu0 0.0
    %594 = vmatpush1.xpose.msra.mxu0 0.0
    %595 = vmatprep.subr.mxu0 0.0
    %596 = vmatpush1.xpose.msra.mxu0 0.0
    %597 = vmatprep.subr.mxu0 0.0
    %598 = vmatpush1.xpose.msra.mxu0 0.0
    %599 = vmatprep.subr.mxu0 0.0
    %600 = vmatpush1.xpose.msra.mxu0 0.0
    %601 = vmatprep.subr.mxu0 0.0
    %602 = vmatpush1.xpose.msra.mxu0 0.0
    %603 = vmatprep.subr.mxu0 0.0
    %604 = vmatpush1.xpose.msra.mxu0 0.0
    %605 = vmatprep.subr.mxu0 0.0
    %606 = vmatpush1.xpose.msra.mxu0 0.0
    %607 = vmatprep.subr.mxu0 0.0
    %608 = vmatpush1.xpose.msra.mxu0 0.0
    %609 = vmatprep.subr.mxu0 0.0
    %610 = vmatpush1.xpose.msra.mxu0 0.0
    %611 = vmatprep.subr.mxu0 0.0
    %612 = vmatpush1.xpose.msra.mxu0 0.0
    %613 = vmatprep.subr.mxu0 0.0
    %614 = vmatpush1.xpose.msra.mxu0 0.0
    %615 = vmatprep.subr.mxu0 0.0
    %616 = vmatpush1.xpose.msra.mxu0 0.0
    %617 = vmatprep.subr.mxu0 0.0
    %618 = vmatpush1.xpose.msra.mxu0 0.0
    %619 = vmatprep.subr.mxu0 0.0
    %620 = vmatpush1.xpose.msra.mxu0 0.0
    %621 = vmatprep.subr.mxu0 0.0
    %622 = vmatpush1.xpose.msra.mxu0 0.0
    %623 = vmatprep.mubr.f32.mxu0 0.0
    %624 = vmatmul.mubr.f32.gmra.mrb[0].mxu0 %v554
    %v625 = vpop.f32.mrb[0].mxu0
    %v626 = vadd.f32 0.0, %v625
    %v627 = vpop.f32.mrb[0].mxu0
    %628 = vdwg.mxu0
    %v629 = vmul.f32 %v550, 0.17677669
    %v630 = vmul.f32 %v626, 0.17677669
    %vm631 = vcmask 64512
    %v632 = vsel %vm631, %v629, -inf
    %633 = vmax.xlane.f32.xlu0 %v632
    %v634 = vpop.xlane.xlu0 %633
    %v635 = vsel %vm631, %v630, -inf
    %636 = vmax.xlane.f32.xlu0 %v635
    %v637 = vpop.xlane.xlu0 %636
    %v638 = vsub.f32 %v629, %v634
    %v639 = vsub.f32 %v630, %v637
    %v640 = vmul.f32 %v638, 1.442695
    %v641 = vpow.pop %v640
    %v642 = vmul.f32 %v639, 1.442695
    %v643 = vpow.pop %v642
    %v644 = vsel %vm631, %v641, 0.0
    %645 = vadd.xlane.f32.xlu0 %v644
    %v646 = vpop.xlane.xlu0 %645
    %v647 = vsel %vm631, %v643, 0.0
    %648 = vadd.xlane.f32.xlu0 %v647
    %v649 = vpop.xlane.xlu0 %648
    %v650 = vrcp.pop %v646
    %v651 = vrcp.pop %v649
    %v652 = vmul.f32 %v646, %v650
    %v653 = vmul.f32 %v649, %v651
    %v654 = vsub.f32 2.0, %v652
    %v655 = vsub.f32 2.0, %v653
    %v656 = vmul.f32 %v650, %v654
    %v657 = vmul.f32 %v651, %v655
    %v658 = vmul.f32 %v641, %v656
    %v659 = vmul.f32 %v643, %v657
    %660 = vrot.lane.b32.xlu0 %v469, 96
    %v661 = vpop.permute.xlu0 %660
    %v664 = vsel %vm631, %v658, 0
    %666 = vmatprep.subr.mxu0 0.0
    %667 = vmatpush1.msra.mxu0 %v661
    %668 = vmatprep.subr.mxu0 0.0
    %669 = vmatpush1.msra.mxu0 0.0
    %670 = vmatprep.subr.mxu0 0.0
    %671 = vmatpush1.msra.mxu0 0.0
    %672 = vmatprep.subr.mxu0 0.0
    %673 = vmatpush1.msra.mxu0 0.0
    %674 = vmatprep.subr.mxu0 0.0
    %675 = vmatpush1.msra.mxu0 0.0
    %676 = vmatprep.subr.mxu0 0.0
    %677 = vmatpush1.msra.mxu0 0.0
    %678 = vmatprep.subr.mxu0 0.0
    %679 = vmatpush1.msra.mxu0 0.0
    %680 = vmatprep.subr.mxu0 0.0
    %681 = vmatpush1.msra.mxu0 0.0
    %682 = vmatprep.subr.mxu0 0.0
    %683 = vmatpush1.msra.mxu0 0.0
    %684 = vmatprep.subr.mxu0 0.0
    %685 = vmatpush1.msra.mxu0 0.0
    %686 = vmatprep.subr.mxu0 0.0
    %687 = vmatpush1.msra.mxu0 0.0
    %688 = vmatprep.subr.mxu0 0.0
    %689 = vmatpush1.msra.mxu0 0.0
    %690 = vmatprep.subr.mxu0 0.0
    %691 = vmatpush1.msra.mxu0 0.0
    %692 = vmatprep.subr.mxu0 0.0
    %693 = vmatpush1.msra.mxu0 0.0
    %694 = vmatprep.subr.mxu0 0.0
    %695 = vmatpush1.msra.mxu0 0.0
    %696 = vmatprep.subr.mxu0 0.0
    %697 = vmatpush1.msra.mxu0 0.0
    %698 = vmatprep.subr.mxu0 0.0
    %699 = vmatpush1.msra.mxu0 0.0
    %700 = vmatprep.subr.mxu0 0.0
    %701 = vmatpush1.msra.mxu0 0.0
    %702 = vmatprep.subr.mxu0 0.0
    %703 = vmatpush1.msra.mxu0 0.0
    %704 = vmatprep.subr.mxu0 0.0
    %705 = vmatpush1.msra.mxu0 0.0
    %706 = vmatprep.subr.mxu0 0.0
    %707 = vmatpush1.msra.mxu0 0.0
    %708 = vmatprep.subr.mxu0 0.0
    %709 = vmatpush1.msra.mxu0 0.0
    %710 = vmatprep.subr.mxu0 0.0
    %711 = vmatpush1.msra.mxu0 0.0
    %712 = vmatprep.subr.mxu0 0.0
    %713 = vmatpush1.msra.mxu0 0.0
    %714 = vmatprep.subr.mxu0 0.0
    %715 = vmatpush1.msra.mxu0 0.0
    %716 = vmatprep.subr.mxu0 0.0
    %717 = vmatpush1.msra.mxu0 0.0
    %718 = vmatprep.subr.mxu0 0.0
    %719 = vmatpush1.msra.mxu0 0.0
    %720 = vmatprep.subr.mxu0 0.0
    %721 = vmatpush1.msra.mxu0 0.0
    %722 = vmatprep.subr.mxu0 0.0
    %723 = vmatpush1.msra.mxu0 0.0
    %724 = vmatprep.subr.mxu0 0.0
    %725 = vmatpush1.msra.mxu0 0.0
    %726 = vmatprep.subr.mxu0 0.0
    %727 = vmatpush1.msra.mxu0 0.0
    %728 = vmatprep.subr.mxu0 0.0
    %729 = vmatpush1.msra.mxu0 0.0
    %730 = vmatprep.mubr.f32.mxu0 0.0
    %731 = vmatmul.mubr.f32.gmra.mrb[0].mxu0 %v664
    %v732 = vpop.f32.mrb[0].mxu0
    %v733 = vadd.f32 0.0, %v732
    %v734 = vpop.f32.mrb[0].mxu0
    %735 = vdwg.mxu0
    %736 = vrot.lane.b32.xlu0 %v474, 96
    %v737 = vpop.permute.xlu0 %736
    %v740 = vsel %vm631, %v659, 0
    %742 = vmatprep.subr.mxu0 0.0
    %743 = vmatpush1.msra.mxu0 %v737
    %744 = vmatprep.subr.mxu0 0.0
    %745 = vmatpush1.msra.mxu0 0.0
    %746 = vmatprep.subr.mxu0 0.0
    %747 = vmatpush1.msra.mxu0 0.0
    %748 = vmatprep.subr.mxu0 0.0
    %749 = vmatpush1.msra.mxu0 0.0
    %750 = vmatprep.subr.mxu0 0.0
    %751 = vmatpush1.msra.mxu0 0.0
    %752 = vmatprep.subr.mxu0 0.0
    %753 = vmatpush1.msra.mxu0 0.0
    %754 = vmatprep.subr.mxu0 0.0
    %755 = vmatpush1.msra.mxu0 0.0
    %756 = vmatprep.subr.mxu0 0.0
    %757 = vmatpush1.msra.mxu0 0.0
    %758 = vmatprep.subr.mxu0 0.0
    %759 = vmatpush1.msra.mxu0 0.0
    %760 = vmatprep.subr.mxu0 0.0
    %761 = vmatpush1.msra.mxu0 0.0
    %762 = vmatprep.subr.mxu0 0.0
    %763 = vmatpush1.msra.mxu0 0.0
    %764 = vmatprep.subr.mxu0 0.0
    %765 = vmatpush1.msra.mxu0 0.0
    %766 = vmatprep.subr.mxu0 0.0
    %767 = vmatpush1.msra.mxu0 0.0
    %768 = vmatprep.subr.mxu0 0.0
    %769 = vmatpush1.msra.mxu0 0.0
    %770 = vmatprep.subr.mxu0 0.0
    %771 = vmatpush1.msra.mxu0 0.0
    %772 = vmatprep.subr.mxu0 0.0
    %773 = vmatpush1.msra.mxu0 0.0
    %774 = vmatprep.subr.mxu0 0.0
    %775 = vmatpush1.msra.mxu0 0.0
    %776 = vmatprep.subr.mxu0 0.0
    %777 = vmatpush1.msra.mxu0 0.0
    %778 = vmatprep.subr.mxu0 0.0
    %779 = vmatpush1.msra.mxu0 0.0
    %780 = vmatprep.subr.mxu0 0.0
    %781 = vmatpush1.msra.mxu0 0.0
    %782 = vmatprep.subr.mxu0 0.0
    %783 = vmatpush1.msra.mxu0 0.0
    %784 = vmatprep.subr.mxu0 0.0
    %785 = vmatpush1.msra.mxu0 0.0
    %786 = vmatprep.subr.mxu0 0.0
    %787 = vmatpush1.msra.mxu0 0.0
    %788 = vmatprep.subr.mxu0 0.0
    %789 = vmatpush1.msra.mxu0 0.0
    %790 = vmatprep.subr.mxu0 0.0
    %791 = vmatpush1.msra.mxu0 0.0
    %792 = vmatprep.subr.mxu0 0.0
    %793 = vmatpush1.msra.mxu0 0.0
    %794 = vmatprep.subr.mxu0 0.0
    %795 = vmatpush1.msra.mxu0 0.0
    %796 = vmatprep.subr.mxu0 0.0
    %797 = vmatpush1.msra.mxu0 0.0
    %798 = vmatprep.subr.mxu0 0.0
    %799 = vmatpush1.msra.mxu0 0.0
    %800 = vmatprep.subr.mxu0 0.0
    %801 = vmatpush1.msra.mxu0 0.0
    %802 = vmatprep.subr.mxu0 0.0
    %803 = vmatpush1.msra.mxu0 0.0
    %804 = vmatprep.subr.mxu0 0.0
    %805 = vmatpush1.msra.mxu0 0.0
    %806 = vmatprep.mubr.f32.mxu0 0.0
    %807 = vmatmul.mubr.f32.gmra.mrb[0].mxu0 %v740
    %v808 = vpop.f32.mrb[0].mxu0
    %v809 = vadd.f32 0.0, %v808
    %v810 = vpop.f32.mrb[0].mxu0
    %811 = vdwg.mxu0
    %v812 = vld [vmem:[#allocation11] sm:$0xff]
    %v813 = vld [vmem:[#allocation11 + $0x8] sm:$0xff]
    %v814 = vld [vmem:[#allocation11 + $0x10] sm:$0xff]
    %v815 = vld [vmem:[#allocation11 + $0x18] sm:$0xff]
    %v817 = vsel %vm131, %v733, 0
    %v820 = vsel %vm131, %v809, 0
    %822 = vmatprep.subr.mxu0 0.0
    %823 = vmatpush1.msra.mxu0 %v812
    %824 = vmatprep.subr.mxu0 0.0
    %825 = vmatpush1.msra.mxu0 %v813
    %826 = vmatprep.subr.mxu0 0.0
    %827 = vmatpush1.msra.mxu0 %v814
    %828 = vmatprep.subr.mxu0 0.0
    %829 = vmatpush1.msra.mxu0 %v815
    %830 = vmatprep.subr.mxu0 0.0
    %831 = vmatpush1.msra.mxu0 0.0
    %832 = vmatprep.subr.mxu0 0.0
    %833 = vmatpush1.msra.mxu0 0.0
    %834 = vmatprep.subr.mxu0 0.0
    %835 = vmatpush1.msra.mxu0 0.0
    %836 = vmatprep.subr.mxu0 0.0
    %837 = vmatpush1.msra.mxu0 0.0
    %838 = vmatprep.subr.mxu0 0.0
    %839 = vmatpush1.msra.mxu0 0.0
    %840 = vmatprep.subr.mxu0 0.0
    %841 = vmatpush1.msra.mxu0 0.0
    %842 = vmatprep.subr.mxu0 0.0
    %843 = vmatpush1.msra.mxu0 0.0
    %844 = vmatprep.subr.mxu0 0.0
    %845 = vmatpush1.msra.mxu0 0.0
    %846 = vmatprep.subr.mxu0 0.0
    %847 = vmatpush1.msra.mxu0 0.0
    %848 = vmatprep.subr.mxu0 0.0
    %849 = vmatpush1.msra.mxu0 0.0
    %850 = vmatprep.subr.mxu0 0.0
    %851 = vmatpush1.msra.mxu0 0.0
    %852 = vmatprep.subr.mxu0 0.0
    %853 = vmatpush1.msra.mxu0 0.0
    %854 = vmatprep.subr.mxu0 0.0
    %855 = vmatpush1.msra.mxu0 0.0
    %856 = vmatprep.subr.mxu0 0.0
    %857 = vmatpush1.msra.mxu0 0.0
    %858 = vmatprep.subr.mxu0 0.0
    %859 = vmatpush1.msra.mxu0 0.0
    %860 = vmatprep.subr.mxu0 0.0
    %861 = vmatpush1.msra.mxu0 0.0
    %862 = vmatprep.subr.mxu0 0.0
    %863 = vmatpush1.msra.mxu0 0.0
    %864 = vmatprep.subr.mxu0 0.0
    %865 = vmatpush1.msra.mxu0 0.0
    %866 = vmatprep.subr.mxu0 0.0
    %867 = vmatpush1.msra.mxu0 0.0
    %868 = vmatprep.subr.mxu0 0.0
    %869 = vmatpush1.msra.mxu0 0.0
    %870 = vmatprep.subr.mxu0 0.0
    %871 = vmatpush1.msra.mxu0 0.0
    %872 = vmatprep.subr.mxu0 0.0
    %873 = vmatpush1.msra.mxu0 0.0
    %874 = vmatprep.subr.mxu0 0.0
    %875 = vmatpush1.msra.mxu0 0.0
    %876 = vmatprep.subr.mxu0 0.0
    %877 = vmatpush1.msra.mxu0 0.0
    %878 = vmatprep.subr.mxu0 0.0
    %879 = vmatpush1.msra.mxu0 0.0
    %880 = vmatprep.subr.mxu0 0.0
    %881 = vmatpush1.msra.mxu0 0.0
    %882 = vmatprep.subr.mxu0 0.0
    %883 = vmatpush1.msra.mxu0 0.0
    %884 = vmatprep.subr.mxu0 0.0
    %885 = vmatpush1.msra.mxu0 0.0
    %886 = vmatprep.mubr.f32.mxu0 0.0
    %887 = vmatmul.mubr.f32.gmra.mrb[0].mxu0 %v817
    %v888 = vpop.f32.mrb[0].mxu0
    %v889 = vadd.f32 0.0, %v888
    %v890 = vpop.f32.mrb[0].mxu0
    %891 = vmatprep.mubr.f32.mxu0 0.0
    %892 = vmatmul.mubr.f32.gmra.mrb[0].mxu0 %v820
    %v893 = vpop.f32.mrb[0].mxu0
    %v894 = vadd.f32 0.0, %v893
    %v895 = vpop.f32.mrb[0].mxu0
    %896 = vdwg.mxu0
    %899 = vrot.lane.b32.xlu0 %v889, 64
    %v900 = vpop.permute.xlu0 %899
    %901 = vrot.lane.b32.xlu0 %v894, 64
    %v902 = vpop.permute.xlu0 %901
    %v905 = vadd.f32 %v469, %v900
    %v906 = vadd.f32 %v474, %v902
    %909 = vrot.lane.b32.xlu0 %v905, 64
    %v910 = vpop.permute.xlu0 %909
    %911 = vrot.lane.b32.xlu0 %v906, 64
    %v912 = vpop.permute.xlu0 %911
    %915 = vst.msk [vmem:[#allocation13] sm:$0xff] %vm131, %v910
    %916 = vst.msk [vmem:[#allocation13 + $0x8] sm:$0xff] %vm131, %v912
    %s917 = scalar_lea.vmem [#allocation10], 32
    %v918 = vld [vmem:[%s917] sm:$0xff]
    %v919 = vld [vmem:[%s917 + $0x8] sm:$0xff]
    %v920 = vld [vmem:[%s917 + $0x10] sm:$0xff]
    %v921 = vld [vmem:[%s917 + $0x18] sm:$0xff]
    %s922 = scalar_lea.vmem %s6, 1
    %v923 = vld [vmem:[%s922] sm:$0x1]
    %v925 = vlaneseq
    %v926 = vshrl.u32 %v925, 7
    %v927 = vsub.s32 0, %v926
    %v928 = vrot.slane %v923, %v927
    %930 = vmatprep.subr.mxu0 0.0
    %931 = vmatpush1.msra.mxu0 %v918
    %932 = vmatprep.subr.mxu0 0.0
    %933 = vmatpush1.msra.mxu0 %v919
    %934 = vmatprep.subr.mxu0 0.0
    %935 = vmatpush1.msra.mxu0 %v920
    %936 = vmatprep.subr.mxu0 0.0
    %937 = vmatpush1.msra.mxu0 %v921
    %938 = vmatprep.subr.mxu0 0.0
    %939 = vmatpush1.msra.mxu0 0.0
    %940 = vmatprep.subr.mxu0 0.0
    %941 = vmatpush1.msra.mxu0 0.0
    %942 = vmatprep.subr.mxu0 0.0
    %943 = vmatpush1.msra.mxu0 0.0
    %944 = vmatprep.subr.mxu0 0.0
    %945 = vmatpush1.msra.mxu0 0.0
    %946 = vmatprep.subr.mxu0 0.0
    %947 = vmatpush1.msra.mxu0 0.0
    %948 = vmatprep.subr.mxu0 0.0
    %949 = vmatpush1.msra.mxu0 0.0
    %950 = vmatprep.subr.mxu0 0.0
    %951 = vmatpush1.msra.mxu0 0.0
    %952 = vmatprep.subr.mxu0 0.0
    %953 = vmatpush1.msra.mxu0 0.0
    %954 = vmatprep.subr.mxu0 0.0
    %955 = vmatpush1.msra.mxu0 0.0
    %956 = vmatprep.subr.mxu0 0.0
    %957 = vmatpush1.msra.mxu0 0.0
    %958 = vmatprep.subr.mxu0 0.0
    %959 = vmatpush1.msra.mxu0 0.0
    %960 = vmatprep.subr.mxu0 0.0
    %961 = vmatpush1.msra.mxu0 0.0
    %962 = vmatprep.subr.mxu0 0.0
    %963 = vmatpush1.msra.mxu0 0.0
    %964 = vmatprep.subr.mxu0 0.0
    %965 = vmatpush1.msra.mxu0 0.0
    %966 = vmatprep.subr.mxu0 0.0
    %967 = vmatpush1.msra.mxu0 0.0
    %968 = vmatprep.subr.mxu0 0.0
    %969 = vmatpush1.msra.mxu0 0.0
    %970 = vmatprep.subr.mxu0 0.0
    %971 = vmatpush1.msra.mxu0 0.0
    %972 = vmatprep.subr.mxu0 0.0
    %973 = vmatpush1.msra.mxu0 0.0
    %974 = vmatprep.subr.mxu0 0.0
    %975 = vmatpush1.msra.mxu0 0.0
    %976 = vmatprep.subr.mxu0 0.0
    %977 = vmatpush1.msra.mxu0 0.0
    %978 = vmatprep.subr.mxu0 0.0
    %979 = vmatpush1.msra.mxu0 0.0
    %980 = vmatprep.subr.mxu0 0.0
    %981 = vmatpush1.msra.mxu0 0.0
    %982 = vmatprep.subr.mxu0 0.0
    %983 = vmatpush1.msra.mxu0 0.0
    %984 = vmatprep.subr.mxu0 0.0
    %985 = vmatpush1.msra.mxu0 0.0
    %986 = vmatprep.subr.mxu0 0.0
    %987 = vmatpush1.msra.mxu0 0.0
    %988 = vmatprep.subr.mxu0 0.0
    %989 = vmatpush1.msra.mxu0 0.0
    %990 = vmatprep.subr.mxu0 0.0
    %991 = vmatpush1.msra.mxu0 0.0
    %992 = vmatprep.subr.mxu0 0.0
    %993 = vmatpush1.msra.mxu0 0.0
    %994 = vmatprep.mubr.f32.mxu0 0.0
    %995 = vmatmul.mubr.f32.gmra.mrb[0].mxu0 %v133
    %v996 = vpop.f32.mrb[0].mxu0
    %v997 = vadd.f32 %v928, %v996
    %v998 = vpop.f32.mrb[0].mxu0
    %999 = vmatprep.mubr.f32.mxu0 0.0
    %1000 = vmatmul.mubr.f32.gmra.mrb[0].mxu0 %v136
    %v1001 = vpop.f32.mrb[0].mxu0
    %v1002 = vadd.f32 %v928, %v1001
    %v1003 = vpop.f32.mrb[0].mxu0
    %1004 = vdwg.mxu0
    %v1006 = vsel %vm131, %v997, 0
    %1008 = vmatprep.subr.mxu0 0.0
    %1009 = vmatpush1.xpose.msra.mxu0 %v1006
    %1010 = vmatprep.subr.mxu0 0.0
    %1011 = vmatpush1.xpose.msra.mxu0 0.0
    %1012 = vmatprep.subr.mxu0 0.0
    %1013 = vmatpush1.xpose.msra.mxu0 0.0
    %1014 = vmatprep.subr.mxu0 0.0
    %1015 = vmatpush1.xpose.msra.mxu0 0.0
    %1016 = vmatprep.subr.mxu0 0.0
    %1017 = vmatpush1.xpose.msra.mxu0 0.0
    %1018 = vmatprep.subr.mxu0 0.0
    %1019 = vmatpush1.xpose.msra.mxu0 0.0
    %1020 = vmatprep.subr.mxu0 0.0
    %1021 = vmatpush1.xpose.msra.mxu0 0.0
    %1022 = vmatprep.subr.mxu0 0.0
    %1023 = vmatpush1.xpose.msra.mxu0 0.0
    %1024 = vmatprep.subr.mxu0 0.0
    %1025 = vmatpush1.xpose.msra.mxu0 0.0
    %1026 = vmatprep.subr.mxu0 0.0
    %1027 = vmatpush1.xpose.msra.mxu0 0.0
    %1028 = vmatprep.subr.mxu0 0.0
    %1029 = vmatpush1.xpose.msra.mxu0 0.0
    %1030 = vmatprep.subr.mxu0 0.0
    %1031 = vmatpush1.xpose.msra.mxu0 0.0
    %1032 = vmatprep.subr.mxu0 0.0
    %1033 = vmatpush1.xpose.msra.mxu0 0.0
    %1034 = vmatprep.subr.mxu0 0.0
    %1035 = vmatpush1.xpose.msra.mxu0 0.0
    %1036 = vmatprep.subr.mxu0 0.0
    %1037 = vmatpush1.xpose.msra.mxu0 0.0
    %1038 = vmatprep.subr.mxu0 0.0
    %1039 = vmatpush1.xpose.msra.mxu0 0.0
    %1040 = vmatprep.subr.mxu0 0.0
    %1041 = vmatpush1.xpose.msra.mxu0 0.0
    %1042 = vmatprep.subr.mxu0 0.0
    %1043 = vmatpush1.xpose.msra.mxu0 0.0
    %1044 = vmatprep.subr.mxu0 0.0
    %1045 = vmatpush1.xpose.msra.mxu0 0.0
    %1046 = vmatprep.subr.mxu0 0.0
    %1047 = vmatpush1.xpose.msra.mxu0 0.0
    %1048 = vmatprep.subr.mxu0 0.0
    %1049 = vmatpush1.xpose.msra.mxu0 0.0
    %1050 = vmatprep.subr.mxu0 0.0
    %1051 = vmatpush1.xpose.msra.mxu0 0.0
    %1052 = vmatprep.subr.mxu0 0.0
    %1053 = vmatpush1.xpose.msra.mxu0 0.0
    %1054 = vmatprep.subr.mxu0 0.0
    %1055 = vmatpush1.xpose.msra.mxu0 0.0
    %1056 = vmatprep.subr.mxu0 0.0
    %1057 = vmatpush1.xpose.msra.mxu0 0.0
    %1058 = vmatprep.subr.mxu0 0.0
    %1059 = vmatpush1.xpose.msra.mxu0 0.0
    %1060 = vmatprep.subr.mxu0 0.0
    %1061 = vmatpush1.xpose.msra.mxu0 0.0
    %1062 = vmatprep.subr.mxu0 0.0
    %1063 = vmatpush1.xpose.msra.mxu0 0.0
    %1064 = vmatprep.subr.mxu0 0.0
    %1065 = vmatpush1.xpose.msra.mxu0 0.0
    %1066 = vmatprep.subr.mxu0 0.0
    %1067 = vmatpush1.xpose.msra.mxu0 0.0
    %1068 = vmatprep.subr.mxu0 0.0
    %1069 = vmatpush1.xpose.msra.mxu0 0.0
    %1070 = vmatprep.subr.mxu0 0.0
    %1071 = vmatpush1.xpose.msra.mxu0 0.0
    %1072 = vmatprep.mubr.f32.mxu0 0.0
    %1073 = vmatmul.mubr.f32.gmra.mrb[0].mxu0 %v478
    %v1074 = vpop.f32.mrb[0].mxu0
    %v1075 = vadd.f32 0.0, %v1074
    %v1076 = vpop.f32.mrb[0].mxu0
    %1077 = vdwg.mxu0
    %v1079 = vsel %vm131, %v1002, 0
    %1081 = vmatprep.subr.mxu0 0.0
    %1082 = vmatpush1.xpose.msra.mxu0 %v1079
    %1083 = vmatprep.subr.mxu0 0.0
    %1084 = vmatpush1.xpose.msra.mxu0 0.0
    %1085 = vmatprep.subr.mxu0 0.0
    %1086 = vmatpush1.xpose.msra.mxu0 0.0
    %1087 = vmatprep.subr.mxu0 0.0
    %1088 = vmatpush1.xpose.msra.mxu0 0.0
    %1089 = vmatprep.subr.mxu0 0.0
    %1090 = vmatpush1.xpose.msra.mxu0 0.0
    %1091 = vmatprep.subr.mxu0 0.0
    %1092 = vmatpush1.xpose.msra.mxu0 0.0
    %1093 = vmatprep.subr.mxu0 0.0
    %1094 = vmatpush1.xpose.msra.mxu0 0.0
    %1095 = vmatprep.subr.mxu0 0.0
    %1096 = vmatpush1.xpose.msra.mxu0 0.0
    %1097 = vmatprep.subr.mxu0 0.0
    %1098 = vmatpush1.xpose.msra.mxu0 0.0
    %1099 = vmatprep.subr.mxu0 0.0
    %1100 = vmatpush1.xpose.msra.mxu0 0.0
    %1101 = vmatprep.subr.mxu0 0.0
    %1102 = vmatpush1.xpose.msra.mxu0 0.0
    %1103 = vmatprep.subr.mxu0 0.0
    %1104 = vmatpush1.xpose.msra.mxu0 0.0
    %1105 = vmatprep.subr.mxu0 0.0
    %1106 = vmatpush1.xpose.msra.mxu0 0.0
    %1107 = vmatprep.subr.mxu0 0.0
    %1108 = vmatpush1.xpose.msra.mxu0 0.0
    %1109 = vmatprep.subr.mxu0 0.0
    %1110 = vmatpush1.xpose.msra.mxu0 0.0
    %1111 = vmatprep.subr.mxu0 0.0
    %1112 = vmatpush1.xpose.msra.mxu0 0.0
    %1113 = vmatprep.subr.mxu0 0.0
    %1114 = vmatpush1.xpose.msra.mxu0 0.0
    %1115 = vmatprep.subr.mxu0 0.0
    %1116 = vmatpush1.xpose.msra.mxu0 0.0
    %1117 = vmatprep.subr.mxu0 0.0
    %1118 = vmatpush1.xpose.msra.mxu0 0.0
    %1119 = vmatprep.subr.mxu0 0.0
    %1120 = vmatpush1.xpose.msra.mxu0 0.0
    %1121 = vmatprep.subr.mxu0 0.0
    %1122 = vmatpush1.xpose.msra.mxu0 0.0
    %1123 = vmatprep.subr.mxu0 0.0
    %1124 = vmatpush1.xpose.msra.mxu0 0.0
    %1125 = vmatprep.subr.mxu0 0.0
    %1126 = vmatpush1.xpose.msra.mxu0 0.0
    %1127 = vmatprep.subr.mxu0 0.0
    %1128 = vmatpush1.xpose.msra.mxu0 0.0
    %1129 = vmatprep.subr.mxu0 0.0
    %1130 = vmatpush1.xpose.msra.mxu0 0.0
    %1131 = vmatprep.subr.mxu0 0.0
    %1132 = vmatpush1.xpose.msra.mxu0 0.0
    %1133 = vmatprep.subr.mxu0 0.0
    %1134 = vmatpush1.xpose.msra.mxu0 0.0
    %1135 = vmatprep.subr.mxu0 0.0
    %1136 = vmatpush1.xpose.msra.mxu0 0.0
    %1137 = vmatprep.subr.mxu0 0.0
    %1138 = vmatpush1.xpose.msra.mxu0 0.0
    %1139 = vmatprep.subr.mxu0 0.0
    %1140 = vmatpush1.xpose.msra.mxu0 0.0
    %1141 = vmatprep.subr.mxu0 0.0
    %1142 = vmatpush1.xpose.msra.mxu0 0.0
    %1143 = vmatprep.subr.mxu0 0.0
    %1144 = vmatpush1.xpose.msra.mxu0 0.0
    %1145 = vmatprep.mubr.f32.mxu0 0.0
    %1146 = vmatmul.mubr.f32.gmra.mrb[0].mxu0 %v554
    %v1147 = vpop.f32.mrb[0].mxu0
    %v1148 = vadd.f32 0.0, %v1147
    %v1149 = vpop.f32.mrb[0].mxu0
    %1150 = vdwg.mxu0
    %v1151 = vmul.f32 %v1075, 0.17677669
    %v1152 = vmul.f32 %v1148, 0.17677669
    %v1153 = vsel %vm631, %v1151, -inf
    %1154 = vmax.xlane.f32.xlu0 %v1153
    %v1155 = vpop.xlane.xlu0 %1154
    %v1156 = vsel %vm631, %v1152, -inf
    %1157 = vmax.xlane.f32.xlu0 %v1156
    %v1158 = vpop.xlane.xlu0 %1157
    %v1159 = vsub.f32 %v1151, %v1155
    %v1160 = vsub.f32 %v1152, %v1158
    %v1161 = vmul.f32 %v1159, 1.442695
    %v1162 = vpow.pop %v1161
    %v1163 = vmul.f32 %v1160, 1.442695
    %v1164 = vpow.pop %v1163
    %v1165 = vsel %vm631, %v1162, 0.0
    %1166 = vadd.xlane.f32.xlu0 %v1165
    %v1167 = vpop.xlane.xlu0 %1166
    %v1168 = vsel %vm631, %v1164, 0.0
    %1169 = vadd.xlane.f32.xlu0 %v1168
    %v1170 = vpop.xlane.xlu0 %1169
    %v1171 = vrcp.pop %v1167
    %v1172 = vrcp.pop %v1170
    %v1173 = vmul.f32 %v1167, %v1171
    %v1174 = vmul.f32 %v1170, %v1172
    %v1175 = vsub.f32 2.0, %v1173
    %v1176 = vsub.f32 2.0, %v1174
    %v1177 = vmul.f32 %v1171, %v1175
    %v1178 = vmul.f32 %v1172, %v1176
    %v1179 = vmul.f32 %v1162, %v1177
    %v1180 = vmul.f32 %v1164, %v1178
    %1181 = vrot.lane.b32.xlu0 %v997, 96
    %v1182 = vpop.permute.xlu0 %1181
    %v1185 = vsel %vm631, %v1179, 0
    %1187 = vmatprep.subr.mxu0 0.0
    %1188 = vmatpush1.msra.mxu0 %v1182
    %1189 = vmatprep.subr.mxu0 0.0
    %1190 = vmatpush1.msra.mxu0 0.0
    %1191 = vmatprep.subr.mxu0 0.0
    %1192 = vmatpush1.msra.mxu0 0.0
    %1193 = vmatprep.subr.mxu0 0.0
    %1194 = vmatpush1.msra.mxu0 0.0
    %1195 = vmatprep.subr.mxu0 0.0
    %1196 = vmatpush1.msra.mxu0 0.0
    %1197 = vmatprep.subr.mxu0 0.0
    %1198 = vmatpush1.msra.mxu0 0.0
    %1199 = vmatprep.subr.mxu0 0.0
    %1200 = vmatpush1.msra.mxu0 0.0
    %1201 = vmatprep.subr.mxu0 0.0
    %1202 = vmatpush1.msra.mxu0 0.0
    %1203 = vmatprep.subr.mxu0 0.0
    %1204 = vmatpush1.msra.mxu0 0.0
    %1205 = vmatprep.subr.mxu0 0.0
    %1206 = vmatpush1.msra.mxu0 0.0
    %1207 = vmatprep.subr.mxu0 0.0
    %1208 = vmatpush1.msra.mxu0 0.0
    %1209 = vmatprep.subr.mxu0 0.0
    %1210 = vmatpush1.msra.mxu0 0.0
    %1211 = vmatprep.subr.mxu0 0.0
    %1212 = vmatpush1.msra.mxu0 0.0
    %1213 = vmatprep.subr.mxu0 0.0
    %1214 = vmatpush1.msra.mxu0 0.0
    %1215 = vmatprep.subr.mxu0 0.0
    %1216 = vmatpush1.msra.mxu0 0.0
    %1217 = vmatprep.subr.mxu0 0.0
    %1218 = vmatpush1.msra.mxu0 0.0
    %1219 = vmatprep.subr.mxu0 0.0
    %1220 = vmatpush1.msra.mxu0 0.0
    %1221 = vmatprep.subr.mxu0 0.0
    %1222 = vmatpush1.msra.mxu0 0.0
    %1223 = vmatprep.subr.mxu0 0.0
    %1224 = vmatpush1.msra.mxu0 0.0
    %1225 = vmatprep.subr.mxu0 0.0
    %1226 = vmatpush1.msra.mxu0 0.0
    %1227 = vmatprep.subr.mxu0 0.0
    %1228 = vmatpush1.msra.mxu0 0.0
    %1229 = vmatprep.subr.mxu0 0.0
    %1230 = vmatpush1.msra.mxu0 0.0
    %1231 = vmatprep.subr.mxu0 0.0
    %1232 = vmatpush1.msra.mxu0 0.0
    %1233 = vmatprep.subr.mxu0 0.0
    %1234 = vmatpush1.msra.mxu0 0.0
    %1235 = vmatprep.subr.mxu0 0.0
    %1236 = vmatpush1.msra.mxu0 0.0
    %1237 = vmatprep.subr.mxu0 0.0
    %1238 = vmatpush1.msra.mxu0 0.0
    %1239 = vmatprep.subr.mxu0 0.0
    %1240 = vmatpush1.msra.mxu0 0.0
    %1241 = vmatprep.subr.mxu0 0.0
    %1242 = vmatpush1.msra.mxu0 0.0
    %1243 = vmatprep.subr.mxu0 0.0
    %1244 = vmatpush1.msra.mxu0 0.0
    %1245 = vmatprep.subr.mxu0 0.0
    %1246 = vmatpush1.msra.mxu0 0.0
    %1247 = vmatprep.subr.mxu0 0.0
    %1248 = vmatpush1.msra.mxu0 0.0
    %1249 = vmatprep.subr.mxu0 0.0
    %1250 = vmatpush1.msra.mxu0 0.0
    %1251 = vmatprep.mubr.f32.mxu0 0.0
    %1252 = vmatmul.mubr.f32.gmra.mrb[0].mxu0 %v1185
    %v1253 = vpop.f32.mrb[0].mxu0
    %v1254 = vadd.f32 0.0, %v1253
    %v1255 = vpop.f32.mrb[0].mxu0
    %1256 = vdwg.mxu0
    %1257 = vrot.lane.b32.xlu0 %v1002, 96
    %v1258 = vpop.permute.xlu0 %1257
    %v1261 = vsel %vm631, %v1180, 0
    %1263 = vmatprep.subr.mxu0 0.0
    %1264 = vmatpush1.msra.mxu0 %v1258
    %1265 = vmatprep.subr.mxu0 0.0
    %1266 = vmatpush1.msra.mxu0 0.0
    %1267 = vmatprep.subr.mxu0 0.0
    %1268 = vmatpush1.msra.mxu0 0.0
    %1269 = vmatprep.subr.mxu0 0.0
    %1270 = vmatpush1.msra.mxu0 0.0
    %1271 = vmatprep.subr.mxu0 0.0
    %1272 = vmatpush1.msra.mxu0 0.0
    %1273 = vmatprep.subr.mxu0 0.0
    %1274 = vmatpush1.msra.mxu0 0.0
    %1275 = vmatprep.subr.mxu0 0.0
    %1276 = vmatpush1.msra.mxu0 0.0
    %1277 = vmatprep.subr.mxu0 0.0
    %1278 = vmatpush1.msra.mxu0 0.0
    %1279 = vmatprep.subr.mxu0 0.0
    %1280 = vmatpush1.msra.mxu0 0.0
    %1281 = vmatprep.subr.mxu0 0.0
    %1282 = vmatpush1.msra.mxu0 0.0
    %1283 = vmatprep.subr.mxu0 0.0
    %1284 = vmatpush1.msra.mxu0 0.0
    %1285 = vmatprep.subr.mxu0 0.0
    %1286 = vmatpush1.msra.mxu0 0.0
    %1287 = vmatprep.subr.mxu0 0.0
    %1288 = vmatpush1.msra.mxu0 0.0
    %1289 = vmatprep.subr.mxu0 0.0
    %1290 = vmatpush1.msra.mxu0 0.0
    %1291 = vmatprep.subr.mxu0 0.0
    %1292 = vmatpush1.msra.mxu0 0.0
    %1293 = vmatprep.subr.mxu0 0.0
    %1294 = vmatpush1.msra.mxu0 0.0
    %1295 = vmatprep.subr.mxu0 0.0
    %1296 = vmatpush1.msra.mxu0 0.0
    %1297 = vmatprep.subr.mxu0 0.0
    %1298 = vmatpush1.msra.mxu0 0.0
    %1299 = vmatprep.subr.mxu0 0.0
    %1300 = vmatpush1.msra.mxu0 0.0
    %1301 = vmatprep.subr.mxu0 0.0
    %1302 = vmatpush1.msra.mxu0 0.0
    %1303 = vmatprep.subr.mxu0 0.0
    %1304 = vmatpush1.msra.mxu0 0.0
    %1305 = vmatprep.subr.mxu0 0.0
    %1306 = vmatpush1.msra.mxu0 0.0
    %1307 = vmatprep.subr.mxu0 0.0
    %1308 = vmatpush1.msra.mxu0 0.0
    %1309 = vmatprep.subr.mxu0 0.0
    %1310 = vmatpush1.msra.mxu0 0.0
    %1311 = vmatprep.subr.mxu0 0.0
    %1312 = vmatpush1.msra.mxu0 0.0
    %1313 = vmatprep.subr.mxu0 0.0
    %1314 = vmatpush1.msra.mxu0 0.0
    %1315 = vmatprep.subr.mxu0 0.0
    %1316 = vmatpush1.msra.mxu0 0.0
    %1317 = vmatprep.subr.mxu0 0.0
    %1318 = vmatpush1.msra.mxu0 0.0
    %1319 = vmatprep.subr.mxu0 0.0
    %1320 = vmatpush1.msra.mxu0 0.0
    %1321 = vmatprep.subr.mxu0 0.0
    %1322 = vmatpush1.msra.mxu0 0.0
    %1323 = vmatprep.subr.mxu0 0.0
    %1324 = vmatpush1.msra.mxu0 0.0
    %1325 = vmatprep.subr.mxu0 0.0
    %1326 = vmatpush1.msra.mxu0 0.0
    %1327 = vmatprep.mubr.f32.mxu0 0.0
    %1328 = vmatmul.mubr.f32.gmra.mrb[0].mxu0 %v1261
    %v1329 = vpop.f32.mrb[0].mxu0
    %v1330 = vadd.f32 0.0, %v1329
    %v1331 = vpop.f32.mrb[0].mxu0
    %1332 = vdwg.mxu0
    %s1333 = scalar_lea.vmem [#allocation11], 32
    %v1334 = vld [vmem:[%s1333] sm:$0xff]
    %v1335 = vld [vmem:[%s1333 + $0x8] sm:$0xff]
    %v1336 = vld [vmem:[%s1333 + $0x10] sm:$0xff]
    %v1337 = vld [vmem:[%s1333 + $0x18] sm:$0xff]
    %v1339 = vsel %vm131, %v1254, 0
    %v1342 = vsel %vm131, %v1330, 0
    %1344 = vmatprep.subr.mxu0 0.0
    %1345 = vmatpush1.msra.mxu0 %v1334
    %1346 = vmatprep.subr.mxu0 0.0
    %1347 = vmatpush1.msra.mxu0 %v1335
    %1348 = vmatprep.subr.mxu0 0.0
    %1349 = vmatpush1.msra.mxu0 %v1336
    %1350 = vmatprep.subr.mxu0 0.0
    %1351 = vmatpush1.msra.mxu0 %v1337
    %1352 = vmatprep.subr.mxu0 0.0
    %1353 = vmatpush1.msra.mxu0 0.0
    %1354 = vmatprep.subr.mxu0 0.0
    %1355 = vmatpush1.msra.mxu0 0.0
    %1356 = vmatprep.subr.mxu0 0.0
    %1357 = vmatpush1.msra.mxu0 0.0
    %1358 = vmatprep.subr.mxu0 0.0
    %1359 = vmatpush1.msra.mxu0 0.0
    %1360 = vmatprep.subr.mxu0 0.0
    %1361 = vmatpush1.msra.mxu0 0.0
    %1362 = vmatprep.subr.mxu0 0.0
    %1363 = vmatpush1.msra.mxu0 0.0
    %1364 = vmatprep.subr.mxu0 0.0
    %1365 = vmatpush1.msra.mxu0 0.0
    %1366 = vmatprep.subr.mxu0 0.0
    %1367 = vmatpush1.msra.mxu0 0.0
    %1368 = vmatprep.subr.mxu0 0.0
    %1369 = vmatpush1.msra.mxu0 0.0
    %1370 = vmatprep.subr.mxu0 0.0
    %1371 = vmatpush1.msra.mxu0 0.0
    %1372 = vmatprep.subr.mxu0 0.0
    %1373 = vmatpush1.msra.mxu0 0.0
    %1374 = vmatprep.subr.mxu0 0.0
    %1375 = vmatpush1.msra.mxu0 0.0
    %1376 = vmatprep.subr.mxu0 0.0
    %1377 = vmatpush1.msra.mxu0 0.0
    %1378 = vmatprep.subr.mxu0 0.0
    %1379 = vmatpush1.msra.mxu0 0.0
    %1380 = vmatprep.subr.mxu0 0.0
    %1381 = vmatpush1.msra.mxu0 0.0
    %1382 = vmatprep.subr.mxu0 0.0
    %1383 = vmatpush1.msra.mxu0 0.0
    %1384 = vmatprep.subr.mxu0 0.0
    %1385 = vmatpush1.msra.mxu0 0.0
    %1386 = vmatprep.subr.mxu0 0.0
    %1387 = vmatpush1.msra.mxu0 0.0
    %1388 = vmatprep.subr.mxu0 0.0
    %1389 = vmatpush1.msra.mxu0 0.0
    %1390 = vmatprep.subr.mxu0 0.0
    %1391 = vmatpush1.msra.mxu0 0.0
    %1392 = vmatprep.subr.mxu0 0.0
    %1393 = vmatpush1.msra.mxu0 0.0
    %1394 = vmatprep.subr.mxu0 0.0
    %1395 = vmatpush1.msra.mxu0 0.0
    %1396 = vmatprep.subr.mxu0 0.0
    %1397 = vmatpush1.msra.mxu0 0.0
    %1398 = vmatprep.subr.mxu0 0.0
    %1399 = vmatpush1.msra.mxu0 0.0
    %1400 = vmatprep.subr.mxu0 0.0
    %1401 = vmatpush1.msra.mxu0 0.0
    %1402 = vmatprep.subr.mxu0 0.0
    %1403 = vmatpush1.msra.mxu0 0.0
    %1404 = vmatprep.subr.mxu0 0.0
    %1405 = vmatpush1.msra.mxu0 0.0
    %1406 = vmatprep.subr.mxu0 0.0
    %1407 = vmatpush1.msra.mxu0 0.0
    %1408 = vmatprep.mubr.f32.mxu0 0.0
    %1409 = vmatmul.mubr.f32.gmra.mrb[0].mxu0 %v1339
    %v1410 = vpop.f32.mrb[0].mxu0
    %v1411 = vadd.f32 0.0, %v1410
    %v1412 = vpop.f32.mrb[0].mxu0
    %1413 = vmatprep.mubr.f32.mxu0 0.0
    %1414 = vmatmul.mubr.f32.gmra.mrb[0].mxu0 %v1342
    %v1415 = vpop.f32.mrb[0].mxu0
    %v1416 = vadd.f32 0.0, %v1415
    %v1417 = vpop.f32.mrb[0].mxu0
    %1418 = vdwg.mxu0
    %1421 = vrot.lane.b32.xlu0 %v1411, 64
    %v1422 = vpop.permute.xlu0 %1421
    %1423 = vrot.lane.b32.xlu0 %v1416, 64
    %v1424 = vpop.permute.xlu0 %1423
    %v1427 = vadd.f32 %v997, %v1422
    %v1428 = vadd.f32 %v1002, %v1424
    %1431 = vrot.lane.b32.xlu0 %v1427, 64
    %v1432 = vpop.permute.xlu0 %1431
    %1433 = vrot.lane.b32.xlu0 %v1428, 64
    %v1434 = vpop.permute.xlu0 %1433
    %1437 = vst.msk [vmem:[#allocation14] sm:$0xff] %vm131, %v1432
    %1438 = vst.msk [vmem:[#allocation14 + $0x8] sm:$0xff] %vm131, %v1434
    %s1439 = scalar_lea.vmem [#allocation10], 64
    %v1440 = vld [vmem:[%s1439] sm:$0xff]
    %v1441 = vld [vmem:[%s1439 + $0x8] sm:$0xff]
    %v1442 = vld [vmem:[%s1439 + $0x10] sm:$0xff]
    %v1443 = vld [vmem:[%s1439 + $0x18] sm:$0xff]
    %s1444 = scalar_lea.vmem %s6, 2
    %v1445 = vld [vmem:[%s1444] sm:$0x1]
    %v1447 = vlaneseq
    %v1448 = vshrl.u32 %v1447, 7
    %v1449 = vsub.s32 0, %v1448
    %v1450 = vrot.slane %v1445, %v1449
    %1452 = vmatprep.subr.mxu0 0.0
    %1453 = vmatpush1.msra.mxu0 %v1440
    %1454 = vmatprep.subr.mxu0 0.0
    %1455 = vmatpush1.msra.mxu0 %v1441
    %1456 = vmatprep.subr.mxu0 0.0
    %1457 = vmatpush1.msra.mxu0 %v1442
    %1458 = vmatprep.subr.mxu0 0.0
    %1459 = vmatpush1.msra.mxu0 %v1443
    %1460 = vmatprep.subr.mxu0 0.0
    %1461 = vmatpush1.msra.mxu0 0.0
    %1462 = vmatprep.subr.mxu0 0.0
    %1463 = vmatpush1.msra.mxu0 0.0
    %1464 = vmatprep.subr.mxu0 0.0
    %1465 = vmatpush1.msra.mxu0 0.0
    %1466 = vmatprep.subr.mxu0 0.0
    %1467 = vmatpush1.msra.mxu0 0.0
    %1468 = vmatprep.subr.mxu0 0.0
    %1469 = vmatpush1.msra.mxu0 0.0
    %1470 = vmatprep.subr.mxu0 0.0
    %1471 = vmatpush1.msra.mxu0 0.0
    %1472 = vmatprep.subr.mxu0 0.0
    %1473 = vmatpush1.msra.mxu0 0.0
    %1474 = vmatprep.subr.mxu0 0.0
    %1475 = vmatpush1.msra.mxu0 0.0
    %1476 = vmatprep.subr.mxu0 0.0
    %1477 = vmatpush1.msra.mxu0 0.0
    %1478 = vmatprep.subr.mxu0 0.0
    %1479 = vmatpush1.msra.mxu0 0.0
    %1480 = vmatprep.subr.mxu0 0.0
    %1481 = vmatpush1.msra.mxu0 0.0
    %1482 = vmatprep.subr.mxu0 0.0
    %1483 = vmatpush1.msra.mxu0 0.0
    %1484 = vmatprep.subr.mxu0 0.0
    %1485 = vmatpush1.msra.mxu0 0.0
    %1486 = vmatprep.subr.mxu0 0.0
    %1487 = vmatpush1.msra.mxu0 0.0
    %1488 = vmatprep.subr.mxu0 0.0
    %1489 = vmatpush1.msra.mxu0 0.0
    %1490 = vmatprep.subr.mxu0 0.0
    %1491 = vmatpush1.msra.mxu0 0.0
    %1492 = vmatprep.subr.mxu0 0.0
    %1493 = vmatpush1.msra.mxu0 0.0
    %1494 = vmatprep.subr.mxu0 0.0
    %1495 = vmatpush1.msra.mxu0 0.0
    %1496 = vmatprep.subr.mxu0 0.0
    %1497 = vmatpush1.msra.mxu0 0.0
    %1498 = vmatprep.subr.mxu0 0.0
    %1499 = vmatpush1.msra.mxu0 0.0
    %1500 = vmatprep.subr.mxu0 0.0
    %1501 = vmatpush1.msra.mxu0 0.0
    %1502 = vmatprep.subr.mxu0 0.0
    %1503 = vmatpush1.msra.mxu0 0.0
    %1504 = vmatprep.subr.mxu0 0.0
    %1505 = vmatpush1.msra.mxu0 0.0
    %1506 = vmatprep.subr.mxu0 0.0
    %1507 = vmatpush1.msra.mxu0 0.0
    %1508 = vmatprep.subr.mxu0 0.0
    %1509 = vmatpush1.msra.mxu0 0.0
    %1510 = vmatprep.subr.mxu0 0.0
    %1511 = vmatpush1.msra.mxu0 0.0
    %1512 = vmatprep.subr.mxu0 0.0
    %1513 = vmatpush1.msra.mxu0 0.0
    %1514 = vmatprep.subr.mxu0 0.0
    %1515 = vmatpush1.msra.mxu0 0.0
    %1516 = vmatprep.mubr.f32.mxu0 0.0
    %1517 = vmatmul.mubr.f32.gmra.mrb[0].mxu0 %v300
    %v1518 = vpop.f32.mrb[0].mxu0
    %v1519 = vadd.f32 %v1450, %v1518
    %v1520 = vpop.f32.mrb[0].mxu0
    %1521 = vmatprep.mubr.f32.mxu0 0.0
    %1522 = vmatmul.mubr.f32.gmra.mrb[0].mxu0 %v303
    %v1523 = vpop.f32.mrb[0].mxu0
    %v1524 = vadd.f32 %v1450, %v1523
    %v1525 = vpop.f32.mrb[0].mxu0
    %1526 = vdwg.mxu0
    %v1528 = vsel %vm131, %v1519, 0
    %1530 = vmatprep.subr.mxu0 0.0
    %1531 = vmatpush1.xpose.msra.mxu0 %v1528
    %1532 = vmatprep.subr.mxu0 0.0
    %1533 = vmatpush1.xpose.msra.mxu0 0.0
    %1534 = vmatprep.subr.mxu0 0.0
    %1535 = vmatpush1.xpose.msra.mxu0 0.0
    %1536 = vmatprep.subr.mxu0 0.0
    %1537 = vmatpush1.xpose.msra.mxu0 0.0
    %1538 = vmatprep.subr.mxu0 0.0
    %1539 = vmatpush1.xpose.msra.mxu0 0.0
    %1540 = vmatprep.subr.mxu0 0.0
    %1541 = vmatpush1.xpose.msra.mxu0 0.0
    %1542 = vmatprep.subr.mxu0 0.0
    %1543 = vmatpush1.xpose.msra.mxu0 0.0
    %1544 = vmatprep.subr.mxu0 0.0
    %1545 = vmatpush1.xpose.msra.mxu0 0.0
    %1546 = vmatprep.subr.mxu0 0.0
    %1547 = vmatpush1.xpose.msra.mxu0 0.0
    %1548 = vmatprep.subr.mxu0 0.0
    %1549 = vmatpush1.xpose.msra.mxu0 0.0
    %1550 = vmatprep.subr.mxu0 0.0
    %1551 = vmatpush1.xpose.msra.mxu0 0.0
    %1552 = vmatprep.subr.mxu0 0.0
    %1553 = vmatpush1.xpose.msra.mxu0 0.0
    %1554 = vmatprep.subr.mxu0 0.0
    %1555 = vmatpush1.xpose.msra.mxu0 0.0
    %1556 = vmatprep.subr.mxu0 0.0
    %1557 = vmatpush1.xpose.msra.mxu0 0.0
    %1558 = vmatprep.subr.mxu0 0.0
    %1559 = vmatpush1.xpose.msra.mxu0 0.0
    %1560 = vmatprep.subr.mxu0 0.0
    %1561 = vmatpush1.xpose.msra.mxu0 0.0
    %1562 = vmatprep.subr.mxu0 0.0
    %1563 = vmatpush1.xpose.msra.mxu0 0.0
    %1564 = vmatprep.subr.mxu0 0.0
    %1565 = vmatpush1.xpose.msra.mxu0 0.0
    %1566 = vmatprep.subr.mxu0 0.0
    %1567 = vmatpush1.xpose.msra.mxu0 0.0
    %1568 = vmatprep.subr.mxu0 0.0
    %1569 = vmatpush1.xpose.msra.mxu0 0.0
    %1570 = vmatprep.subr.mxu0 0.0
    %1571 = vmatpush1.xpose.msra.mxu0 0.0
    %1572 = vmatprep.subr.mxu0 0.0
    %1573 = vmatpush1.xpose.msra.mxu0 0.0
    %1574 = vmatprep.subr.mxu0 0.0
    %1575 = vmatpush1.xpose.msra.mxu0 0.0
    %1576 = vmatprep.subr.mxu0 0.0
    %1577 = vmatpush1.xpose.msra.mxu0 0.0
    %1578 = vmatprep.subr.mxu0 0.0
    %1579 = vmatpush1.xpose.msra.mxu0 0.0
    %1580 = vmatprep.subr.mxu0 0.0
    %1581 = vmatpush1.xpose.msra.mxu0 0.0
    %1582 = vmatprep.subr.mxu0 0.0
    %1583 = vmatpush1.xpose.msra.mxu0 0.0
    %1584 = vmatprep.subr.mxu0 0.0
    %1585 = vmatpush1.xpose.msra.mxu0 0.0
    %1586 = vmatprep.subr.mxu0 0.0
    %1587 = vmatpush1.xpose.msra.mxu0 0.0
    %1588 = vmatprep.subr.mxu0 0.0
    %1589 = vmatpush1.xpose.msra.mxu0 0.0
    %1590 = vmatprep.subr.mxu0 0.0
    %1591 = vmatpush1.xpose.msra.mxu0 0.0
    %1592 = vmatprep.subr.mxu0 0.0
    %1593 = vmatpush1.xpose.msra.mxu0 0.0
    %1594 = vmatprep.mubr.f32.mxu0 0.0
    %1595 = vmatmul.mubr.f32.gmra.mrb[0].mxu0 %v478
    %v1596 = vpop.f32.mrb[0].mxu0
    %v1597 = vadd.f32 0.0, %v1596
    %v1598 = vpop.f32.mrb[0].mxu0
    %1599 = vdwg.mxu0
    %v1601 = vsel %vm131, %v1524, 0
    %1603 = vmatprep.subr.mxu0 0.0
    %1604 = vmatpush1.xpose.msra.mxu0 %v1601
    %1605 = vmatprep.subr.mxu0 0.0
    %1606 = vmatpush1.xpose.msra.mxu0 0.0
    %1607 = vmatprep.subr.mxu0 0.0
    %1608 = vmatpush1.xpose.msra.mxu0 0.0
    %1609 = vmatprep.subr.mxu0 0.0
    %1610 = vmatpush1.xpose.msra.mxu0 0.0
    %1611 = vmatprep.subr.mxu0 0.0
    %1612 = vmatpush1.xpose.msra.mxu0 0.0
    %1613 = vmatprep.subr.mxu0 0.0
    %1614 = vmatpush1.xpose.msra.mxu0 0.0
    %1615 = vmatprep.subr.mxu0 0.0
    %1616 = vmatpush1.xpose.msra.mxu0 0.0
    %1617 = vmatprep.subr.mxu0 0.0
    %1618 = vmatpush1.xpose.msra.mxu0 0.0
    %1619 = vmatprep.subr.mxu0 0.0
    %1620 = vmatpush1.xpose.msra.mxu0 0.0
    %1621 = vmatprep.subr.mxu0 0.0
    %1622 = vmatpush1.xpose.msra.mxu0 0.0
    %1623 = vmatprep.subr.mxu0 0.0
    %1624 = vmatpush1.xpose.msra.mxu0 0.0
    %1625 = vmatprep.subr.mxu0 0.0
    %1626 = vmatpush1.xpose.msra.mxu0 0.0
    %1627 = vmatprep.subr.mxu0 0.0
    %1628 = vmatpush1.xpose.msra.mxu0 0.0
    %1629 = vmatprep.subr.mxu0 0.0
    %1630 = vmatpush1.xpose.msra.mxu0 0.0
    %1631 = vmatprep.subr.mxu0 0.0
    %1632 = vmatpush1.xpose.msra.mxu0 0.0
    %1633 = vmatprep.subr.mxu0 0.0
    %1634 = vmatpush1.xpose.msra.mxu0 0.0
    %1635 = vmatprep.subr.mxu0 0.0
    %1636 = vmatpush1.xpose.msra.mxu0 0.0
    %1637 = vmatprep.subr.mxu0 0.0
    %1638 = vmatpush1.xpose.msra.mxu0 0.0
    %1639 = vmatprep.subr.mxu0 0.0
    %1640 = vmatpush1.xpose.msra.mxu0 0.0
    %1641 = vmatprep.subr.mxu0 0.0
    %1642 = vmatpush1.xpose.msra.mxu0 0.0
    %1643 = vmatprep.subr.mxu0 0.0
    %1644 = vmatpush1.xpose.msra.mxu0 0.0
    %1645 = vmatprep.subr.mxu0 0.0
    %1646 = vmatpush1.xpose.msra.mxu0 0.0
    %1647 = vmatprep.subr.mxu0 0.0
    %1648 = vmatpush1.xpose.msra.mxu0 0.0
    %1649 = vmatprep.subr.mxu0 0.0
    %1650 = vmatpush1.xpose.msra.mxu0 0.0
    %1651 = vmatprep.subr.mxu0 0.0
    %1652 = vmatpush1.xpose.msra.mxu0 0.0
    %1653 = vmatprep.subr.mxu0 0.0
    %1654 = vmatpush1.xpose.msra.mxu0 0.0
    %1655 = vmatprep.subr.mxu0 0.0
    %1656 = vmatpush1.xpose.msra.mxu0 0.0
    %1657 = vmatprep.subr.mxu0 0.0
    %1658 = vmatpush1.xpose.msra.mxu0 0.0
    %1659 = vmatprep.subr.mxu0 0.0
    %1660 = vmatpush1.xpose.msra.mxu0 0.0
    %1661 = vmatprep.subr.mxu0 0.0
    %1662 = vmatpush1.xpose.msra.mxu0 0.0
    %1663 = vmatprep.subr.mxu0 0.0
    %1664 = vmatpush1.xpose.msra.mxu0 0.0
    %1665 = vmatprep.subr.mxu0 0.0
    %1666 = vmatpush1.xpose.msra.mxu0 0.0
    %1667 = vmatprep.mubr.f32.mxu0 0.0
    %1668 = vmatmul.mubr.f32.gmra.mrb[0].mxu0 %v554
    %v1669 = vpop.f32.mrb[0].mxu0
    %v1670 = vadd.f32 0.0, %v1669
    %v1671 = vpop.f32.mrb[0].mxu0
    %1672 = vdwg.mxu0
    %v1673 = vmul.f32 %v1597, 0.17677669
    %v1674 = vmul.f32 %v1670, 0.17677669
    %v1675 = vsel %vm631, %v1673, -inf
    %1676 = vmax.xlane.f32.xlu0 %v1675
    %v1677 = vpop.xlane.xlu0 %1676
    %v1678 = vsel %vm631, %v1674, -inf
    %1679 = vmax.xlane.f32.xlu0 %v1678
    %v1680 = vpop.xlane.xlu0 %1679
    %v1681 = vsub.f32 %v1673, %v1677
    %v1682 = vsub.f32 %v1674, %v1680
    %v1683 = vmul.f32 %v1681, 1.442695
    %v1684 = vpow.pop %v1683
    %v1685 = vmul.f32 %v1682, 1.442695
    %v1686 = vpow.pop %v1685
    %v1687 = vsel %vm631, %v1684, 0.0
    %1688 = vadd.xlane.f32.xlu0 %v1687
    %v1689 = vpop.xlane.xlu0 %1688
    %v1690 = vsel %vm631, %v1686, 0.0
    %1691 = vadd.xlane.f32.xlu0 %v1690
    %v1692 = vpop.xlane.xlu0 %1691
    %v1693 = vrcp.pop %v1689
    %v1694 = vrcp.pop %v1692
    %v1695 = vmul.f32 %v1689, %v1693
    %v1696 = vmul.f32 %v1692, %v1694
    %v1697 = vsub.f32 2.0, %v1695
    %v1698 = vsub.f32 2.0, %v1696
    %v1699 = vmul.f32 %v1693, %v1697
    %v1700 = vmul.f32 %v1694, %v1698
    %v1701 = vmul.f32 %v1684, %v1699
    %v1702 = vmul.f32 %v1686, %v1700
    %1703 = vrot.lane.b32.xlu0 %v1519, 96
    %v1704 = vpop.permute.xlu0 %1703
    %v1707 = vsel %vm631, %v1701, 0
    %1709 = vmatprep.subr.mxu0 0.0
    %1710 = vmatpush1.msra.mxu0 %v1704
    %1711 = vmatprep.subr.mxu0 0.0
    %1712 = vmatpush1.msra.mxu0 0.0
    %1713 = vmatprep.subr.mxu0 0.0
    %1714 = vmatpush1.msra.mxu0 0.0
    %1715 = vmatprep.subr.mxu0 0.0
    %1716 = vmatpush1.msra.mxu0 0.0
    %1717 = vmatprep.subr.mxu0 0.0
    %1718 = vmatpush1.msra.mxu0 0.0
    %1719 = vmatprep.subr.mxu0 0.0
    %1720 = vmatpush1.msra.mxu0 0.0
    %1721 = vmatprep.subr.mxu0 0.0
    %1722 = vmatpush1.msra.mxu0 0.0
    %1723 = vmatprep.subr.mxu0 0.0
    %1724 = vmatpush1.msra.mxu0 0.0
    %1725 = vmatprep.subr.mxu0 0.0
    %1726 = vmatpush1.msra.mxu0 0.0
    %1727 = vmatprep.subr.mxu0 0.0
    %1728 = vmatpush1.msra.mxu0 0.0
    %1729 = vmatprep.subr.mxu0 0.0
    %1730 = vmatpush1.msra.mxu0 0.0
    %1731 = vmatprep.subr.mxu0 0.0
    %1732 = vmatpush1.msra.mxu0 0.0
    %1733 = vmatprep.subr.mxu0 0.0
    %1734 = vmatpush1.msra.mxu0 0.0
    %1735 = vmatprep.subr.mxu0 0.0
    %1736 = vmatpush1.msra.mxu0 0.0
    %1737 = vmatprep.subr.mxu0 0.0
    %1738 = vmatpush1.msra.mxu0 0.0
    %1739 = vmatprep.subr.mxu0 0.0
    %1740 = vmatpush1.msra.mxu0 0.0
    %1741 = vmatprep.subr.mxu0 0.0
    %1742 = vmatpush1.msra.mxu0 0.0
    %1743 = vmatprep.subr.mxu0 0.0
    %1744 = vmatpush1.msra.mxu0 0.0
    %1745 = vmatprep.subr.mxu0 0.0
    %1746 = vmatpush1.msra.mxu0 0.0
    %1747 = vmatprep.subr.mxu0 0.0
    %1748 = vmatpush1.msra.mxu0 0.0
    %1749 = vmatprep.subr.mxu0 0.0
    %1750 = vmatpush1.msra.mxu0 0.0
    %1751 = vmatprep.subr.mxu0 0.0
    %1752 = vmatpush1.msra.mxu0 0.0
    %1753 = vmatprep.subr.mxu0 0.0
    %1754 = vmatpush1.msra.mxu0 0.0
    %1755 = vmatprep.subr.mxu0 0.0
    %1756 = vmatpush1.msra.mxu0 0.0
    %1757 = vmatprep.subr.mxu0 0.0
    %1758 = vmatpush1.msra.mxu0 0.0
    %1759 = vmatprep.subr.mxu0 0.0
    %1760 = vmatpush1.msra.mxu0 0.0
    %1761 = vmatprep.subr.mxu0 0.0
    %1762 = vmatpush1.msra.mxu0 0.0
    %1763 = vmatprep.subr.mxu0 0.0
    %1764 = vmatpush1.msra.mxu0 0.0
    %1765 = vmatprep.subr.mxu0 0.0
    %1766 = vmatpush1.msra.mxu0 0.0
    %1767 = vmatprep.subr.mxu0 0.0
    %1768 = vmatpush1.msra.mxu0 0.0
    %1769 = vmatprep.subr.mxu0 0.0
    %1770 = vmatpush1.msra.mxu0 0.0
    %1771 = vmatprep.subr.mxu0 0.0
    %1772 = vmatpush1.msra.mxu0 0.0
    %1773 = vmatprep.mubr.f32.mxu0 0.0
    %1774 = vmatmul.mubr.f32.gmra.mrb[0].mxu0 %v1707
    %v1775 = vpop.f32.mrb[0].mxu0
    %v1776 = vadd.f32 0.0, %v1775
    %v1777 = vpop.f32.mrb[0].mxu0
    %1778 = vdwg.mxu0
    %1779 = vrot.lane.b32.xlu0 %v1524, 96
    %v1780 = vpop.permute.xlu0 %1779
    %v1783 = vsel %vm631, %v1702, 0
    %1785 = vmatprep.subr.mxu0 0.0
    %1786 = vmatpush1.msra.mxu0 %v1780
    %1787 = vmatprep.subr.mxu0 0.0
    %1788 = vmatpush1.msra.mxu0 0.0
    %1789 = vmatprep.subr.mxu0 0.0
    %1790 = vmatpush1.msra.mxu0 0.0
    %1791 = vmatprep.subr.mxu0 0.0
    %1792 = vmatpush1.msra.mxu0 0.0
    %1793 = vmatprep.subr.mxu0 0.0
    %1794 = vmatpush1.msra.mxu0 0.0
    %1795 = vmatprep.subr.mxu0 0.0
    %1796 = vmatpush1.msra.mxu0 0.0
    %1797 = vmatprep.subr.mxu0 0.0
    %1798 = vmatpush1.msra.mxu0 0.0
    %1799 = vmatprep.subr.mxu0 0.0
    %1800 = vmatpush1.msra.mxu0 0.0
    %1801 = vmatprep.subr.mxu0 0.0
    %1802 = vmatpush1.msra.mxu0 0.0
    %1803 = vmatprep.subr.mxu0 0.0
    %1804 = vmatpush1.msra.mxu0 0.0
    %1805 = vmatprep.subr.mxu0 0.0
    %1806 = vmatpush1.msra.mxu0 0.0
    %1807 = vmatprep.subr.mxu0 0.0
    %1808 = vmatpush1.msra.mxu0 0.0
    %1809 = vmatprep.subr.mxu0 0.0
    %1810 = vmatpush1.msra.mxu0 0.0
    %1811 = vmatprep.subr.mxu0 0.0
    %1812 = vmatpush1.msra.mxu0 0.0
    %1813 = vmatprep.subr.mxu0 0.0
    %1814 = vmatpush1.msra.mxu0 0.0
    %1815 = vmatprep.subr.mxu0 0.0
    %1816 = vmatpush1.msra.mxu0 0.0
    %1817 = vmatprep.subr.mxu0 0.0
    %1818 = vmatpush1.msra.mxu0 0.0
    %1819 = vmatprep.subr.mxu0 0.0
    %1820 = vmatpush1.msra.mxu0 0.0
    %1821 = vmatprep.subr.mxu0 0.0
    %1822 = vmatpush1.msra.mxu0 0.0
    %1823 = vmatprep.subr.mxu0 0.0
    %1824 = vmatpush1.msra.mxu0 0.0
    %1825 = vmatprep.subr.mxu0 0.0
    %1826 = vmatpush1.msra.mxu0 0.0
    %1827 = vmatprep.subr.mxu0 0.0
    %1828 = vmatpush1.msra.mxu0 0.0
    %1829 = vmatprep.subr.mxu0 0.0
    %1830 = vmatpush1.msra.mxu0 0.0
    %1831 = vmatprep.subr.mxu0 0.0
    %1832 = vmatpush1.msra.mxu0 0.0
    %1833 = vmatprep.subr.mxu0 0.0
    %1834 = vmatpush1.msra.mxu0 0.0
    %1835 = vmatprep.subr.mxu0 0.0
    %1836 = vmatpush1.msra.mxu0 0.0
    %1837 = vmatprep.subr.mxu0 0.0
    %1838 = vmatpush1.msra.mxu0 0.0
    %1839 = vmatprep.subr.mxu0 0.0
    %1840 = vmatpush1.msra.mxu0 0.0
    %1841 = vmatprep.subr.mxu0 0.0
    %1842 = vmatpush1.msra.mxu0 0.0
    %1843 = vmatprep.subr.mxu0 0.0
    %1844 = vmatpush1.msra.mxu0 0.0
    %1845 = vmatprep.subr.mxu0 0.0
    %1846 = vmatpush1.msra.mxu0 0.0
    %1847 = vmatprep.subr.mxu0 0.0
    %1848 = vmatpush1.msra.mxu0 0.0
    %1849 = vmatprep.mubr.f32.mxu0 0.0
    %1850 = vmatmul.mubr.f32.gmra.mrb[0].mxu0 %v1783
    %v1851 = vpop.f32.mrb[0].mxu0
    %v1852 = vadd.f32 0.0, %v1851
    %v1853 = vpop.f32.mrb[0].mxu0
    %1854 = vdwg.mxu0
    %s1855 = scalar_lea.vmem [#allocation11], 64
    %v1856 = vld [vmem:[%s1855] sm:$0xff]
    %v1857 = vld [vmem:[%s1855 + $0x8] sm:$0xff]
    %v1858 = vld [vmem:[%s1855 + $0x10] sm:$0xff]
    %v1859 = vld [vmem:[%s1855 + $0x18] sm:$0xff]
    %v1861 = vsel %vm131, %v1776, 0
    %v1864 = vsel %vm131, %v1852, 0
    %1866 = vmatprep.subr.mxu0 0.0
    %1867 = vmatpush1.msra.mxu0 %v1856
    %1868 = vmatprep.subr.mxu0 0.0
    %1869 = vmatpush1.msra.mxu0 %v1857
    %1870 = vmatprep.subr.mxu0 0.0
    %1871 = vmatpush1.msra.mxu0 %v1858
    %1872 = vmatprep.subr.mxu0 0.0
    %1873 = vmatpush1.msra.mxu0 %v1859
    %1874 = vmatprep.subr.mxu0 0.0
    %1875 = vmatpush1.msra.mxu0 0.0
    %1876 = vmatprep.subr.mxu0 0.0
    %1877 = vmatpush1.msra.mxu0 0.0
    %1878 = vmatprep.subr.mxu0 0.0
    %1879 = vmatpush1.msra.mxu0 0.0
    %1880 = vmatprep.subr.mxu0 0.0
    %1881 = vmatpush1.msra.mxu0 0.0
    %1882 = vmatprep.subr.mxu0 0.0
    %1883 = vmatpush1.msra.mxu0 0.0
    %1884 = vmatprep.subr.mxu0 0.0
    %1885 = vmatpush1.msra.mxu0 0.0
    %1886 = vmatprep.subr.mxu0 0.0
    %1887 = vmatpush1.msra.mxu0 0.0
    %1888 = vmatprep.subr.mxu0 0.0
    %1889 = vmatpush1.msra.mxu0 0.0
    %1890 = vmatprep.subr.mxu0 0.0
    %1891 = vmatpush1.msra.mxu0 0.0
    %1892 = vmatprep.subr.mxu0 0.0
    %1893 = vmatpush1.msra.mxu0 0.0
    %1894 = vmatprep.subr.mxu0 0.0
    %1895 = vmatpush1.msra.mxu0 0.0
    %1896 = vmatprep.subr.mxu0 0.0
    %1897 = vmatpush1.msra.mxu0 0.0
    %1898 = vmatprep.subr.mxu0 0.0
    %1899 = vmatpush1.msra.mxu0 0.0
    %1900 = vmatprep.subr.mxu0 0.0
    %1901 = vmatpush1.msra.mxu0 0.0
    %1902 = vmatprep.subr.mxu0 0.0
    %1903 = vmatpush1.msra.mxu0 0.0
    %1904 = vmatprep.subr.mxu0 0.0
    %1905 = vmatpush1.msra.mxu0 0.0
    %1906 = vmatprep.subr.mxu0 0.0
    %1907 = vmatpush1.msra.mxu0 0.0
    %1908 = vmatprep.subr.mxu0 0.0
    %1909 = vmatpush1.msra.mxu0 0.0
    %1910 = vmatprep.subr.mxu0 0.0
    %1911 = vmatpush1.msra.mxu0 0.0
    %1912 = vmatprep.subr.mxu0 0.0
    %1913 = vmatpush1.msra.mxu0 0.0
    %1914 = vmatprep.subr.mxu0 0.0
    %1915 = vmatpush1.msra.mxu0 0.0
    %1916 = vmatprep.subr.mxu0 0.0
    %1917 = vmatpush1.msra.mxu0 0.0
    %1918 = vmatprep.subr.mxu0 0.0
    %1919 = vmatpush1.msra.mxu0 0.0
    %1920 = vmatprep.subr.mxu0 0.0
    %1921 = vmatpush1.msra.mxu0 0.0
    %1922 = vmatprep.subr.mxu0 0.0
    %1923 = vmatpush1.msra.mxu0 0.0
    %1924 = vmatprep.subr.mxu0 0.0
    %1925 = vmatpush1.msra.mxu0 0.0
    %1926 = vmatprep.subr.mxu0 0.0
    %1927 = vmatpush1.msra.mxu0 0.0
    %1928 = vmatprep.subr.mxu0 0.0
    %1929 = vmatpush1.msra.mxu0 0.0
    %1930 = vmatprep.mubr.f32.mxu0 0.0
    %1931 = vmatmul.mubr.f32.gmra.mrb[0].mxu0 %v1861
    %v1932 = vpop.f32.mrb[0].mxu0
    %v1933 = vadd.f32 0.0, %v1932
    %v1934 = vpop.f32.mrb[0].mxu0
    %1935 = vmatprep.mubr.f32.mxu0 0.0
    %1936 = vmatmul.mubr.f32.gmra.mrb[0].mxu0 %v1864
    %v1937 = vpop.f32.mrb[0].mxu0
    %v1938 = vadd.f32 0.0, %v1937
    %v1939 = vpop.f32.mrb[0].mxu0
    %1940 = vdwg.mxu0
    %1943 = vrot.lane.b32.xlu0 %v1933, 64
    %v1944 = vpop.permute.xlu0 %1943
    %1945 = vrot.lane.b32.xlu0 %v1938, 64
    %v1946 = vpop.permute.xlu0 %1945
    %v1949 = vadd.f32 %v1519, %v1944
    %v1950 = vadd.f32 %v1524, %v1946
    %1953 = vrot.lane.b32.xlu0 %v1949, 64
    %v1954 = vpop.permute.xlu0 %1953
    %1955 = vrot.lane.b32.xlu0 %v1950, 64
    %v1956 = vpop.permute.xlu0 %1955
    %1959 = vst.msk [vmem:[#allocation16] sm:$0xff] %vm131, %v1954
    %1960 = vst.msk [vmem:[#allocation16 + $0x8] sm:$0xff] %vm131, %v1956
    // Predicated region
    $region58: #{tpu_custom_call.1} parent=1 // pred_check
      _
    $region59: #{tpu_custom_call.1} parent=1 // pred_check_branch
      %1962 = sbr.rel (0) target = $region61
    $region60: #{tpu_custom_call.1} parent=1 // pred_region
      %s1964 = ssub.s32 256, 256
      %1965 = vsyncadd [#allocation4], %s1964
      %s1966 = sshll.u32 [#allocation13], 4
      %s1967 = int_to_ptr.vmem [resolvable:$true] %s1966
      %1972 = dma.vmem_to_hbm [thread:$0]  %s1967, 256, %s8, [#allocation4], 128, 128, 8
    $region61: #{tpu_custom_call.1} parent=1 // pred_fallthru
      _
    // Predicated region
    $region62: #{tpu_custom_call.1} parent=1 // pred_check
      _
    $region63: #{tpu_custom_call.1} parent=1 // pred_check_branch
      %1974 = sbr.rel (0) target = $region65
    $region64: #{tpu_custom_call.1} parent=1 // pred_region
      %s1976 = ssub.s32 256, 256
      %1977 = vsyncadd [#allocation15], %s1976
      %s1978 = sshll.u32 [#allocation14], 4
      %s1979 = int_to_ptr.vmem [resolvable:$true] %s1978
      %1984 = dma.vmem_to_hbm [thread:$0]  %s1979, 256, %s9, [#allocation15], 128, 128, 8
    $region65: #{tpu_custom_call.1} parent=1 // pred_fallthru
      _
    // Predicated region
    $region66: #{tpu_custom_call.1} parent=1 // pred_check
      _
    $region67: #{tpu_custom_call.1} parent=1 // pred_check_branch
      %1986 = sbr.rel (0) target = $region69
    $region68: #{tpu_custom_call.1} parent=1 // pred_region
      %s1988 = ssub.s32 256, 256
      %1989 = vsyncadd [#allocation15], %s1988
      %s1990 = sshll.u32 [#allocation16], 4
      %s1991 = int_to_ptr.vmem [resolvable:$true] %s1990
      %1996 = dma.vmem_to_hbm [thread:$0]  %s1991, 256, %s10, [#allocation15], 128, 128, 8
    $region69: #{tpu_custom_call.1} parent=1 // pred_fallthru
      _
    // Predicated region
    $region70: #{tpu_custom_call.1} parent=1 // pred_check
      _
    $region71: #{tpu_custom_call.1} parent=1 // pred_check_branch
      %1998 = sbr.rel (0) target = $region73
    $region72: #{tpu_custom_call.1} parent=1 // pred_region
      %1999 = dma.done [#allocation4], 256
    $region73: #{tpu_custom_call.1} parent=1 // pred_fallthru
      _
    // Predicated region
    $region74: #{tpu_custom_call.1} parent=1 // pred_check
      _
    $region75: #{tpu_custom_call.1} parent=1 // pred_check_branch
      %2001 = sbr.rel (0) target = $region77
    $region76: #{tpu_custom_call.1} parent=1 // pred_region
      %2002 = dma.done [#allocation15], 256
    $region77: #{tpu_custom_call.1} parent=1 // pred_fallthru
      _
    // Predicated region
    $region78: #{tpu_custom_call.1} parent=1 // pred_check
      _
    $region79: #{tpu_custom_call.1} parent=1 // pred_check_branch
      %2004 = sbr.rel (0) target = $region81
    $region80: #{tpu_custom_call.1} parent=1 // pred_region
      %2005 = dma.done [#allocation15], 256
    $region81: #{tpu_custom_call.1} parent=1 // pred_fallthru
      _
    %2006 = vsyncpa [#allocation3], 1
    %2007 = vsyncpa [#allocation6], 1
    %2008 = vsyncpa [#allocation9], 1
    %2009 = vsyncpa [#allocation12], 1
    %2010 = vsyncpa [#allocation4], 1
    %2011 = vsyncpa [#allocation15], 1

</llo_original>
